<compile_context>
chip_gen: v6e
topology: v6e:2x2x1
jax: 0.10.0
libtpu: 0.0.40
codegen_flags: <defaults>
</compile_context>

<pallas_src>
import functools

import jax
import jax.numpy as jnp
from jax.experimental import pallas as pl
from jax.experimental.pallas import tpu as pltpu


# ----------------------------- Pallas kernel -------------------------------

def _subpixel_conv_bn_relu_kernel(x0_ref, x1_ref, x2_ref, w_ref, shift_ref, o_ref,
                                  *, tile_h, width, c_pad):
    """One (batch, row-tile) step of the fused upsample+conv+BN+ReLU.

    x{0,1,2}_ref : (1, (H+2)*W, C_in) bf16 -- zero-padded input, column-shifted by 0/1/2
    w_ref        : (4, 4, C_in, c_pad) bf16 -- [phase 2*di+dj, tap 2*r+s] collapsed weights
    shift_ref    : (1, c_pad) f32 -- conv bias + BN shift (per channel)
    o_ref        : (1, 2, 2, tile_h*W, c_pad) f32 -- per-phase outputs for this row tile
    """
    t = pl.program_id(1)
    row0 = t * tile_h
    xcol = (x0_ref, x1_ref, x2_ref)
    shift = shift_ref[...]                      # (1, c_pad) f32
    m = tile_h * width

    for di in range(2):                         # output row phase
        for dj in range(2):                     # output col phase
            acc = jnp.zeros((m, c_pad), jnp.float32)
            for r in range(2):                  # row tap of the collapsed 2x2 kernel
                for s in range(2):              # col tap
                    start = pl.multiple_of((row0 + di + r) * width, width)
                    lhs = xcol[dj + s][0, pl.ds(start, m), :]          # (m, C_in) bf16
                    acc = acc + jnp.dot(lhs, w_ref[2 * di + dj, 2 * r + s],
                                        preferred_element_type=jnp.float32)
            y = jnp.maximum(acc + shift, 0.0)
            o_ref[0, di, dj] = y.astype(o_ref.dtype)


def _pick_row_tile(h, w):
    """Largest divisor tile_h of h with >=2 row tiles, (tile_h*w) % 8 == 0 and a
    matmul M-tile tile_h*w <= 1024; falls back to the full height."""
    for th in range(h - 1, 0, -1):
        if h % th == 0 and (th * w) % 8 == 0 and th * w <= 1024:
            return th
    for th in range(1, h):
        if h % th == 0 and (th * w) % 8 == 0:
            return th
    return h


def _subpixel_conv_bn_relu_pallas(xcols, w_phases, shift_row, n, h, wd):
    """xcols: 3 x (N, (H+2)*W, C_in) bf16; w_phases: (4,4,C_in,Cp) bf16;
    shift_row: (1, Cp) f32.  Returns (N, 2, 2, H*W, Cp) f32."""
    c_in = xcols[0].shape[-1]
    c_pad = w_phases.shape[-1]
    tile_h = _pick_row_tile(h, wd)
    m_tile = tile_h * wd
    flat_in = (h + 2) * wd

    kernel = functools.partial(_subpixel_conv_bn_relu_kernel,
                               tile_h=tile_h, width=wd, c_pad=c_pad)

    return pl.pallas_call(
        kernel,
        out_shape=jax.ShapeDtypeStruct((n, 2, 2, h * wd, c_pad), jnp.float32),
        grid_spec=pl.GridSpec(
            grid=(n, h // tile_h),
            in_specs=[
                pl.BlockSpec((1, flat_in, c_in), lambda b, t: (b, 0, 0)),
                pl.BlockSpec((1, flat_in, c_in), lambda b, t: (b, 0, 0)),
                pl.BlockSpec((1, flat_in, c_in), lambda b, t: (b, 0, 0)),
                pl.BlockSpec((4, 4, c_in, c_pad), lambda b, t: (0, 0, 0, 0)),
                pl.BlockSpec((1, c_pad), lambda b, t: (0, 0)),
            ],
            out_specs=pl.BlockSpec((1, 2, 2, m_tile, c_pad),
                                   lambda b, t: (b, 0, 0, t, 0)),
        ),
        compiler_params=pltpu.CompilerParams(
            dimension_semantics=("parallel", "parallel"),
            vmem_limit_bytes=64 * 1024 * 1024,
        ),
    )(*xcols, w_phases, shift_row)


# ----------------------- weight preparation (wrapper) ------------------------

# For output phase offset d in {0,1} along one spatial axis, collapsed tap r in
# {0,1} sums these original 3x3 kernel indices (derived from nearest x2 upsample):
_TAP_GROUPS = {(0, 0): (0,), (0, 1): (1, 2), (1, 0): (0, 1), (1, 1): (2,)}


def _collapse_subpixel_weights(w_oihw, scale, c_pad):
    """(C_out, C_in, 3, 3) OIHW conv weight -> (4 phases, 4 taps, C_in, c_pad)
    matmul weights for the sub-pixel conv, with the BN scale folded in."""
    c_out, c_in = w_oihw.shape[0], w_oihw.shape[1]
    w_s = w_oihw * scale[:, None, None, None]
    phases = []
    for di in range(2):
        for dj in range(2):
            taps = []
            for r in range(2):
                for s in range(2):
                    acc = jnp.zeros((c_out, c_in), jnp.float32)
                    for kh in _TAP_GROUPS[(di, r)]:
                        for kw in _TAP_GROUPS[(dj, s)]:
                            acc = acc + w_s[:, :, kh, kw]
                    taps.append(acc.T)                       # (C_in, C_out)
            phases.append(jnp.stack(taps, axis=0))           # (4, C_in, C_out)
    wp = jnp.stack(phases, axis=0)                           # (4, 4, C_in, C_out)
    return jnp.pad(wp, ((0, 0), (0, 0), (0, 0), (0, c_pad - c_out)))


# ------------------------------ Wrapper -------------------------------------

def decoder_block_forward(x_nchw, params, eps=1e-5):
    """Forward pass of decoder_block (reduction_ratio=None).

    x_nchw: (N, C_in, H, W) float32 -> (N, C_out, 2H, 2W) float32
    """
    w_oihw = params["conv_w"]     # (C_out, C_in, 3, 3)
    b = params["conv_b"]
    gamma, beta = params["bn_gamma"], params["bn_beta"]
    rmean, rvar = params["bn_mean"], params["bn_var"]

    n, c_in, h, wd = x_nchw.shape
    c_out = w_oihw.shape[0]
    c_pad = ((c_out + 127) // 128) * 128       # lane-dense output channels

    # fold inference BatchNorm (+ conv bias) into per-channel scale / shift
    scale = gamma * jax.lax.rsqrt(rvar + eps)
    shift = (b - rmean) * scale + beta

    w_phases = _collapse_subpixel_weights(w_oihw, scale, c_pad).astype(jnp.bfloat16)
    shift_row = jnp.pad(shift, (0, c_pad - c_out)).reshape(1, c_pad).astype(jnp.float32)

    # NCHW -> NHWC, zero-pad spatially by 1, cast to bf16, and build the 3
    # column-shifted flattened views used for the in-kernel 2x2-tap gather.
    x_nhwc = jnp.transpose(x_nchw, (0, 2, 3, 1)).astype(jnp.bfloat16)
    x_pad = jnp.pad(x_nhwc, ((0, 0), (1, 1), (1, 1), (0, 0)))
    xcols = tuple(x_pad[:, :, c:c + wd, :].reshape(n, (h + 2) * wd, c_in)
                  for c in range(3))

    out = _subpixel_conv_bn_relu_pallas(xcols, w_phases, shift_row, n, h, wd)

    # (N, 2, 2, H*W, Cp) -> interleave the 4 phases -> NCHW
    out = out.reshape(n, 2, 2, h, wd, c_pad)[..., :c_out]      # (N,2,2,H,W,Cout)
    out = jnp.transpose(out, (0, 3, 1, 4, 2, 5))               # (N,H,2,W,2,Cout)
    out = out.reshape(n, 2 * h, 2 * wd, c_out)
    return jnp.transpose(out, (0, 3, 1, 2))                    # (N,Cout,2H,2W)


# -------------------------- deterministic params ----------------------------

def init_params(key, ch_in, ch_out):
    k_w, k_b, k_g, k_be, k_m, k_v = jax.random.split(key, 6)
    fan_in = ch_in * 3 * 3
    bound = 1.0 / jnp.sqrt(jnp.float32(fan_in))
    return {
        "conv_w": jax.random.uniform(k_w, (ch_out, ch_in, 3, 3),
                                     jnp.float32, -bound, bound),
        "conv_b": jax.random.uniform(k_b, (ch_out,), jnp.float32, -bound, bound),
        "bn_gamma": jax.random.uniform(k_g, (ch_out,), jnp.float32, 0.5, 1.5),
        "bn_beta": 0.1 * jax.random.normal(k_be, (ch_out,), jnp.float32),
        "bn_mean": 0.1 * jax.random.normal(k_m, (ch_out,), jnp.float32),
        "bn_var": jax.random.uniform(k_v, (ch_out,), jnp.float32, 0.5, 1.5),
    }


# --------------------------- pure-JAX reference ------------------------------

def decoder_block_reference(x_nchw, params, eps=1e-5):
    x_up = jnp.repeat(jnp.repeat(x_nchw, 2, axis=2), 2, axis=3)
    y = jax.lax.conv_general_dilated(
        x_up, params["conv_w"], window_strides=(1, 1),
        padding=((1, 1), (1, 1)),
        dimension_numbers=("NCHW", "OIHW", "NCHW"))
    y = y + params["conv_b"][None, :, None, None]
    scale = params["bn_gamma"] / jnp.sqrt(params["bn_var"] + eps)
    shift = params["bn_beta"] - params["bn_mean"] * scale
    y = y * scale[None, :, None, None] + shift[None, :, None, None]
    return jnp.maximum(y, 0.0)


# --------------------------------- main --------------------------------------

if __name__ == "__main__":
    key = jax.random.PRNGKey(0)
    k_x, k_p = jax.random.split(key)

    ch_in, ch_out = 4, 8
    x = jax.random.normal(k_x, (2, ch_in, 16, 16), dtype=jnp.float32)
    params = init_params(k_p, ch_in, ch_out)

    fwd = jax.jit(decoder_block_forward)
    out = jax.block_until_ready(fwd(x, params))
    ref = jax.block_until_ready(decoder_block_reference(x, params))

    assert out.shape == (2, ch_out, 32, 32), out.shape
    # bf16 MXU operands (f32 accumulate) -> relaxed tolerance vs the f32 reference.
    max_err = float(jnp.max(jnp.abs(out - ref)))
    assert jnp.allclose(out, ref, rtol=5e-2, atol=5e-2), max_err

    print("KERNEL_OK")
</pallas_src>

<mosaic_0001>
module attributes {stable_mosaic.version = 11 : i64} {
  func.func @_subpixel_conv_bn_relu_kernel(%arg0: i32, %arg1: i32, %arg2: memref<1x288x4xbf16, #tpu.memory_space<vmem>>, %arg3: memref<1x288x4xbf16, #tpu.memory_space<vmem>>, %arg4: memref<1x288x4xbf16, #tpu.memory_space<vmem>>, %arg5: memref<4x4x4x128xbf16, #tpu.memory_space<vmem>>, %arg6: memref<1x128xf32, #tpu.memory_space<vmem>>, %arg7: memref<1x2x2x128x128xf32, #tpu.memory_space<vmem>>) attributes {dimension_semantics = [#tpu.dimension_semantics<parallel>, #tpu.dimension_semantics<parallel>], iteration_bounds = array<i64: 2, 2>, scalar_prefetch = 0 : i64, scratch_operands = 0 : i64, tpu.core_type = #tpu.core_type<tc>, window_params = [{transform_indices = @transform_0, window_bounds = array<i64: 1, 288, 4>}, {transform_indices = @transform_1, window_bounds = array<i64: 1, 288, 4>}, {transform_indices = @transform_2, window_bounds = array<i64: 1, 288, 4>}, {pipeline_mode = #tpu.pipeline_mode<synchronous>, transform_indices = @transform_3, window_bounds = array<i64: 4, 4, 4, 128>}, {pipeline_mode = #tpu.pipeline_mode<synchronous>, transform_indices = @transform_4, window_bounds = array<i64: 1, 128>}, {transform_indices = @transform_5, window_bounds = array<i64: 1, 2, 2, 128, 128>}]} {
    %c8_i32 = arith.constant 8 : i32
    %0 = arith.muli %arg1, %c8_i32 : i32
    %c0 = arith.constant 0 : index
    %c0_0 = arith.constant 0 : index
    %1 = vector.load %arg6[%c0, %c0_0] : memref<1x128xf32, #tpu.memory_space<vmem>>, vector<1x128xf32>
    %cst = arith.constant 0.000000e+00 : f32
    %2 = vector.broadcast %cst : f32 to vector<128x128xf32>
    %c0_i32 = arith.constant 0 : i32
    %3 = arith.addi %0, %c0_i32 : i32
    %c0_i32_1 = arith.constant 0 : i32
    %4 = arith.addi %3, %c0_i32_1 : i32
    %c16_i32 = arith.constant 16 : i32
    %5 = arith.muli %4, %c16_i32 : i32
    %6 = tpu.assume_multiple %5, 16 : i32
    %c0_2 = arith.constant 0 : index
    %7 = arith.index_cast %6 : i32 to index
    %c0_3 = arith.constant 0 : index
    %8 = vector.load %arg2[%c0_2, %7, %c0_3] : memref<1x288x4xbf16, #tpu.memory_space<vmem>>, vector<1x128x4xbf16>
    %9 = vector.shape_cast %8 : vector<1x128x4xbf16> to vector<128x4xbf16>
    %c0_4 = arith.constant 0 : index
    %c0_5 = arith.constant 0 : index
    %c0_6 = arith.constant 0 : index
    %c0_7 = arith.constant 0 : index
    %10 = vector.load %arg5[%c0_4, %c0_5, %c0_6, %c0_7] : memref<4x4x4x128xbf16, #tpu.memory_space<vmem>>, vector<1x1x4x128xbf16>
    %11 = vector.shape_cast %10 : vector<1x1x4x128xbf16> to vector<4x128xbf16>
    %cst_8 = arith.constant dense<0.000000e+00> : vector<128x128xf32>
    %12 = tpu.matmul %9, %11, %cst_8 {dimension_numbers = #tpu.dot_dimension_numbers<[1], [0], [0], [1], [0, 0, 1, 1], [], []>} : vector<128x4xbf16>, vector<4x128xbf16>, vector<128x128xf32> -> vector<128x128xf32>
    %13 = arith.addf %2, %12 : vector<128x128xf32>
    %c0_i32_9 = arith.constant 0 : i32
    %14 = arith.addi %0, %c0_i32_9 : i32
    %c0_i32_10 = arith.constant 0 : i32
    %15 = arith.addi %14, %c0_i32_10 : i32
    %c16_i32_11 = arith.constant 16 : i32
    %16 = arith.muli %15, %c16_i32_11 : i32
    %17 = tpu.assume_multiple %16, 16 : i32
    %c0_12 = arith.constant 0 : index
    %18 = arith.index_cast %17 : i32 to index
    %c0_13 = arith.constant 0 : index
    %19 = vector.load %arg3[%c0_12, %18, %c0_13] : memref<1x288x4xbf16, #tpu.memory_space<vmem>>, vector<1x128x4xbf16>
    %20 = vector.shape_cast %19 : vector<1x128x4xbf16> to vector<128x4xbf16>
    %c0_14 = arith.constant 0 : index
    %c1 = arith.constant 1 : index
    %c0_15 = arith.constant 0 : index
    %c0_16 = arith.constant 0 : index
    %21 = vector.load %arg5[%c0_14, %c1, %c0_15, %c0_16] : memref<4x4x4x128xbf16, #tpu.memory_space<vmem>>, vector<1x1x4x128xbf16>
    %22 = vector.shape_cast %21 : vector<1x1x4x128xbf16> to vector<4x128xbf16>
    %cst_17 = arith.constant dense<0.000000e+00> : vector<128x128xf32>
    %23 = tpu.matmul %20, %22, %cst_17 {dimension_numbers = #tpu.dot_dimension_numbers<[1], [0], [0], [1], [0, 0, 1, 1], [], []>} : vector<128x4xbf16>, vector<4x128xbf16>, vector<128x128xf32> -> vector<128x128xf32>
    %24 = arith.addf %13, %23 : vector<128x128xf32>
    %c0_i32_18 = arith.constant 0 : i32
    %25 = arith.addi %0, %c0_i32_18 : i32
    %c1_i32 = arith.constant 1 : i32
    %26 = arith.addi %25, %c1_i32 : i32
    %c16_i32_19 = arith.constant 16 : i32
    %27 = arith.muli %26, %c16_i32_19 : i32
    %28 = tpu.assume_multiple %27, 16 : i32
    %c0_20 = arith.constant 0 : index
    %29 = arith.index_cast %28 : i32 to index
    %c0_21 = arith.constant 0 : index
    %30 = vector.load %arg2[%c0_20, %29, %c0_21] : memref<1x288x4xbf16, #tpu.memory_space<vmem>>, vector<1x128x4xbf16>
    %31 = vector.shape_cast %30 : vector<1x128x4xbf16> to vector<128x4xbf16>
    %c0_22 = arith.constant 0 : index
    %c2 = arith.constant 2 : index
    %c0_23 = arith.constant 0 : index
    %c0_24 = arith.constant 0 : index
    %32 = vector.load %arg5[%c0_22, %c2, %c0_23, %c0_24] : memref<4x4x4x128xbf16, #tpu.memory_space<vmem>>, vector<1x1x4x128xbf16>
    %33 = vector.shape_cast %32 : vector<1x1x4x128xbf16> to vector<4x128xbf16>
    %cst_25 = arith.constant dense<0.000000e+00> : vector<128x128xf32>
    %34 = tpu.matmul %31, %33, %cst_25 {dimension_numbers = #tpu.dot_dimension_numbers<[1], [0], [0], [1], [0, 0, 1, 1], [], []>} : vector<128x4xbf16>, vector<4x128xbf16>, vector<128x128xf32> -> vector<128x128xf32>
    %35 = arith.addf %24, %34 : vector<128x128xf32>
    %c0_i32_26 = arith.constant 0 : i32
    %36 = arith.addi %0, %c0_i32_26 : i32
    %c1_i32_27 = arith.constant 1 : i32
    %37 = arith.addi %36, %c1_i32_27 : i32
    %c16_i32_28 = arith.constant 16 : i32
    %38 = arith.muli %37, %c16_i32_28 : i32
    %39 = tpu.assume_multiple %38, 16 : i32
    %c0_29 = arith.constant 0 : index
    %40 = arith.index_cast %39 : i32 to index
    %c0_30 = arith.constant 0 : index
    %41 = vector.load %arg3[%c0_29, %40, %c0_30] : memref<1x288x4xbf16, #tpu.memory_space<vmem>>, vector<1x128x4xbf16>
    %42 = vector.shape_cast %41 : vector<1x128x4xbf16> to vector<128x4xbf16>
    %c0_31 = arith.constant 0 : index
    %c3 = arith.constant 3 : index
    %c0_32 = arith.constant 0 : index
    %c0_33 = arith.constant 0 : index
    %43 = vector.load %arg5[%c0_31, %c3, %c0_32, %c0_33] : memref<4x4x4x128xbf16, #tpu.memory_space<vmem>>, vector<1x1x4x128xbf16>
    %44 = vector.shape_cast %43 : vector<1x1x4x128xbf16> to vector<4x128xbf16>
    %cst_34 = arith.constant dense<0.000000e+00> : vector<128x128xf32>
    %45 = tpu.matmul %42, %44, %cst_34 {dimension_numbers = #tpu.dot_dimension_numbers<[1], [0], [0], [1], [0, 0, 1, 1], [], []>} : vector<128x4xbf16>, vector<4x128xbf16>, vector<128x128xf32> -> vector<128x128xf32>
    %46 = arith.addf %35, %45 : vector<128x128xf32>
    %47 = vector.broadcast %1 : vector<1x128xf32> to vector<128x128xf32>
    %48 = arith.addf %46, %47 : vector<128x128xf32>
    %cst_35 = arith.constant 0.000000e+00 : f32
    %49 = vector.broadcast %cst_35 : f32 to vector<128x128xf32>
    %50 = arith.maximumf %48, %49 : vector<128x128xf32>
    %c0_36 = arith.constant 0 : index
    %c0_37 = arith.constant 0 : index
    %c0_38 = arith.constant 0 : index
    %c0_39 = arith.constant 0 : index
    %c0_40 = arith.constant 0 : index
    %51 = vector.load %arg7[%c0_36, %c0_37, %c0_38, %c0_39, %c0_40] : memref<1x2x2x128x128xf32, #tpu.memory_space<vmem>>, vector<1x1x1x128x128xf32>
    %52 = vector.shape_cast %51 : vector<1x1x1x128x128xf32> to vector<128x128xf32>
    %53 = vector.shape_cast %50 : vector<128x128xf32> to vector<1x1x1x128x128xf32>
    tpu.vector_store %arg7[%c0_36, %c0_37, %c0_38, %c0_39, %c0_40], %53 {strides = array<i32>} : memref<1x2x2x128x128xf32, #tpu.memory_space<vmem>>, vector<1x1x1x128x128xf32>,
    %cst_41 = arith.constant 0.000000e+00 : f32
    %54 = vector.broadcast %cst_41 : f32 to vector<128x128xf32>
    %c0_i32_42 = arith.constant 0 : i32
    %55 = arith.addi %0, %c0_i32_42 : i32
    %c0_i32_43 = arith.constant 0 : i32
    %56 = arith.addi %55, %c0_i32_43 : i32
    %c16_i32_44 = arith.constant 16 : i32
    %57 = arith.muli %56, %c16_i32_44 : i32
    %58 = tpu.assume_multiple %57, 16 : i32
    %c0_45 = arith.constant 0 : index
    %59 = arith.index_cast %58 : i32 to index
    %c0_46 = arith.constant 0 : index
    %60 = vector.load %arg3[%c0_45, %59, %c0_46] : memref<1x288x4xbf16, #tpu.memory_space<vmem>>, vector<1x128x4xbf16>
    %61 = vector.shape_cast %60 : vector<1x128x4xbf16> to vector<128x4xbf16>
    %c1_47 = arith.constant 1 : index
    %c0_48 = arith.constant 0 : index
    %c0_49 = arith.constant 0 : index
    %c0_50 = arith.constant 0 : index
    %62 = vector.load %arg5[%c1_47, %c0_48, %c0_49, %c0_50] : memref<4x4x4x128xbf16, #tpu.memory_space<vmem>>, vector<1x1x4x128xbf16>
    %63 = vector.shape_cast %62 : vector<1x1x4x128xbf16> to vector<4x128xbf16>
    %cst_51 = arith.constant dense<0.000000e+00> : vector<128x128xf32>
    %64 = tpu.matmul %61, %63, %cst_51 {dimension_numbers = #tpu.dot_dimension_numbers<[1], [0], [0], [1], [0, 0, 1, 1], [], []>} : vector<128x4xbf16>, vector<4x128xbf16>, vector<128x128xf32> -> vector<128x128xf32>
    %65 = arith.addf %54, %64 : vector<128x128xf32>
    %c0_i32_52 = arith.constant 0 : i32
    %66 = arith.addi %0, %c0_i32_52 : i32
    %c0_i32_53 = arith.constant 0 : i32
    %67 = arith.addi %66, %c0_i32_53 : i32
    %c16_i32_54 = arith.constant 16 : i32
    %68 = arith.muli %67, %c16_i32_54 : i32
    %69 = tpu.assume_multiple %68, 16 : i32
    %c0_55 = arith.constant 0 : index
    %70 = arith.index_cast %69 : i32 to index
    %c0_56 = arith.constant 0 : index
    %71 = vector.load %arg4[%c0_55, %70, %c0_56] : memref<1x288x4xbf16, #tpu.memory_space<vmem>>, vector<1x128x4xbf16>
    %72 = vector.shape_cast %71 : vector<1x128x4xbf16> to vector<128x4xbf16>
    %c1_57 = arith.constant 1 : index
    %c1_58 = arith.constant 1 : index
    %c0_59 = arith.constant 0 : index
    %c0_60 = arith.constant 0 : index
    %73 = vector.load %arg5[%c1_57, %c1_58, %c0_59, %c0_60] : memref<4x4x4x128xbf16, #tpu.memory_space<vmem>>, vector<1x1x4x128xbf16>
    %74 = vector.shape_cast %73 : vector<1x1x4x128xbf16> to vector<4x128xbf16>
    %cst_61 = arith.constant dense<0.000000e+00> : vector<128x128xf32>
    %75 = tpu.matmul %72, %74, %cst_61 {dimension_numbers = #tpu.dot_dimension_numbers<[1], [0], [0], [1], [0, 0, 1, 1], [], []>} : vector<128x4xbf16>, vector<4x128xbf16>, vector<128x128xf32> -> vector<128x128xf32>
    %76 = arith.addf %65, %75 : vector<128x128xf32>
    %c0_i32_62 = arith.constant 0 : i32
    %77 = arith.addi %0, %c0_i32_62 : i32
    %c1_i32_63 = arith.constant 1 : i32
    %78 = arith.addi %77, %c1_i32_63 : i32
    %c16_i32_64 = arith.constant 16 : i32
    %79 = arith.muli %78, %c16_i32_64 : i32
    %80 = tpu.assume_multiple %79, 16 : i32
    %c0_65 = arith.constant 0 : index
    %81 = arith.index_cast %80 : i32 to index
    %c0_66 = arith.constant 0 : index
    %82 = vector.load %arg3[%c0_65, %81, %c0_66] : memref<1x288x4xbf16, #tpu.memory_space<vmem>>, vector<1x128x4xbf16>
    %83 = vector.shape_cast %82 : vector<1x128x4xbf16> to vector<128x4xbf16>
    %c1_67 = arith.constant 1 : index
    %c2_68 = arith.constant 2 : index
    %c0_69 = arith.constant 0 : index
    %c0_70 = arith.constant 0 : index
    %84 = vector.load %arg5[%c1_67, %c2_68, %c0_69, %c0_70] : memref<4x4x4x128xbf16, #tpu.memory_space<vmem>>, vector<1x1x4x128xbf16>
    %85 = vector.shape_cast %84 : vector<1x1x4x128xbf16> to vector<4x128xbf16>
    %cst_71 = arith.constant dense<0.000000e+00> : vector<128x128xf32>
    %86 = tpu.matmul %83, %85, %cst_71 {dimension_numbers = #tpu.dot_dimension_numbers<[1], [0], [0], [1], [0, 0, 1, 1], [], []>} : vector<128x4xbf16>, vector<4x128xbf16>, vector<128x128xf32> -> vector<128x128xf32>
    %87 = arith.addf %76, %86 : vector<128x128xf32>
    %c0_i32_72 = arith.constant 0 : i32
    %88 = arith.addi %0, %c0_i32_72 : i32
    %c1_i32_73 = arith.constant 1 : i32
    %89 = arith.addi %88, %c1_i32_73 : i32
    %c16_i32_74 = arith.constant 16 : i32
    %90 = arith.muli %89, %c16_i32_74 : i32
    %91 = tpu.assume_multiple %90, 16 : i32
    %c0_75 = arith.constant 0 : index
    %92 = arith.index_cast %91 : i32 to index
    %c0_76 = arith.constant 0 : index
    %93 = vector.load %arg4[%c0_75, %92, %c0_76] : memref<1x288x4xbf16, #tpu.memory_space<vmem>>, vector<1x128x4xbf16>
    %94 = vector.shape_cast %93 : vector<1x128x4xbf16> to vector<128x4xbf16>
    %c1_77 = arith.constant 1 : index
    %c3_78 = arith.constant 3 : index
    %c0_79 = arith.constant 0 : index
    %c0_80 = arith.constant 0 : index
    %95 = vector.load %arg5[%c1_77, %c3_78, %c0_79, %c0_80] : memref<4x4x4x128xbf16, #tpu.memory_space<vmem>>, vector<1x1x4x128xbf16>
    %96 = vector.shape_cast %95 : vector<1x1x4x128xbf16> to vector<4x128xbf16>
    %cst_81 = arith.constant dense<0.000000e+00> : vector<128x128xf32>
    %97 = tpu.matmul %94, %96, %cst_81 {dimension_numbers = #tpu.dot_dimension_numbers<[1], [0], [0], [1], [0, 0, 1, 1], [], []>} : vector<128x4xbf16>, vector<4x128xbf16>, vector<128x128xf32> -> vector<128x128xf32>
    %98 = arith.addf %87, %97 : vector<128x128xf32>
    %99 = vector.broadcast %1 : vector<1x128xf32> to vector<128x128xf32>
    %100 = arith.addf %98, %99 : vector<128x128xf32>
    %cst_82 = arith.constant 0.000000e+00 : f32
    %101 = vector.broadcast %cst_82 : f32 to vector<128x128xf32>
    %102 = arith.maximumf %100, %101 : vector<128x128xf32>
    %c0_83 = arith.constant 0 : index
    %c0_84 = arith.constant 0 : index
    %c1_85 = arith.constant 1 : index
    %c0_86 = arith.constant 0 : index
    %c0_87 = arith.constant 0 : index
    %103 = vector.load %arg7[%c0_83, %c0_84, %c1_85, %c0_86, %c0_87] : memref<1x2x2x128x128xf32, #tpu.memory_space<vmem>>, vector<1x1x1x128x128xf32>
    %104 = vector.shape_cast %103 : vector<1x1x1x128x128xf32> to vector<128x128xf32>
    %105 = vector.shape_cast %102 : vector<128x128xf32> to vector<1x1x1x128x128xf32>
    tpu.vector_store %arg7[%c0_83, %c0_84, %c1_85, %c0_86, %c0_87], %105 {strides = array<i32>} : memref<1x2x2x128x128xf32, #tpu.memory_space<vmem>>, vector<1x1x1x128x128xf32>,
    %cst_88 = arith.constant 0.000000e+00 : f32
    %106 = vector.broadcast %cst_88 : f32 to vector<128x128xf32>
    %c1_i32_89 = arith.constant 1 : i32
    %107 = arith.addi %0, %c1_i32_89 : i32
    %c0_i32_90 = arith.constant 0 : i32
    %108 = arith.addi %107, %c0_i32_90 : i32
    %c16_i32_91 = arith.constant 16 : i32
    %109 = arith.muli %108, %c16_i32_91 : i32
    %110 = tpu.assume_multiple %109, 16 : i32
    %c0_92 = arith.constant 0 : index
    %111 = arith.index_cast %110 : i32 to index
    %c0_93 = arith.constant 0 : index
    %112 = vector.load %arg2[%c0_92, %111, %c0_93] : memref<1x288x4xbf16, #tpu.memory_space<vmem>>, vector<1x128x4xbf16>
    %113 = vector.shape_cast %112 : vector<1x128x4xbf16> to vector<128x4xbf16>
    %c2_94 = arith.constant 2 : index
    %c0_95 = arith.constant 0 : index
    %c0_96 = arith.constant 0 : index
    %c0_97 = arith.constant 0 : index
    %114 = vector.load %arg5[%c2_94, %c0_95, %c0_96, %c0_97] : memref<4x4x4x128xbf16, #tpu.memory_space<vmem>>, vector<1x1x4x128xbf16>
    %115 = vector.shape_cast %114 : vector<1x1x4x128xbf16> to vector<4x128xbf16>
    %cst_98 = arith.constant dense<0.000000e+00> : vector<128x128xf32>
    %116 = tpu.matmul %113, %115, %cst_98 {dimension_numbers = #tpu.dot_dimension_numbers<[1], [0], [0], [1], [0, 0, 1, 1], [], []>} : vector<128x4xbf16>, vector<4x128xbf16>, vector<128x128xf32> -> vector<128x128xf32>
    %117 = arith.addf %106, %116 : vector<128x128xf32>
    %c1_i32_99 = arith.constant 1 : i32
    %118 = arith.addi %0, %c1_i32_99 : i32
    %c0_i32_100 = arith.constant 0 : i32
    %119 = arith.addi %118, %c0_i32_100 : i32
    %c16_i32_101 = arith.constant 16 : i32
    %120 = arith.muli %119, %c16_i32_101 : i32
    %121 = tpu.assume_multiple %120, 16 : i32
    %c0_102 = arith.constant 0 : index
    %122 = arith.index_cast %121 : i32 to index
    %c0_103 = arith.constant 0 : index
    %123 = vector.load %arg3[%c0_102, %122, %c0_103] : memref<1x288x4xbf16, #tpu.memory_space<vmem>>, vector<1x128x4xbf16>
    %124 = vector.shape_cast %123 : vector<1x128x4xbf16> to vector<128x4xbf16>
    %c2_104 = arith.constant 2 : index
    %c1_105 = arith.constant 1 : index
    %c0_106 = arith.constant 0 : index
    %c0_107 = arith.constant 0 : index
    %125 = vector.load %arg5[%c2_104, %c1_105, %c0_106, %c0_107] : memref<4x4x4x128xbf16, #tpu.memory_space<vmem>>, vector<1x1x4x128xbf16>
    %126 = vector.shape_cast %125 : vector<1x1x4x128xbf16> to vector<4x128xbf16>
    %cst_108 = arith.constant dense<0.000000e+00> : vector<128x128xf32>
    %127 = tpu.matmul %124, %126, %cst_108 {dimension_numbers = #tpu.dot_dimension_numbers<[1], [0], [0], [1], [0, 0, 1, 1], [], []>} : vector<128x4xbf16>, vector<4x128xbf16>, vector<128x128xf32> -> vector<128x128xf32>
    %128 = arith.addf %117, %127 : vector<128x128xf32>
    %c1_i32_109 = arith.constant 1 : i32
    %129 = arith.addi %0, %c1_i32_109 : i32
    %c1_i32_110 = arith.constant 1 : i32
    %130 = arith.addi %129, %c1_i32_110 : i32
    %c16_i32_111 = arith.constant 16 : i32
    %131 = arith.muli %130, %c16_i32_111 : i32
    %132 = tpu.assume_multiple %131, 16 : i32
    %c0_112 = arith.constant 0 : index
    %133 = arith.index_cast %132 : i32 to index
    %c0_113 = arith.constant 0 : index
    %134 = vector.load %arg2[%c0_112, %133, %c0_113] : memref<1x288x4xbf16, #tpu.memory_space<vmem>>, vector<1x128x4xbf16>
    %135 = vector.shape_cast %134 : vector<1x128x4xbf16> to vector<128x4xbf16>
    %c2_114 = arith.constant 2 : index
    %c2_115 = arith.constant 2 : index
    %c0_116 = arith.constant 0 : index
    %c0_117 = arith.constant 0 : index
    %136 = vector.load %arg5[%c2_114, %c2_115, %c0_116, %c0_117] : memref<4x4x4x128xbf16, #tpu.memory_space<vmem>>, vector<1x1x4x128xbf16>
    %137 = vector.shape_cast %136 : vector<1x1x4x128xbf16> to vector<4x128xbf16>
    %cst_118 = arith.constant dense<0.000000e+00> : vector<128x128xf32>
    %138 = tpu.matmul %135, %137, %cst_118 {dimension_numbers = #tpu.dot_dimension_numbers<[1], [0], [0], [1], [0, 0, 1, 1], [], []>} : vector<128x4xbf16>, vector<4x128xbf16>, vector<128x128xf32> -> vector<128x128xf32>
    %139 = arith.addf %128, %138 : vector<128x128xf32>
    %c1_i32_119 = arith.constant 1 : i32
    %140 = arith.addi %0, %c1_i32_119 : i32
    %c1_i32_120 = arith.constant 1 : i32
    %141 = arith.addi %140, %c1_i32_120 : i32
    %c16_i32_121 = arith.constant 16 : i32
    %142 = arith.muli %141, %c16_i32_121 : i32
    %143 = tpu.assume_multiple %142, 16 : i32
    %c0_122 = arith.constant 0 : index
    %144 = arith.index_cast %143 : i32 to index
    %c0_123 = arith.constant 0 : index
    %145 = vector.load %arg3[%c0_122, %144, %c0_123] : memref<1x288x4xbf16, #tpu.memory_space<vmem>>, vector<1x128x4xbf16>
    %146 = vector.shape_cast %145 : vector<1x128x4xbf16> to vector<128x4xbf16>
    %c2_124 = arith.constant 2 : index
    %c3_125 = arith.constant 3 : index
    %c0_126 = arith.constant 0 : index
    %c0_127 = arith.constant 0 : index
    %147 = vector.load %arg5[%c2_124, %c3_125, %c0_126, %c0_127] : memref<4x4x4x128xbf16, #tpu.memory_space<vmem>>, vector<1x1x4x128xbf16>
    %148 = vector.shape_cast %147 : vector<1x1x4x128xbf16> to vector<4x128xbf16>
    %cst_128 = arith.constant dense<0.000000e+00> : vector<128x128xf32>
    %149 = tpu.matmul %146, %148, %cst_128 {dimension_numbers = #tpu.dot_dimension_numbers<[1], [0], [0], [1], [0, 0, 1, 1], [], []>} : vector<128x4xbf16>, vector<4x128xbf16>, vector<128x128xf32> -> vector<128x128xf32>
    %150 = arith.addf %139, %149 : vector<128x128xf32>
    %151 = vector.broadcast %1 : vector<1x128xf32> to vector<128x128xf32>
    %152 = arith.addf %150, %151 : vector<128x128xf32>
    %cst_129 = arith.constant 0.000000e+00 : f32
    %153 = vector.broadcast %cst_129 : f32 to vector<128x128xf32>
    %154 = arith.maximumf %152, %153 : vector<128x128xf32>
    %c0_130 = arith.constant 0 : index
    %c1_131 = arith.constant 1 : index
    %c0_132 = arith.constant 0 : index
    %c0_133 = arith.constant 0 : index
    %c0_134 = arith.constant 0 : index
    %155 = vector.load %arg7[%c0_130, %c1_131, %c0_132, %c0_133, %c0_134] : memref<1x2x2x128x128xf32, #tpu.memory_space<vmem>>, vector<1x1x1x128x128xf32>
    %156 = vector.shape_cast %155 : vector<1x1x1x128x128xf32> to vector<128x128xf32>
    %157 = vector.shape_cast %154 : vector<128x128xf32> to vector<1x1x1x128x128xf32>
    tpu.vector_store %arg7[%c0_130, %c1_131, %c0_132, %c0_133, %c0_134], %157 {strides = array<i32>} : memref<1x2x2x128x128xf32, #tpu.memory_space<vmem>>, vector<1x1x1x128x128xf32>,
    %cst_135 = arith.constant 0.000000e+00 : f32
    %158 = vector.broadcast %cst_135 : f32 to vector<128x128xf32>
    %c1_i32_136 = arith.constant 1 : i32
    %159 = arith.addi %0, %c1_i32_136 : i32
    %c0_i32_137 = arith.constant 0 : i32
    %160 = arith.addi %159, %c0_i32_137 : i32
    %c16_i32_138 = arith.constant 16 : i32
    %161 = arith.muli %160, %c16_i32_138 : i32
    %162 = tpu.assume_multiple %161, 16 : i32
    %c0_139 = arith.constant 0 : index
    %163 = arith.index_cast %162 : i32 to index
    %c0_140 = arith.constant 0 : index
    %164 = vector.load %arg3[%c0_139, %163, %c0_140] : memref<1x288x4xbf16, #tpu.memory_space<vmem>>, vector<1x128x4xbf16>
    %165 = vector.shape_cast %164 : vector<1x128x4xbf16> to vector<128x4xbf16>
    %c3_141 = arith.constant 3 : index
    %c0_142 = arith.constant 0 : index
    %c0_143 = arith.constant 0 : index
    %c0_144 = arith.constant 0 : index
    %166 = vector.load %arg5[%c3_141, %c0_142, %c0_143, %c0_144] : memref<4x4x4x128xbf16, #tpu.memory_space<vmem>>, vector<1x1x4x128xbf16>
    %167 = vector.shape_cast %166 : vector<1x1x4x128xbf16> to vector<4x128xbf16>
    %cst_145 = arith.constant dense<0.000000e+00> : vector<128x128xf32>
    %168 = tpu.matmul %165, %167, %cst_145 {dimension_numbers = #tpu.dot_dimension_numbers<[1], [0], [0], [1], [0, 0, 1, 1], [], []>} : vector<128x4xbf16>, vector<4x128xbf16>, vector<128x128xf32> -> vector<128x128xf32>
    %169 = arith.addf %158, %168 : vector<128x128xf32>
    %c1_i32_146 = arith.constant 1 : i32
    %170 = arith.addi %0, %c1_i32_146 : i32
    %c0_i32_147 = arith.constant 0 : i32
    %171 = arith.addi %170, %c0_i32_147 : i32
    %c16_i32_148 = arith.constant 16 : i32
    %172 = arith.muli %171, %c16_i32_148 : i32
    %173 = tpu.assume_multiple %172, 16 : i32
    %c0_149 = arith.constant 0 : index
    %174 = arith.index_cast %173 : i32 to index
    %c0_150 = arith.constant 0 : index
    %175 = vector.load %arg4[%c0_149, %174, %c0_150] : memref<1x288x4xbf16, #tpu.memory_space<vmem>>, vector<1x128x4xbf16>
    %176 = vector.shape_cast %175 : vector<1x128x4xbf16> to vector<128x4xbf16>
    %c3_151 = arith.constant 3 : index
    %c1_152 = arith.constant 1 : index
    %c0_153 = arith.constant 0 : index
    %c0_154 = arith.constant 0 : index
    %177 = vector.load %arg5[%c3_151, %c1_152, %c0_153, %c0_154] : memref<4x4x4x128xbf16, #tpu.memory_space<vmem>>, vector<1x1x4x128xbf16>
    %178 = vector.shape_cast %177 : vector<1x1x4x128xbf16> to vector<4x128xbf16>
    %cst_155 = arith.constant dense<0.000000e+00> : vector<128x128xf32>
    %179 = tpu.matmul %176, %178, %cst_155 {dimension_numbers = #tpu.dot_dimension_numbers<[1], [0], [0], [1], [0, 0, 1, 1], [], []>} : vector<128x4xbf16>, vector<4x128xbf16>, vector<128x128xf32> -> vector<128x128xf32>
    %180 = arith.addf %169, %179 : vector<128x128xf32>
    %c1_i32_156 = arith.constant 1 : i32
    %181 = arith.addi %0, %c1_i32_156 : i32
    %c1_i32_157 = arith.constant 1 : i32
    %182 = arith.addi %181, %c1_i32_157 : i32
    %c16_i32_158 = arith.constant 16 : i32
    %183 = arith.muli %182, %c16_i32_158 : i32
    %184 = tpu.assume_multiple %183, 16 : i32
    %c0_159 = arith.constant 0 : index
    %185 = arith.index_cast %184 : i32 to index
    %c0_160 = arith.constant 0 : index
    %186 = vector.load %arg3[%c0_159, %185, %c0_160] : memref<1x288x4xbf16, #tpu.memory_space<vmem>>, vector<1x128x4xbf16>
    %187 = vector.shape_cast %186 : vector<1x128x4xbf16> to vector<128x4xbf16>
    %c3_161 = arith.constant 3 : index
    %c2_162 = arith.constant 2 : index
    %c0_163 = arith.constant 0 : index
    %c0_164 = arith.constant 0 : index
    %188 = vector.load %arg5[%c3_161, %c2_162, %c0_163, %c0_164] : memref<4x4x4x128xbf16, #tpu.memory_space<vmem>>, vector<1x1x4x128xbf16>
    %189 = vector.shape_cast %188 : vector<1x1x4x128xbf16> to vector<4x128xbf16>
    %cst_165 = arith.constant dense<0.000000e+00> : vector<128x128xf32>
    %190 = tpu.matmul %187, %189, %cst_165 {dimension_numbers = #tpu.dot_dimension_numbers<[1], [0], [0], [1], [0, 0, 1, 1], [], []>} : vector<128x4xbf16>, vector<4x128xbf16>, vector<128x128xf32> -> vector<128x128xf32>
    %191 = arith.addf %180, %190 : vector<128x128xf32>
    %c1_i32_166 = arith.constant 1 : i32
    %192 = arith.addi %0, %c1_i32_166 : i32
    %c1_i32_167 = arith.constant 1 : i32
    %193 = arith.addi %192, %c1_i32_167 : i32
    %c16_i32_168 = arith.constant 16 : i32
    %194 = arith.muli %193, %c16_i32_168 : i32
    %195 = tpu.assume_multiple %194, 16 : i32
    %c0_169 = arith.constant 0 : index
    %196 = arith.index_cast %195 : i32 to index
    %c0_170 = arith.constant 0 : index
    %197 = vector.load %arg4[%c0_169, %196, %c0_170] : memref<1x288x4xbf16, #tpu.memory_space<vmem>>, vector<1x128x4xbf16>
    %198 = vector.shape_cast %197 : vector<1x128x4xbf16> to vector<128x4xbf16>
    %c3_171 = arith.constant 3 : index
    %c3_172 = arith.constant 3 : index
    %c0_173 = arith.constant 0 : index
    %c0_174 = arith.constant 0 : index
    %199 = vector.load %arg5[%c3_171, %c3_172, %c0_173, %c0_174] : memref<4x4x4x128xbf16, #tpu.memory_space<vmem>>, vector<1x1x4x128xbf16>
    %200 = vector.shape_cast %199 : vector<1x1x4x128xbf16> to vector<4x128xbf16>
    %cst_175 = arith.constant dense<0.000000e+00> : vector<128x128xf32>
    %201 = tpu.matmul %198, %200, %cst_175 {dimension_numbers = #tpu.dot_dimension_numbers<[1], [0], [0], [1], [0, 0, 1, 1], [], []>} : vector<128x4xbf16>, vector<4x128xbf16>, vector<128x128xf32> -> vector<128x128xf32>
    %202 = arith.addf %191, %201 : vector<128x128xf32>
    %203 = vector.broadcast %1 : vector<1x128xf32> to vector<128x128xf32>
    %204 = arith.addf %202, %203 : vector<128x128xf32>
    %cst_176 = arith.constant 0.000000e+00 : f32
    %205 = vector.broadcast %cst_176 : f32 to vector<128x128xf32>
    %206 = arith.maximumf %204, %205 : vector<128x128xf32>
    %c0_177 = arith.constant 0 : index
    %c1_178 = arith.constant 1 : index
    %c1_179 = arith.constant 1 : index
    %c0_180 = arith.constant 0 : index
    %c0_181 = arith.constant 0 : index
    %207 = vector.load %arg7[%c0_177, %c1_178, %c1_179, %c0_180, %c0_181] : memref<1x2x2x128x128xf32, #tpu.memory_space<vmem>>, vector<1x1x1x128x128xf32>
    %208 = vector.shape_cast %207 : vector<1x1x1x128x128xf32> to vector<128x128xf32>
    %209 = vector.shape_cast %206 : vector<128x128xf32> to vector<1x1x1x128x128xf32>
    tpu.vector_store %arg7[%c0_177, %c1_178, %c1_179, %c0_180, %c0_181], %209 {strides = array<i32>} : memref<1x2x2x128x128xf32, #tpu.memory_space<vmem>>, vector<1x1x1x128x128xf32>,
    return
  }
  func.func @transform_0(%arg0: i32, %arg1: i32) -> (i32, i32, i32) {
    %c0_i32 = arith.constant 0 : i32
    %c0_i32_0 = arith.constant 0 : i32
    %c0_i32_1 = arith.constant 0 : i32
    return %arg0, %c0_i32, %c0_i32_0 : i32, i32, i32
  }
  func.func @transform_1(%arg0: i32, %arg1: i32) -> (i32, i32, i32) {
    %c0_i32 = arith.constant 0 : i32
    %c0_i32_0 = arith.constant 0 : i32
    %c0_i32_1 = arith.constant 0 : i32
    return %arg0, %c0_i32, %c0_i32_0 : i32, i32, i32
  }
  func.func @transform_2(%arg0: i32, %arg1: i32) -> (i32, i32, i32) {
    %c0_i32 = arith.constant 0 : i32
    %c0_i32_0 = arith.constant 0 : i32
    %c0_i32_1 = arith.constant 0 : i32
    return %arg0, %c0_i32, %c0_i32_0 : i32, i32, i32
  }
  func.func @transform_3(%arg0: i32, %arg1: i32) -> (i32, i32, i32, i32) {
    %c0_i32 = arith.constant 0 : i32
    %c0_i32_0 = arith.constant 0 : i32
    %c0_i32_1 = arith.constant 0 : i32
    %c0_i32_2 = arith.constant 0 : i32
    %c0_i32_3 = arith.constant 0 : i32
    return %c0_i32, %c0_i32_0, %c0_i32_1, %c0_i32_2 : i32, i32, i32, i32
  }
  func.func @transform_4(%arg0: i32, %arg1: i32) -> (i32, i32) {
    %c0_i32 = arith.constant 0 : i32
    %c0_i32_0 = arith.constant 0 : i32
    %c0_i32_1 = arith.constant 0 : i32
    return %c0_i32, %c0_i32_0 : i32, i32
  }
  func.func @transform_5(%arg0: i32, %arg1: i32) -> (i32, i32, i32, i32, i32) {
    %c0_i32 = arith.constant 0 : i32
    %c0_i32_0 = arith.constant 0 : i32
    %c0_i32_1 = arith.constant 0 : i32
    %c0_i32_2 = arith.constant 0 : i32
    return %arg0, %c0_i32, %c0_i32_0, %arg1, %c0_i32_1 : i32, i32, i32, i32, i32
  }
}

</mosaic_0001>

<llo_original>
// kernel: decoder_block_forward.1
$region0: #{decoder_block_forward.1}
  #allocation0 [shape = 'u32[]', space=smem, size = 0x4, offset = 0x4, fixed_abs, tag = 'smem constant byte address 0x4 - core index']
  #allocation1 [shape = 'u32[144,128]{1,0:T(1,128)}', space=vmem, size = 0x12000, scoped, tag = 'internal scratch']
  %s0 = inlined_call_operand.vmem [shape: bf16[2,288,4], index: 0, kind: input, shape index: {}]
  %s1 = inlined_call_operand.vmem [shape: bf16[2,288,4], index: 1, kind: input, shape index: {}]
  %s2 = inlined_call_operand.vmem [shape: bf16[2,288,4], index: 2, kind: input, shape index: {}]
  %s3 = inlined_call_operand.vmem [shape: bf16[4,4,4,128], index: 3, kind: input, shape index: {}]
  %s4 = inlined_call_operand.vmem [shape: f32[1,128], index: 4, kind: input, shape index: {}]
  %s5 = inlined_call_operand.vmem [shape: f32[2,2,2,256,128], index: 5, kind: output, shape index: {}]
  %s6 = sld [smem:[#allocation0]]
  $region87: #{decoder_block_forward.1} parent=0
    _
  %s8 = ssub.s32 1, %s6
  %s9 = scalar_select 0, %s8, %s6
  $region1: #{decoder_block_forward.1} parent=0
    #allocation2 [shape = 'u8[524288]{0}', space=vmem, size = 0x80000, scoped, tag = 'output window, operand 0']
    loop: start=0, step=1, limit=6
    $region2: #{decoder_block_forward.1} parent=1 // loop_pre_header
      _
    $region3: #{decoder_block_forward.1} parent=1 // loop_header
      %s11 = sphi 0, %s15
      %p12 = scmp.ge.s32.totalorder %s11, 6
      %s18 = sphi 0, %s30
      %s19 = sphi 0, %s26
      %s20 = sphi 0, %s18
      %s21 = sphi 0, %s19
      %s22 = sphi 0, %s20
      %s23 = sphi 0, %s21
      %s33 = sphi 0, %s35
      %s36 = sphi 0, %s33
      %s37 = sphi 0, %s36
      %s53 = sphi 0, %s37
      %s59 = sphi 0, %s61
      %s62 = sphi 0, %s59
      %s63 = sphi 0, %s62
      %s79 = sphi 0, %s63
      %s85 = sphi 0, %s87
      %s88 = sphi 0, %s85
      %s89 = sphi 0, %s88
      %s105 = sphi 0, %s89
      %s109 = sphi 0, %s109
      %s111 = sphi 0, %s109
      %s112 = sphi 0, %s111
      %s126 = sphi 0, %s112
      %s130 = sphi 0, %s130
      %s132 = sphi 0, %s130
      %s133 = sphi 0, %s132
      %s147 = sphi 0, %s133
      %s155 = sphi 0, %s157
      %s158 = sphi 0, %s155
      %s159 = sphi 0, %s158
      %s175 = sphi 0, %s159
    $region4: #{decoder_block_forward.1} parent=1 // loop_header_branch
      %14 = sbr.rel (%p12) target = $region8
    $region5: #{decoder_block_forward.1} parent=1 // loop_body
      %s16 = ssub.s32 %s11, 1
      %s17 = ssub.s32 %s11, 2
      %s24 = sadd.s32 1, %s19
      %p25 = scmp.ge.s32.totalorder %s24, 2
      %s26 = scalar_select %p25, 0, %s24
      %s27 = sadd.s32 1, %s18
      %s28 = scalar_select %p25, %s27, %s18
      %p29 = scmp.ge.s32.totalorder %s28, 2
      %s30 = scalar_select %p29, 0, %s28
      %s31 = ssub.s32 %s18, %s30
      %p32 = scmp.eq.s32.totalorder %s31, 0
      %s34 = sadd.s32 %s33, 1
      %s35 = scalar_select %p32, %s33, %s34
      %p38 = pneg %p32
      %p39 = scmp.eq.s32.totalorder %s11, 3
      %p40 = por %p38, %p39
      %p41 = scmp.ne.s32.totalorder %s33, %s36
      %p42 = scmp.eq.s32.totalorder %s11, 0
      %p43 = por %p41, %p42
      %p44 = scmp.ne.s32.totalorder %s33, %s36
      %p45 = scmp.eq.s32.totalorder %s16, 3
      %p46 = por %p44, %p45
      %p47 = scmp.ne.s32.totalorder %s36, %s37
      %p48 = scmp.eq.s32.totalorder %s16, 0
      %p49 = por %p47, %p48
      %p50 = scmp.ne.s32.totalorder %s36, %s37
      %p51 = scmp.eq.s32.totalorder %s17, 3
      %p52 = por %p50, %p51
      %p54 = scmp.ne.s32.totalorder %s37, %s53
      %p55 = scmp.eq.s32.totalorder %s17, 0
      %p56 = por %p54, %p55
      %s57 = ssub.s32 %s18, %s30
      %p58 = scmp.eq.s32.totalorder %s57, 0
      %s60 = sadd.s32 %s59, 1
      %s61 = scalar_select %p58, %s59, %s60
      %p64 = pneg %p58
      %p65 = scmp.eq.s32.totalorder %s11, 3
      %p66 = por %p64, %p65
      %p67 = scmp.ne.s32.totalorder %s59, %s62
      %p68 = scmp.eq.s32.totalorder %s11, 0
      %p69 = por %p67, %p68
      %p70 = scmp.ne.s32.totalorder %s59, %s62
      %p71 = scmp.eq.s32.totalorder %s16, 3
      %p72 = por %p70, %p71
      %p73 = scmp.ne.s32.totalorder %s62, %s63
      %p74 = scmp.eq.s32.totalorder %s16, 0
      %p75 = por %p73, %p74
      %p76 = scmp.ne.s32.totalorder %s62, %s63
      %p77 = scmp.eq.s32.totalorder %s17, 3
      %p78 = por %p76, %p77
      %p80 = scmp.ne.s32.totalorder %s63, %s79
      %p81 = scmp.eq.s32.totalorder %s17, 0
      %p82 = por %p80, %p81
      %s83 = ssub.s32 %s18, %s30
      %p84 = scmp.eq.s32.totalorder %s83, 0
      %s86 = sadd.s32 %s85, 1
      %s87 = scalar_select %p84, %s85, %s86
      %p90 = pneg %p84
      %p91 = scmp.eq.s32.totalorder %s11, 3
      %p92 = por %p90, %p91
      %p93 = scmp.ne.s32.totalorder %s85, %s88
      %p94 = scmp.eq.s32.totalorder %s11, 0
      %p95 = por %p93, %p94
      %p96 = scmp.ne.s32.totalorder %s85, %s88
      %p97 = scmp.eq.s32.totalorder %s16, 3
      %p98 = por %p96, %p97
      %p99 = scmp.ne.s32.totalorder %s88, %s89
      %p100 = scmp.eq.s32.totalorder %s16, 0
      %p101 = por %p99, %p100
      %p102 = scmp.ne.s32.totalorder %s88, %s89
      %p103 = scmp.eq.s32.totalorder %s17, 3
      %p104 = por %p102, %p103
      %p106 = scmp.ne.s32.totalorder %s89, %s105
      %p107 = scmp.eq.s32.totalorder %s17, 0
      %p108 = por %p106, %p107
      %s110 = sadd.s32 %s109, 1
      %p113 = scmp.eq.s32.totalorder %s11, 3
      %p114 = scmp.ne.s32.totalorder %s109, %s111
      %p115 = scmp.eq.s32.totalorder %s11, 0
      %p116 = por %p114, %p115
      %p117 = scmp.ne.s32.totalorder %s109, %s111
      %p118 = scmp.eq.s32.totalorder %s16, 3
      %p119 = por %p117, %p118
      %p120 = scmp.ne.s32.totalorder %s111, %s112
      %p121 = scmp.eq.s32.totalorder %s16, 0
      %p122 = por %p120, %p121
      %p123 = scmp.ne.s32.totalorder %s111, %s112
      %p124 = scmp.eq.s32.totalorder %s17, 3
      %p125 = por %p123, %p124
      %p127 = scmp.ne.s32.totalorder %s112, %s126
      %p128 = scmp.eq.s32.totalorder %s17, 0
      %p129 = por %p127, %p128
      %s131 = sadd.s32 %s130, 1
      %p134 = scmp.eq.s32.totalorder %s11, 3
      %p135 = scmp.ne.s32.totalorder %s130, %s132
      %p136 = scmp.eq.s32.totalorder %s11, 0
      %p137 = por %p135, %p136
      %p138 = scmp.ne.s32.totalorder %s130, %s132
      %p139 = scmp.eq.s32.totalorder %s16, 3
      %p140 = por %p138, %p139
      %p141 = scmp.ne.s32.totalorder %s132, %s133
      %p142 = scmp.eq.s32.totalorder %s16, 0
      %p143 = por %p141, %p142
      %p144 = scmp.ne.s32.totalorder %s132, %s133
      %p145 = scmp.eq.s32.totalorder %s17, 3
      %p146 = por %p144, %p145
      %p148 = scmp.ne.s32.totalorder %s133, %s147
      %p149 = scmp.eq.s32.totalorder %s17, 0
      %p150 = por %p148, %p149
      %s151 = ssub.s32 %s18, %s30
      %s152 = ssub.s32 %s19, %s26
      %s153 = sor.u32 %s151, %s152
      %p154 = scmp.eq.s32.totalorder %s153, 0
      %s156 = sadd.s32 %s155, 1
      %s157 = scalar_select %p154, %s155, %s156
      %p160 = pneg %p154
      %p161 = scmp.eq.s32.totalorder %s11, 3
      %p162 = por %p160, %p161
      %p163 = scmp.ne.s32.totalorder %s155, %s158
      %p164 = scmp.eq.s32.totalorder %s11, 0
      %p165 = por %p163, %p164
      %p166 = scmp.ne.s32.totalorder %s155, %s158
      %p167 = scmp.eq.s32.totalorder %s16, 3
      %p168 = por %p166, %p167
      %p169 = scmp.ne.s32.totalorder %s158, %s159
      %p170 = scmp.eq.s32.totalorder %s16, 0
      %p171 = por %p169, %p170
      %p172 = scmp.ne.s32.totalorder %s158, %s159
      %p173 = scmp.eq.s32.totalorder %s17, 3
      %p174 = por %p172, %p173
      %p176 = scmp.ne.s32.totalorder %s159, %s175
      %p177 = scmp.eq.s32.totalorder %s17, 0
      %p178 = por %p176, %p177
      %p179 = scmp.le.s32.totalorder 1, %s11
      %p180 = scmp.lt.s32.totalorder %s11, 5
      %p181 = pnand %p179, %p180
      %p182 = pneg %p181
      // Predicated region
      $region9: #{decoder_block_forward.1} parent=5 // pred_check
        _
      $region10: #{decoder_block_forward.1} parent=5 // pred_check_branch
        %184 = sbr.rel (%p181) target = $region12
      $region11: #{decoder_block_forward.1} parent=5 // pred_region
        %s185 = ssub.s32 %s11, 1
        // Predicated region
        $region13: #{decoder_block_forward.1} parent=11 // pred_check
          %p186 = pneg %p122
        $region14: #{decoder_block_forward.1} parent=11 // pred_check_branch
          %188 = sbr.rel (%p186) target = $region16
        $region15: #{decoder_block_forward.1} parent=11 // pred_region
          _
        $region16: #{decoder_block_forward.1} parent=11 // pred_fallthru
          _
        // Predicated region
        $region17: #{decoder_block_forward.1} parent=11 // pred_check
          %p189 = pneg %p143
        $region18: #{decoder_block_forward.1} parent=11 // pred_check_branch
          %191 = sbr.rel (%p189) target = $region20
        $region19: #{decoder_block_forward.1} parent=11 // pred_region
          _
        $region20: #{decoder_block_forward.1} parent=11 // pred_fallthru
          _
      $region12: #{decoder_block_forward.1} parent=5 // pred_fallthru
        _
      %p192 = scmp.lt.s32.totalorder %s11, 4
      // Predicated region
      $region21: #{decoder_block_forward.1} parent=5 // pred_check
        %p193 = pneg %p192
      $region22: #{decoder_block_forward.1} parent=5 // pred_check_branch
        %195 = sbr.rel (%p193) target = $region24
      $region23: #{decoder_block_forward.1} parent=5 // pred_region
        // Predicated region
        $region25: #{decoder_block_forward.1} parent=23 // pred_check
          %p196 = pneg %p43
        $region26: #{decoder_block_forward.1} parent=23 // pred_check_branch
          %198 = sbr.rel (%p196) target = $region28
        $region27: #{decoder_block_forward.1} parent=23 // pred_region
          %p199 = scmp.lt.s32.totalorder %s18, 1
          %s200 = scalar_select %p199, %s18, 1
          %s201 = smul.addr %s200, 36
          %s202 = smul.addr %s201, 4
          %s203 = scalar_lea.vmem %s0, %s202
        $region28: #{decoder_block_forward.1} parent=23 // pred_fallthru
          _
        // Predicated region
        $region29: #{decoder_block_forward.1} parent=23 // pred_check
          %p204 = pneg %p69
        $region30: #{decoder_block_forward.1} parent=23 // pred_check_branch
          %206 = sbr.rel (%p204) target = $region32
        $region31: #{decoder_block_forward.1} parent=23 // pred_region
          %p207 = scmp.lt.s32.totalorder %s18, 1
          %s208 = scalar_select %p207, %s18, 1
          %s209 = smul.addr %s208, 36
          %s210 = smul.addr %s209, 4
          %s211 = scalar_lea.vmem %s1, %s210
        $region32: #{decoder_block_forward.1} parent=23 // pred_fallthru
          _
        // Predicated region
        $region33: #{decoder_block_forward.1} parent=23 // pred_check
          %p212 = pneg %p95
        $region34: #{decoder_block_forward.1} parent=23 // pred_check_branch
          %214 = sbr.rel (%p212) target = $region36
        $region35: #{decoder_block_forward.1} parent=23 // pred_region
          %p215 = scmp.lt.s32.totalorder %s18, 1
          %s216 = scalar_select %p215, %s18, 1
          %s217 = smul.addr %s216, 36
          %s218 = smul.addr %s217, 4
          %s219 = scalar_lea.vmem %s2, %s218
        $region36: #{decoder_block_forward.1} parent=23 // pred_fallthru
          _
      $region24: #{decoder_block_forward.1} parent=5 // pred_fallthru
        _
      %p220 = scmp.le.s32.totalorder 1, %s11
      %p221 = scmp.lt.s32.totalorder %s11, 5
      %p222 = pnand %p220, %p221
      %p223 = pneg %p222
      // Predicated region
      $region37: #{decoder_block_forward.1} parent=5 // pred_check
        _
      $region38: #{decoder_block_forward.1} parent=5 // pred_check_branch
        %225 = sbr.rel (%p222) target = $region40
      $region39: #{decoder_block_forward.1} parent=5 // pred_region
        %s226 = ssub.s32 %s11, 1
        %p227 = scmp.lt.s32.totalorder %s20, 1
        %s228 = scalar_select %p227, %s20, 1
        %s229 = smul.addr %s228, 36
        %s230 = smul.addr %s229, 4
        %s231 = scalar_lea.vmem %s0, %s230
        %p232 = pneg %p49
        %p233 = pneg %p46
        %p234 = scmp.lt.s32.totalorder %s20, 1
        %s235 = scalar_select %p234, %s20, 1
        %s236 = smul.addr %s235, 36
        %s237 = smul.addr %s236, 4
        %s238 = scalar_lea.vmem %s1, %s237
        %p239 = pneg %p75
        %p240 = pneg %p72
        %p241 = scmp.lt.s32.totalorder %s20, 1
        %s242 = scalar_select %p241, %s20, 1
        %s243 = smul.addr %s242, 36
        %s244 = smul.addr %s243, 4
        %s245 = scalar_lea.vmem %s2, %s244
        %p246 = pneg %p101
        %p247 = pneg %p98
        %p248 = pneg %p122
        %p249 = pneg %p119
        %p250 = pneg %p143
        %p251 = pneg %p140
        %p252 = pneg %p171
        %p253 = pneg %p168
        %s254 = sand.u32 %s158, 1
        %s255 = sand.u32 %s158, 1
        %s256 = smul.addr %s255, 512
        %s257 = scalar_lea.vmem [#allocation2], %s256
        %p258 = scmp.lt.s32.totalorder %s20, 1
        %s259 = scalar_select %p258, %s20, 1
        %s260 = smul.addr %s259, 36
        %s261 = smul.addr %s260, 4
        %s262 = scalar_lea.vmem %s0, %s261
        %p263 = scmp.lt.s32.totalorder %s20, 1
        %s264 = scalar_select %p263, %s20, 1
        %s265 = smul.addr %s264, 36
        %s266 = smul.addr %s265, 4
        %s267 = scalar_lea.vmem %s1, %s266
        %p268 = scmp.lt.s32.totalorder %s20, 1
        %s269 = scalar_select %p268, %s20, 1
        %s270 = smul.addr %s269, 36
        %s271 = smul.addr %s270, 4
        %s272 = scalar_lea.vmem %s2, %s271
        %s273 = smul.u32 16, %s21
        %s275 = smul.u32 %s21, 8
        %v276 = vld [vmem:[%s4] sm:$0x1]
        %s277 = smul.u32 %s21, 128
        %s278 = sshra.s32 %s277, 3
        %s279 = sand.u32 %s277, 7
        %s280 = smul.addr %s278, 4
        %s281 = scalar_lea.vmem %s262, %s280
        %v282 = vld [vmem:[%s281] sm:$0xf]
        %v283 = vld [vmem:[%s281 + $0x4] sm:$0xf]
        %v284 = vld [vmem:[%s281 + $0x8] sm:$0xf]
        %v285 = vld [vmem:[%s281 + $0xc] sm:$0xf]
        %v286 = vld [vmem:[%s281 + $0x10] sm:$0xf]
        %v287 = vld [vmem:[%s281 + $0x14] sm:$0xf]
        %v288 = vld [vmem:[%s281 + $0x18] sm:$0xf]
        %v289 = vld [vmem:[%s281 + $0x1c] sm:$0xf]
        %v290 = vld [vmem:[%s281 + $0x20] sm:$0xf]
        %v291 = vld [vmem:[%s281 + $0x24] sm:$0xf]
        %v292 = vld [vmem:[%s281 + $0x28] sm:$0xf]
        %v293 = vld [vmem:[%s281 + $0x2c] sm:$0xf]
        %v294 = vld [vmem:[%s281 + $0x30] sm:$0xf]
        %v295 = vld [vmem:[%s281 + $0x34] sm:$0xf]
        %v296 = vld [vmem:[%s281 + $0x38] sm:$0xf]
        %v297 = vld [vmem:[%s281 + $0x3c] sm:$0xf]
        %v298 = vld [vmem:[%s3] sm:$0x3]
        %s299 = smul.addr %s278, 4
        %s300 = scalar_lea.vmem %s267, %s299
        %v301 = vld [vmem:[%s300] sm:$0xf]
        %v302 = vld [vmem:[%s300 + $0x4] sm:$0xf]
        %v303 = vld [vmem:[%s300 + $0x8] sm:$0xf]
        %v304 = vld [vmem:[%s300 + $0xc] sm:$0xf]
        %v305 = vld [vmem:[%s300 + $0x10] sm:$0xf]
        %v306 = vld [vmem:[%s300 + $0x14] sm:$0xf]
        %v307 = vld [vmem:[%s300 + $0x18] sm:$0xf]
        %v308 = vld [vmem:[%s300 + $0x1c] sm:$0xf]
        %v309 = vld [vmem:[%s300 + $0x20] sm:$0xf]
        %v310 = vld [vmem:[%s300 + $0x24] sm:$0xf]
        %v311 = vld [vmem:[%s300 + $0x28] sm:$0xf]
        %v312 = vld [vmem:[%s300 + $0x2c] sm:$0xf]
        %v313 = vld [vmem:[%s300 + $0x30] sm:$0xf]
        %v314 = vld [vmem:[%s300 + $0x34] sm:$0xf]
        %v315 = vld [vmem:[%s300 + $0x38] sm:$0xf]
        %v316 = vld [vmem:[%s300 + $0x3c] sm:$0xf]
        %s317 = scalar_lea.vmem %s3, 2
        %v318 = vld [vmem:[%s317] sm:$0x3]
        %v335 = vunpack.c.l.b16 %v301
        %v336 = vunpack.c.l.b16 %v302
        %v337 = vunpack.c.l.b16 %v303
        %v338 = vunpack.c.l.b16 %v304
        %v339 = vunpack.c.l.b16 %v305
        %v340 = vunpack.c.l.b16 %v306
        %v341 = vunpack.c.l.b16 %v307
        %v342 = vunpack.c.l.b16 %v308
        %v343 = vunpack.c.l.b16 %v309
        %v344 = vunpack.c.l.b16 %v310
        %v345 = vunpack.c.l.b16 %v311
        %v346 = vunpack.c.l.b16 %v312
        %v347 = vunpack.c.l.b16 %v313
        %v348 = vunpack.c.l.b16 %v314
        %v349 = vunpack.c.l.b16 %v315
        %v350 = vunpack.c.l.b16 %v316
        %v351 = vpack.c.b16 %v336, %v335
        %v352 = vpack.c.b16 %v338, %v337
        %v353 = vpack.c.b16 %v340, %v339
        %v354 = vpack.c.b16 %v342, %v341
        %v355 = vpack.c.b16 %v344, %v343
        %v356 = vpack.c.b16 %v346, %v345
        %v357 = vpack.c.b16 %v348, %v347
        %v358 = vpack.c.b16 %v350, %v349
        %vm359 = vcmask 31744
        %v361 = vsel %vm359, %v351, 0
        %v364 = vsel %vm359, %v352, 0
        %v367 = vsel %vm359, %v353, 0
        %v370 = vsel %vm359, %v354, 0
        %v373 = vsel %vm359, %v355, 0
        %v376 = vsel %vm359, %v356, 0
        %v379 = vsel %vm359, %v357, 0
        %v382 = vsel %vm359, %v358, 0
        %vm384 = vcmask 1041408
        %v386 = vsel %vm384, %v318, 0
        %388 = vmatprep.subr.bf16.mxu0 0
        %389 = vmatpush1.bf16.msra.mxu0 0
        %390 = vmatprep.subr.bf16.mxu0 0
        %391 = vmatpush1.bf16.msra.mxu0 0
        %392 = vmatprep.subr.bf16.mxu0 0
        %393 = vmatpush1.bf16.msra.mxu0 0
        %394 = vmatprep.subr.bf16.mxu0 0
        %395 = vmatpush1.bf16.msra.mxu0 0
        %396 = vmatprep.subr.bf16.mxu0 0
        %397 = vmatpush1.bf16.msra.mxu0 0
        %398 = vmatprep.subr.bf16.mxu0 0
        %399 = vmatpush1.bf16.msra.mxu0 0
        %400 = vmatprep.subr.bf16.mxu0 0
        %401 = vmatpush1.bf16.msra.mxu0 0
        %402 = vmatprep.subr.bf16.mxu0 0
        %403 = vmatpush1.bf16.msra.mxu0 %v386
        %404 = vmatprep.subr.bf16.mxu0 0
        %405 = vmatpush2.bf16.msra.mxu0 0
        %406 = vmatprep.subr.bf16.mxu0 0
        %407 = vmatpush2.bf16.msra.mxu0 0
        %408 = vmatprep.subr.bf16.mxu0 0
        %409 = vmatpush2.bf16.msra.mxu0 0
        %410 = vmatprep.subr.bf16.mxu0 0
        %411 = vmatpush2.bf16.msra.mxu0 0
        %412 = vmatprep.subr.bf16.mxu0 0
        %413 = vmatpush2.bf16.msra.mxu0 0
        %414 = vmatprep.subr.bf16.mxu0 0
        %415 = vmatpush2.bf16.msra.mxu0 0
        %416 = vmatprep.subr.bf16.mxu0 0
        %417 = vmatpush2.bf16.msra.mxu0 0
        %418 = vmatprep.subr.bf16.mxu0 0
        %419 = vmatpush2.bf16.msra.mxu0 0
        %420 = vmatprep.mubr.bf16.mxu0 0
        %421 = vmatmul.mubr.bf16.gmra.mxu0 %v361
        %v422 = vpop.f32.mrf.mxu0
        %v423 = vadd.f32 0.0, %v422
        %v424 = vpop.f32.mrf.mxu0
        %v425 = vpop.f32.mrf.mxu0
        %v426 = vadd.f32 0.0, %v425
        %v427 = vpop.f32.mrf.mxu0
        %428 = vmatprep.mubr.bf16.mxu0 0
        %429 = vmatmul.mubr.bf16.gmra.mxu0 %v364
        %v430 = vpop.f32.mrf.mxu0
        %v431 = vadd.f32 0.0, %v430
        %v432 = vpop.f32.mrf.mxu0
        %v433 = vpop.f32.mrf.mxu0
        %v434 = vadd.f32 0.0, %v433
        %v435 = vpop.f32.mrf.mxu0
        %436 = vmatprep.mubr.bf16.mxu0 0
        %437 = vmatmul.mubr.bf16.gmra.mxu0 %v367
        %v438 = vpop.f32.mrf.mxu0
        %v439 = vadd.f32 0.0, %v438
        %v440 = vpop.f32.mrf.mxu0
        %v441 = vpop.f32.mrf.mxu0
        %v442 = vadd.f32 0.0, %v441
        %v443 = vpop.f32.mrf.mxu0
        %444 = vmatprep.mubr.bf16.mxu0 0
        %445 = vmatmul.mubr.bf16.gmra.mxu0 %v370
        %v446 = vpop.f32.mrf.mxu0
        %v447 = vadd.f32 0.0, %v446
        %v448 = vpop.f32.mrf.mxu0
        %v449 = vpop.f32.mrf.mxu0
        %v450 = vadd.f32 0.0, %v449
        %v451 = vpop.f32.mrf.mxu0
        %452 = vmatprep.mubr.bf16.mxu0 0
        %453 = vmatmul.mubr.bf16.gmra.mxu0 %v373
        %v454 = vpop.f32.mrf.mxu0
        %v455 = vadd.f32 0.0, %v454
        %v456 = vpop.f32.mrf.mxu0
        %v457 = vpop.f32.mrf.mxu0
        %v458 = vadd.f32 0.0, %v457
        %v459 = vpop.f32.mrf.mxu0
        %460 = vmatprep.mubr.bf16.mxu0 0
        %461 = vmatmul.mubr.bf16.gmra.mxu0 %v376
        %v462 = vpop.f32.mrf.mxu0
        %v463 = vadd.f32 0.0, %v462
        %v464 = vpop.f32.mrf.mxu0
        %v465 = vpop.f32.mrf.mxu0
        %v466 = vadd.f32 0.0, %v465
        %v467 = vpop.f32.mrf.mxu0
        %468 = vmatprep.mubr.bf16.mxu0 0
        %469 = vmatmul.mubr.bf16.gmra.mxu0 %v379
        %v470 = vpop.f32.mrf.mxu0
        %v471 = vadd.f32 0.0, %v470
        %v472 = vpop.f32.mrf.mxu0
        %v473 = vpop.f32.mrf.mxu0
        %v474 = vadd.f32 0.0, %v473
        %v475 = vpop.f32.mrf.mxu0
        %476 = vmatprep.mubr.bf16.mxu0 0
        %477 = vmatmul.mubr.bf16.gmra.mxu0 %v382
        %v478 = vpop.f32.mrf.mxu0
        %v479 = vadd.f32 0.0, %v478
        %v480 = vpop.f32.mrf.mxu0
        %v481 = vpop.f32.mrf.mxu0
        %v482 = vadd.f32 0.0, %v481
        %v483 = vpop.f32.mrf.mxu0
        %484 = vdwg.mxu0
        %v501 = vunpack.c.l.b16 %v282
        %v502 = vunpack.c.l.b16 %v283
        %v503 = vunpack.c.l.b16 %v284
        %v504 = vunpack.c.l.b16 %v285
        %v505 = vunpack.c.l.b16 %v286
        %v506 = vunpack.c.l.b16 %v287
        %v507 = vunpack.c.l.b16 %v288
        %v508 = vunpack.c.l.b16 %v289
        %v509 = vunpack.c.l.b16 %v290
        %v510 = vunpack.c.l.b16 %v291
        %v511 = vunpack.c.l.b16 %v292
        %v512 = vunpack.c.l.b16 %v293
        %v513 = vunpack.c.l.b16 %v294
        %v514 = vunpack.c.l.b16 %v295
        %v515 = vunpack.c.l.b16 %v296
        %v516 = vunpack.c.l.b16 %v297
        %v517 = vpack.c.b16 %v502, %v501
        %v518 = vpack.c.b16 %v504, %v503
        %v519 = vpack.c.b16 %v506, %v505
        %v520 = vpack.c.b16 %v508, %v507
        %v521 = vpack.c.b16 %v510, %v509
        %v522 = vpack.c.b16 %v512, %v511
        %v523 = vpack.c.b16 %v514, %v513
        %v524 = vpack.c.b16 %v516, %v515
        %v526 = vsel %vm359, %v517, 0
        %v529 = vsel %vm359, %v518, 0
        %v532 = vsel %vm359, %v519, 0
        %v535 = vsel %vm359, %v520, 0
        %v538 = vsel %vm359, %v521, 0
        %v541 = vsel %vm359, %v522, 0
        %v544 = vsel %vm359, %v523, 0
        %v547 = vsel %vm359, %v524, 0
        %v550 = vsel %vm384, %v298, 0
        %552 = vmatprep.subr.bf16.mxu0 0
        %553 = vmatpush1.bf16.msra.mxu0 0
        %554 = vmatprep.subr.bf16.mxu0 0
        %555 = vmatpush1.bf16.msra.mxu0 0
        %556 = vmatprep.subr.bf16.mxu0 0
        %557 = vmatpush1.bf16.msra.mxu0 0
        %558 = vmatprep.subr.bf16.mxu0 0
        %559 = vmatpush1.bf16.msra.mxu0 0
        %560 = vmatprep.subr.bf16.mxu0 0
        %561 = vmatpush1.bf16.msra.mxu0 0
        %562 = vmatprep.subr.bf16.mxu0 0
        %563 = vmatpush1.bf16.msra.mxu0 0
        %564 = vmatprep.subr.bf16.mxu0 0
        %565 = vmatpush1.bf16.msra.mxu0 0
        %566 = vmatprep.subr.bf16.mxu0 0
        %567 = vmatpush1.bf16.msra.mxu0 %v550
        %568 = vmatprep.subr.bf16.mxu0 0
        %569 = vmatpush2.bf16.msra.mxu0 0
        %570 = vmatprep.subr.bf16.mxu0 0
        %571 = vmatpush2.bf16.msra.mxu0 0
        %572 = vmatprep.subr.bf16.mxu0 0
        %573 = vmatpush2.bf16.msra.mxu0 0
        %574 = vmatprep.subr.bf16.mxu0 0
        %575 = vmatpush2.bf16.msra.mxu0 0
        %576 = vmatprep.subr.bf16.mxu0 0
        %577 = vmatpush2.bf16.msra.mxu0 0
        %578 = vmatprep.subr.bf16.mxu0 0
        %579 = vmatpush2.bf16.msra.mxu0 0
        %580 = vmatprep.subr.bf16.mxu0 0
        %581 = vmatpush2.bf16.msra.mxu0 0
        %582 = vmatprep.subr.bf16.mxu0 0
        %583 = vmatpush2.bf16.msra.mxu0 0
        %584 = vmatprep.mubr.bf16.mxu0 0
        %585 = vmatmul.mubr.bf16.gmra.mxu0 %v526
        %v586 = vpop.f32.mrf.mxu0
        %v587 = vadd.f32 %v423, %v586
        %v588 = vpop.f32.mrf.mxu0
        %v589 = vpop.f32.mrf.mxu0
        %v590 = vadd.f32 %v426, %v589
        %v591 = vpop.f32.mrf.mxu0
        %592 = vmatprep.mubr.bf16.mxu0 0
        %593 = vmatmul.mubr.bf16.gmra.mxu0 %v529
        %v594 = vpop.f32.mrf.mxu0
        %v595 = vadd.f32 %v431, %v594
        %v596 = vpop.f32.mrf.mxu0
        %v597 = vpop.f32.mrf.mxu0
        %v598 = vadd.f32 %v434, %v597
        %v599 = vpop.f32.mrf.mxu0
        %600 = vmatprep.mubr.bf16.mxu0 0
        %601 = vmatmul.mubr.bf16.gmra.mxu0 %v532
        %v602 = vpop.f32.mrf.mxu0
        %v603 = vadd.f32 %v439, %v602
        %v604 = vpop.f32.mrf.mxu0
        %v605 = vpop.f32.mrf.mxu0
        %v606 = vadd.f32 %v442, %v605
        %v607 = vpop.f32.mrf.mxu0
        %608 = vmatprep.mubr.bf16.mxu0 0
        %609 = vmatmul.mubr.bf16.gmra.mxu0 %v535
        %v610 = vpop.f32.mrf.mxu0
        %v611 = vadd.f32 %v447, %v610
        %v612 = vpop.f32.mrf.mxu0
        %v613 = vpop.f32.mrf.mxu0
        %v614 = vadd.f32 %v450, %v613
        %v615 = vpop.f32.mrf.mxu0
        %616 = vmatprep.mubr.bf16.mxu0 0
        %617 = vmatmul.mubr.bf16.gmra.mxu0 %v538
        %v618 = vpop.f32.mrf.mxu0
        %v619 = vadd.f32 %v455, %v618
        %v620 = vpop.f32.mrf.mxu0
        %v621 = vpop.f32.mrf.mxu0
        %v622 = vadd.f32 %v458, %v621
        %v623 = vpop.f32.mrf.mxu0
        %624 = vmatprep.mubr.bf16.mxu0 0
        %625 = vmatmul.mubr.bf16.gmra.mxu0 %v541
        %v626 = vpop.f32.mrf.mxu0
        %v627 = vadd.f32 %v463, %v626
        %v628 = vpop.f32.mrf.mxu0
        %v629 = vpop.f32.mrf.mxu0
        %v630 = vadd.f32 %v466, %v629
        %v631 = vpop.f32.mrf.mxu0
        %632 = vmatprep.mubr.bf16.mxu0 0
        %633 = vmatmul.mubr.bf16.gmra.mxu0 %v544
        %v634 = vpop.f32.mrf.mxu0
        %v635 = vadd.f32 %v471, %v634
        %v636 = vpop.f32.mrf.mxu0
        %v637 = vpop.f32.mrf.mxu0
        %v638 = vadd.f32 %v474, %v637
        %v639 = vpop.f32.mrf.mxu0
        %640 = vmatprep.mubr.bf16.mxu0 0
        %641 = vmatmul.mubr.bf16.gmra.mxu0 %v547
        %v642 = vpop.f32.mrf.mxu0
        %v643 = vadd.f32 %v479, %v642
        %v644 = vpop.f32.mrf.mxu0
        %v645 = vpop.f32.mrf.mxu0
        %v646 = vadd.f32 %v482, %v645
        %v647 = vpop.f32.mrf.mxu0
        %648 = vdwg.mxu0
        %s649 = sadd.s32 %s275, 1
        %s650 = smul.u32 %s649, 16
        %s651 = sshra.s32 %s650, 3
        %s652 = sand.u32 %s650, 7
        %s653 = smul.addr %s651, 4
        %s654 = scalar_lea.vmem %s262, %s653
        %v655 = vld [vmem:[%s654] sm:$0xf]
        %v656 = vld [vmem:[%s654 + $0x4] sm:$0xf]
        %v657 = vld [vmem:[%s654 + $0x8] sm:$0xf]
        %v658 = vld [vmem:[%s654 + $0xc] sm:$0xf]
        %v659 = vld [vmem:[%s654 + $0x10] sm:$0xf]
        %v660 = vld [vmem:[%s654 + $0x14] sm:$0xf]
        %v661 = vld [vmem:[%s654 + $0x18] sm:$0xf]
        %v662 = vld [vmem:[%s654 + $0x1c] sm:$0xf]
        %v663 = vld [vmem:[%s654 + $0x20] sm:$0xf]
        %v664 = vld [vmem:[%s654 + $0x24] sm:$0xf]
        %v665 = vld [vmem:[%s654 + $0x28] sm:$0xf]
        %v666 = vld [vmem:[%s654 + $0x2c] sm:$0xf]
        %v667 = vld [vmem:[%s654 + $0x30] sm:$0xf]
        %v668 = vld [vmem:[%s654 + $0x34] sm:$0xf]
        %v669 = vld [vmem:[%s654 + $0x38] sm:$0xf]
        %v670 = vld [vmem:[%s654 + $0x3c] sm:$0xf]
        %s671 = scalar_lea.vmem %s3, 4
        %v672 = vld [vmem:[%s671] sm:$0x3]
        %v689 = vunpack.c.l.b16 %v655
        %v690 = vunpack.c.l.b16 %v656
        %v691 = vunpack.c.l.b16 %v657
        %v692 = vunpack.c.l.b16 %v658
        %v693 = vunpack.c.l.b16 %v659
        %v694 = vunpack.c.l.b16 %v660
        %v695 = vunpack.c.l.b16 %v661
        %v696 = vunpack.c.l.b16 %v662
        %v697 = vunpack.c.l.b16 %v663
        %v698 = vunpack.c.l.b16 %v664
        %v699 = vunpack.c.l.b16 %v665
        %v700 = vunpack.c.l.b16 %v666
        %v701 = vunpack.c.l.b16 %v667
        %v702 = vunpack.c.l.b16 %v668
        %v703 = vunpack.c.l.b16 %v669
        %v704 = vunpack.c.l.b16 %v670
        %v705 = vpack.c.b16 %v690, %v689
        %v706 = vpack.c.b16 %v692, %v691
        %v707 = vpack.c.b16 %v694, %v693
        %v708 = vpack.c.b16 %v696, %v695
        %v709 = vpack.c.b16 %v698, %v697
        %v710 = vpack.c.b16 %v700, %v699
        %v711 = vpack.c.b16 %v702, %v701
        %v712 = vpack.c.b16 %v704, %v703
        %v714 = vsel %vm359, %v705, 0
        %v717 = vsel %vm359, %v706, 0
        %v720 = vsel %vm359, %v707, 0
        %v723 = vsel %vm359, %v708, 0
        %v726 = vsel %vm359, %v709, 0
        %v729 = vsel %vm359, %v710, 0
        %v732 = vsel %vm359, %v711, 0
        %v735 = vsel %vm359, %v712, 0
        %v738 = vsel %vm384, %v672, 0
        %740 = vmatprep.subr.bf16.mxu0 0
        %741 = vmatpush1.bf16.msra.mxu0 0
        %742 = vmatprep.subr.bf16.mxu0 0
        %743 = vmatpush1.bf16.msra.mxu0 0
        %744 = vmatprep.subr.bf16.mxu0 0
        %745 = vmatpush1.bf16.msra.mxu0 0
        %746 = vmatprep.subr.bf16.mxu0 0
        %747 = vmatpush1.bf16.msra.mxu0 0
        %748 = vmatprep.subr.bf16.mxu0 0
        %749 = vmatpush1.bf16.msra.mxu0 0
        %750 = vmatprep.subr.bf16.mxu0 0
        %751 = vmatpush1.bf16.msra.mxu0 0
        %752 = vmatprep.subr.bf16.mxu0 0
        %753 = vmatpush1.bf16.msra.mxu0 0
        %754 = vmatprep.subr.bf16.mxu0 0
        %755 = vmatpush1.bf16.msra.mxu0 %v738
        %756 = vmatprep.subr.bf16.mxu0 0
        %757 = vmatpush2.bf16.msra.mxu0 0
        %758 = vmatprep.subr.bf16.mxu0 0
        %759 = vmatpush2.bf16.msra.mxu0 0
        %760 = vmatprep.subr.bf16.mxu0 0
        %761 = vmatpush2.bf16.msra.mxu0 0
        %762 = vmatprep.subr.bf16.mxu0 0
        %763 = vmatpush2.bf16.msra.mxu0 0
        %764 = vmatprep.subr.bf16.mxu0 0
        %765 = vmatpush2.bf16.msra.mxu0 0
        %766 = vmatprep.subr.bf16.mxu0 0
        %767 = vmatpush2.bf16.msra.mxu0 0
        %768 = vmatprep.subr.bf16.mxu0 0
        %769 = vmatpush2.bf16.msra.mxu0 0
        %770 = vmatprep.subr.bf16.mxu0 0
        %771 = vmatpush2.bf16.msra.mxu0 0
        %772 = vmatprep.mubr.bf16.mxu0 0
        %773 = vmatmul.mubr.bf16.gmra.mxu0 %v714
        %v774 = vpop.f32.mrf.mxu0
        %v775 = vadd.f32 0.0, %v774
        %v776 = vpop.f32.mrf.mxu0
        %v777 = vpop.f32.mrf.mxu0
        %v778 = vadd.f32 0.0, %v777
        %v779 = vpop.f32.mrf.mxu0
        %780 = vmatprep.mubr.bf16.mxu0 0
        %781 = vmatmul.mubr.bf16.gmra.mxu0 %v717
        %v782 = vpop.f32.mrf.mxu0
        %v783 = vadd.f32 0.0, %v782
        %v784 = vpop.f32.mrf.mxu0
        %v785 = vpop.f32.mrf.mxu0
        %v786 = vadd.f32 0.0, %v785
        %v787 = vpop.f32.mrf.mxu0
        %788 = vmatprep.mubr.bf16.mxu0 0
        %789 = vmatmul.mubr.bf16.gmra.mxu0 %v720
        %v790 = vpop.f32.mrf.mxu0
        %v791 = vadd.f32 0.0, %v790
        %v792 = vpop.f32.mrf.mxu0
        %v793 = vpop.f32.mrf.mxu0
        %v794 = vadd.f32 0.0, %v793
        %v795 = vpop.f32.mrf.mxu0
        %796 = vmatprep.mubr.bf16.mxu0 0
        %797 = vmatmul.mubr.bf16.gmra.mxu0 %v723
        %v798 = vpop.f32.mrf.mxu0
        %v799 = vadd.f32 0.0, %v798
        %v800 = vpop.f32.mrf.mxu0
        %v801 = vpop.f32.mrf.mxu0
        %v802 = vadd.f32 0.0, %v801
        %v803 = vpop.f32.mrf.mxu0
        %804 = vmatprep.mubr.bf16.mxu0 0
        %805 = vmatmul.mubr.bf16.gmra.mxu0 %v726
        %v806 = vpop.f32.mrf.mxu0
        %v807 = vadd.f32 0.0, %v806
        %v808 = vpop.f32.mrf.mxu0
        %v809 = vpop.f32.mrf.mxu0
        %v810 = vadd.f32 0.0, %v809
        %v811 = vpop.f32.mrf.mxu0
        %812 = vmatprep.mubr.bf16.mxu0 0
        %813 = vmatmul.mubr.bf16.gmra.mxu0 %v729
        %v814 = vpop.f32.mrf.mxu0
        %v815 = vadd.f32 0.0, %v814
        %v816 = vpop.f32.mrf.mxu0
        %v817 = vpop.f32.mrf.mxu0
        %v818 = vadd.f32 0.0, %v817
        %v819 = vpop.f32.mrf.mxu0
        %820 = vmatprep.mubr.bf16.mxu0 0
        %821 = vmatmul.mubr.bf16.gmra.mxu0 %v732
        %v822 = vpop.f32.mrf.mxu0
        %v823 = vadd.f32 0.0, %v822
        %v824 = vpop.f32.mrf.mxu0
        %v825 = vpop.f32.mrf.mxu0
        %v826 = vadd.f32 0.0, %v825
        %v827 = vpop.f32.mrf.mxu0
        %828 = vmatprep.mubr.bf16.mxu0 0
        %829 = vmatmul.mubr.bf16.gmra.mxu0 %v735
        %v830 = vpop.f32.mrf.mxu0
        %v831 = vadd.f32 0.0, %v830
        %v832 = vpop.f32.mrf.mxu0
        %v833 = vpop.f32.mrf.mxu0
        %v834 = vadd.f32 0.0, %v833
        %v835 = vpop.f32.mrf.mxu0
        %836 = vdwg.mxu0
        %v837 = vadd.f32 %v587, %v775
        %v838 = vadd.f32 %v590, %v778
        %v839 = vadd.f32 %v595, %v783
        %v840 = vadd.f32 %v598, %v786
        %v841 = vadd.f32 %v603, %v791
        %v842 = vadd.f32 %v606, %v794
        %v843 = vadd.f32 %v611, %v799
        %v844 = vadd.f32 %v614, %v802
        %v845 = vadd.f32 %v619, %v807
        %v846 = vadd.f32 %v622, %v810
        %v847 = vadd.f32 %v627, %v815
        %v848 = vadd.f32 %v630, %v818
        %v849 = vadd.f32 %v635, %v823
        %v850 = vadd.f32 %v638, %v826
        %v851 = vadd.f32 %v643, %v831
        %v852 = vadd.f32 %v646, %v834
        %s853 = smul.addr %s651, 4
        %s854 = scalar_lea.vmem %s267, %s853
        %v855 = vld [vmem:[%s854] sm:$0xf]
        %v856 = vld [vmem:[%s854 + $0x4] sm:$0xf]
        %v857 = vld [vmem:[%s854 + $0x8] sm:$0xf]
        %v858 = vld [vmem:[%s854 + $0xc] sm:$0xf]
        %v859 = vld [vmem:[%s854 + $0x10] sm:$0xf]
        %v860 = vld [vmem:[%s854 + $0x14] sm:$0xf]
        %v861 = vld [vmem:[%s854 + $0x18] sm:$0xf]
        %v862 = vld [vmem:[%s854 + $0x1c] sm:$0xf]
        %v863 = vld [vmem:[%s854 + $0x20] sm:$0xf]
        %v864 = vld [vmem:[%s854 + $0x24] sm:$0xf]
        %v865 = vld [vmem:[%s854 + $0x28] sm:$0xf]
        %v866 = vld [vmem:[%s854 + $0x2c] sm:$0xf]
        %v867 = vld [vmem:[%s854 + $0x30] sm:$0xf]
        %v868 = vld [vmem:[%s854 + $0x34] sm:$0xf]
        %v869 = vld [vmem:[%s854 + $0x38] sm:$0xf]
        %v870 = vld [vmem:[%s854 + $0x3c] sm:$0xf]
        %s871 = scalar_lea.vmem %s3, 6
        %v872 = vld [vmem:[%s871] sm:$0x3]
        %v889 = vunpack.c.l.b16 %v855
        %v890 = vunpack.c.l.b16 %v856
        %v891 = vunpack.c.l.b16 %v857
        %v892 = vunpack.c.l.b16 %v858
        %v893 = vunpack.c.l.b16 %v859
        %v894 = vunpack.c.l.b16 %v860
        %v895 = vunpack.c.l.b16 %v861
        %v896 = vunpack.c.l.b16 %v862
        %v897 = vunpack.c.l.b16 %v863
        %v898 = vunpack.c.l.b16 %v864
        %v899 = vunpack.c.l.b16 %v865
        %v900 = vunpack.c.l.b16 %v866
        %v901 = vunpack.c.l.b16 %v867
        %v902 = vunpack.c.l.b16 %v868
        %v903 = vunpack.c.l.b16 %v869
        %v904 = vunpack.c.l.b16 %v870
        %v905 = vpack.c.b16 %v890, %v889
        %v906 = vpack.c.b16 %v892, %v891
        %v907 = vpack.c.b16 %v894, %v893
        %v908 = vpack.c.b16 %v896, %v895
        %v909 = vpack.c.b16 %v898, %v897
        %v910 = vpack.c.b16 %v900, %v899
        %v911 = vpack.c.b16 %v902, %v901
        %v912 = vpack.c.b16 %v904, %v903
        %v914 = vsel %vm359, %v905, 0
        %v917 = vsel %vm359, %v906, 0
        %v920 = vsel %vm359, %v907, 0
        %v923 = vsel %vm359, %v908, 0
        %v926 = vsel %vm359, %v909, 0
        %v929 = vsel %vm359, %v910, 0
        %v932 = vsel %vm359, %v911, 0
        %v935 = vsel %vm359, %v912, 0
        %v938 = vsel %vm384, %v872, 0
        %940 = vmatprep.subr.bf16.mxu0 0
        %941 = vmatpush1.bf16.msra.mxu0 0
        %942 = vmatprep.subr.bf16.mxu0 0
        %943 = vmatpush1.bf16.msra.mxu0 0
        %944 = vmatprep.subr.bf16.mxu0 0
        %945 = vmatpush1.bf16.msra.mxu0 0
        %946 = vmatprep.subr.bf16.mxu0 0
        %947 = vmatpush1.bf16.msra.mxu0 0
        %948 = vmatprep.subr.bf16.mxu0 0
        %949 = vmatpush1.bf16.msra.mxu0 0
        %950 = vmatprep.subr.bf16.mxu0 0
        %951 = vmatpush1.bf16.msra.mxu0 0
        %952 = vmatprep.subr.bf16.mxu0 0
        %953 = vmatpush1.bf16.msra.mxu0 0
        %954 = vmatprep.subr.bf16.mxu0 0
        %955 = vmatpush1.bf16.msra.mxu0 %v938
        %956 = vmatprep.subr.bf16.mxu0 0
        %957 = vmatpush2.bf16.msra.mxu0 0
        %958 = vmatprep.subr.bf16.mxu0 0
        %959 = vmatpush2.bf16.msra.mxu0 0
        %960 = vmatprep.subr.bf16.mxu0 0
        %961 = vmatpush2.bf16.msra.mxu0 0
        %962 = vmatprep.subr.bf16.mxu0 0
        %963 = vmatpush2.bf16.msra.mxu0 0
        %964 = vmatprep.subr.bf16.mxu0 0
        %965 = vmatpush2.bf16.msra.mxu0 0
        %966 = vmatprep.subr.bf16.mxu0 0
        %967 = vmatpush2.bf16.msra.mxu0 0
        %968 = vmatprep.subr.bf16.mxu0 0
        %969 = vmatpush2.bf16.msra.mxu0 0
        %970 = vmatprep.subr.bf16.mxu0 0
        %971 = vmatpush2.bf16.msra.mxu0 0
        %972 = vmatprep.mubr.bf16.mxu0 0
        %973 = vmatmul.mubr.bf16.gmra.mxu0 %v914
        %v974 = vpop.f32.mrf.mxu0
        %v975 = vadd.f32 0.0, %v974
        %v976 = vpop.f32.mrf.mxu0
        %v977 = vpop.f32.mrf.mxu0
        %v978 = vadd.f32 0.0, %v977
        %v979 = vpop.f32.mrf.mxu0
        %980 = vmatprep.mubr.bf16.mxu0 0
        %981 = vmatmul.mubr.bf16.gmra.mxu0 %v917
        %v982 = vpop.f32.mrf.mxu0
        %v983 = vadd.f32 0.0, %v982
        %v984 = vpop.f32.mrf.mxu0
        %v985 = vpop.f32.mrf.mxu0
        %v986 = vadd.f32 0.0, %v985
        %v987 = vpop.f32.mrf.mxu0
        %988 = vmatprep.mubr.bf16.mxu0 0
        %989 = vmatmul.mubr.bf16.gmra.mxu0 %v920
        %v990 = vpop.f32.mrf.mxu0
        %v991 = vadd.f32 0.0, %v990
        %v992 = vpop.f32.mrf.mxu0
        %v993 = vpop.f32.mrf.mxu0
        %v994 = vadd.f32 0.0, %v993
        %v995 = vpop.f32.mrf.mxu0
        %996 = vmatprep.mubr.bf16.mxu0 0
        %997 = vmatmul.mubr.bf16.gmra.mxu0 %v923
        %v998 = vpop.f32.mrf.mxu0
        %v999 = vadd.f32 0.0, %v998
        %v1000 = vpop.f32.mrf.mxu0
        %v1001 = vpop.f32.mrf.mxu0
        %v1002 = vadd.f32 0.0, %v1001
        %v1003 = vpop.f32.mrf.mxu0
        %1004 = vmatprep.mubr.bf16.mxu0 0
        %1005 = vmatmul.mubr.bf16.gmra.mxu0 %v926
        %v1006 = vpop.f32.mrf.mxu0
        %v1007 = vadd.f32 0.0, %v1006
        %v1008 = vpop.f32.mrf.mxu0
        %v1009 = vpop.f32.mrf.mxu0
        %v1010 = vadd.f32 0.0, %v1009
        %v1011 = vpop.f32.mrf.mxu0
        %1012 = vmatprep.mubr.bf16.mxu0 0
        %1013 = vmatmul.mubr.bf16.gmra.mxu0 %v929
        %v1014 = vpop.f32.mrf.mxu0
        %v1015 = vadd.f32 0.0, %v1014
        %v1016 = vpop.f32.mrf.mxu0
        %v1017 = vpop.f32.mrf.mxu0
        %v1018 = vadd.f32 0.0, %v1017
        %v1019 = vpop.f32.mrf.mxu0
        %1020 = vmatprep.mubr.bf16.mxu0 0
        %1021 = vmatmul.mubr.bf16.gmra.mxu0 %v932
        %v1022 = vpop.f32.mrf.mxu0
        %v1023 = vadd.f32 0.0, %v1022
        %v1024 = vpop.f32.mrf.mxu0
        %v1025 = vpop.f32.mrf.mxu0
        %v1026 = vadd.f32 0.0, %v1025
        %v1027 = vpop.f32.mrf.mxu0
        %1028 = vmatprep.mubr.bf16.mxu0 0
        %1029 = vmatmul.mubr.bf16.gmra.mxu0 %v935
        %v1030 = vpop.f32.mrf.mxu0
        %v1031 = vadd.f32 0.0, %v1030
        %v1032 = vpop.f32.mrf.mxu0
        %v1033 = vpop.f32.mrf.mxu0
        %v1034 = vadd.f32 0.0, %v1033
        %v1035 = vpop.f32.mrf.mxu0
        %1036 = vdwg.mxu0
        %v1037 = vadd.f32 %v837, %v975
        %v1038 = vadd.f32 %v838, %v978
        %v1039 = vadd.f32 %v839, %v983
        %v1040 = vadd.f32 %v840, %v986
        %v1041 = vadd.f32 %v841, %v991
        %v1042 = vadd.f32 %v842, %v994
        %v1043 = vadd.f32 %v843, %v999
        %v1044 = vadd.f32 %v844, %v1002
        %v1045 = vadd.f32 %v845, %v1007
        %v1046 = vadd.f32 %v846, %v1010
        %v1047 = vadd.f32 %v847, %v1015
        %v1048 = vadd.f32 %v848, %v1018
        %v1049 = vadd.f32 %v849, %v1023
        %v1050 = vadd.f32 %v850, %v1026
        %v1051 = vadd.f32 %v851, %v1031
        %v1052 = vadd.f32 %v852, %v1034
        %v1054 = vlaneseq
        %v1055 = vshrl.u32 %v1054, 7
        %v1056 = vsub.s32 0, %v1055
        %v1057 = vrot.slane %v276, %v1056
        %v1059 = vadd.f32 %v1037, %v1057
        %v1060 = vadd.f32 %v1038, %v1057
        %v1061 = vadd.f32 %v1039, %v1057
        %v1062 = vadd.f32 %v1040, %v1057
        %v1063 = vadd.f32 %v1041, %v1057
        %v1064 = vadd.f32 %v1042, %v1057
        %v1065 = vadd.f32 %v1043, %v1057
        %v1066 = vadd.f32 %v1044, %v1057
        %v1067 = vadd.f32 %v1045, %v1057
        %v1068 = vadd.f32 %v1046, %v1057
        %v1069 = vadd.f32 %v1047, %v1057
        %v1070 = vadd.f32 %v1048, %v1057
        %v1071 = vadd.f32 %v1049, %v1057
        %v1072 = vadd.f32 %v1050, %v1057
        %v1073 = vadd.f32 %v1051, %v1057
        %v1074 = vadd.f32 %v1052, %v1057
        %v1075 = vmax.f32 %v1059, 0.0
        %v1076 = vmax.f32 %v1060, 0.0
        %v1077 = vmax.f32 %v1061, 0.0
        %v1078 = vmax.f32 %v1062, 0.0
        %v1079 = vmax.f32 %v1063, 0.0
        %v1080 = vmax.f32 %v1064, 0.0
        %v1081 = vmax.f32 %v1065, 0.0
        %v1082 = vmax.f32 %v1066, 0.0
        %v1083 = vmax.f32 %v1067, 0.0
        %v1084 = vmax.f32 %v1068, 0.0
        %v1085 = vmax.f32 %v1069, 0.0
        %v1086 = vmax.f32 %v1070, 0.0
        %v1087 = vmax.f32 %v1071, 0.0
        %v1088 = vmax.f32 %v1072, 0.0
        %v1089 = vmax.f32 %v1073, 0.0
        %v1090 = vmax.f32 %v1074, 0.0
        %1091 = vst [vmem:[%s257] sm:$0xff] %v1075
        %1092 = vst [vmem:[%s257 + $0x8] sm:$0xff] %v1076
        %1093 = vst [vmem:[%s257 + $0x10] sm:$0xff] %v1077
        %1094 = vst [vmem:[%s257 + $0x18] sm:$0xff] %v1078
        %1095 = vst [vmem:[%s257 + $0x20] sm:$0xff] %v1079
        %1096 = vst [vmem:[%s257 + $0x28] sm:$0xff] %v1080
        %1097 = vst [vmem:[%s257 + $0x30] sm:$0xff] %v1081
        %1098 = vst [vmem:[%s257 + $0x38] sm:$0xff] %v1082
        %1099 = vst [vmem:[%s257 + $0x40] sm:$0xff] %v1083
        %1100 = vst [vmem:[%s257 + $0x48] sm:$0xff] %v1084
        %1101 = vst [vmem:[%s257 + $0x50] sm:$0xff] %v1085
        %1102 = vst [vmem:[%s257 + $0x58] sm:$0xff] %v1086
        %1103 = vst [vmem:[%s257 + $0x60] sm:$0xff] %v1087
        %1104 = vst [vmem:[%s257 + $0x68] sm:$0xff] %v1088
        %1105 = vst [vmem:[%s257 + $0x70] sm:$0xff] %v1089
        %1106 = vst [vmem:[%s257 + $0x78] sm:$0xff] %v1090
        %v1107 = vld [vmem:[%s300] sm:$0xf]
        %v1108 = vld [vmem:[%s300 + $0x4] sm:$0xf]
        %v1109 = vld [vmem:[%s300 + $0x8] sm:$0xf]
        %v1110 = vld [vmem:[%s300 + $0xc] sm:$0xf]
        %v1111 = vld [vmem:[%s300 + $0x10] sm:$0xf]
        %v1112 = vld [vmem:[%s300 + $0x14] sm:$0xf]
        %v1113 = vld [vmem:[%s300 + $0x18] sm:$0xf]
        %v1114 = vld [vmem:[%s300 + $0x1c] sm:$0xf]
        %v1115 = vld [vmem:[%s300 + $0x20] sm:$0xf]
        %v1116 = vld [vmem:[%s300 + $0x24] sm:$0xf]
        %v1117 = vld [vmem:[%s300 + $0x28] sm:$0xf]
        %v1118 = vld [vmem:[%s300 + $0x2c] sm:$0xf]
        %v1119 = vld [vmem:[%s300 + $0x30] sm:$0xf]
        %v1120 = vld [vmem:[%s300 + $0x34] sm:$0xf]
        %v1121 = vld [vmem:[%s300 + $0x38] sm:$0xf]
        %v1122 = vld [vmem:[%s300 + $0x3c] sm:$0xf]
        %s1123 = scalar_lea.vmem %s3, 8
        %v1124 = vld [vmem:[%s1123] sm:$0x3]
        %s1125 = smul.addr %s278, 4
        %s1126 = scalar_lea.vmem %s272, %s1125
        %v1127 = vld [vmem:[%s1126] sm:$0xf]
        %v1128 = vld [vmem:[%s1126 + $0x4] sm:$0xf]
        %v1129 = vld [vmem:[%s1126 + $0x8] sm:$0xf]
        %v1130 = vld [vmem:[%s1126 + $0xc] sm:$0xf]
        %v1131 = vld [vmem:[%s1126 + $0x10] sm:$0xf]
        %v1132 = vld [vmem:[%s1126 + $0x14] sm:$0xf]
        %v1133 = vld [vmem:[%s1126 + $0x18] sm:$0xf]
        %v1134 = vld [vmem:[%s1126 + $0x1c] sm:$0xf]
        %v1135 = vld [vmem:[%s1126 + $0x20] sm:$0xf]
        %v1136 = vld [vmem:[%s1126 + $0x24] sm:$0xf]
        %v1137 = vld [vmem:[%s1126 + $0x28] sm:$0xf]
        %v1138 = vld [vmem:[%s1126 + $0x2c] sm:$0xf]
        %v1139 = vld [vmem:[%s1126 + $0x30] sm:$0xf]
        %v1140 = vld [vmem:[%s1126 + $0x34] sm:$0xf]
        %v1141 = vld [vmem:[%s1126 + $0x38] sm:$0xf]
        %v1142 = vld [vmem:[%s1126 + $0x3c] sm:$0xf]
        %s1143 = scalar_lea.vmem %s3, 10
        %v1144 = vld [vmem:[%s1143] sm:$0x3]
        %v1161 = vunpack.c.l.b16 %v1127
        %v1162 = vunpack.c.l.b16 %v1128
        %v1163 = vunpack.c.l.b16 %v1129
        %v1164 = vunpack.c.l.b16 %v1130
        %v1165 = vunpack.c.l.b16 %v1131
        %v1166 = vunpack.c.l.b16 %v1132
        %v1167 = vunpack.c.l.b16 %v1133
        %v1168 = vunpack.c.l.b16 %v1134
        %v1169 = vunpack.c.l.b16 %v1135
        %v1170 = vunpack.c.l.b16 %v1136
        %v1171 = vunpack.c.l.b16 %v1137
        %v1172 = vunpack.c.l.b16 %v1138
        %v1173 = vunpack.c.l.b16 %v1139
        %v1174 = vunpack.c.l.b16 %v1140
        %v1175 = vunpack.c.l.b16 %v1141
        %v1176 = vunpack.c.l.b16 %v1142
        %v1177 = vpack.c.b16 %v1162, %v1161
        %v1178 = vpack.c.b16 %v1164, %v1163
        %v1179 = vpack.c.b16 %v1166, %v1165
        %v1180 = vpack.c.b16 %v1168, %v1167
        %v1181 = vpack.c.b16 %v1170, %v1169
        %v1182 = vpack.c.b16 %v1172, %v1171
        %v1183 = vpack.c.b16 %v1174, %v1173
        %v1184 = vpack.c.b16 %v1176, %v1175
        %v1186 = vsel %vm359, %v1177, 0
        %v1189 = vsel %vm359, %v1178, 0
        %v1192 = vsel %vm359, %v1179, 0
        %v1195 = vsel %vm359, %v1180, 0
        %v1198 = vsel %vm359, %v1181, 0
        %v1201 = vsel %vm359, %v1182, 0
        %v1204 = vsel %vm359, %v1183, 0
        %v1207 = vsel %vm359, %v1184, 0
        %v1210 = vsel %vm384, %v1144, 0
        %1212 = vmatprep.subr.bf16.mxu0 0
        %1213 = vmatpush1.bf16.msra.mxu0 0
        %1214 = vmatprep.subr.bf16.mxu0 0
        %1215 = vmatpush1.bf16.msra.mxu0 0
        %1216 = vmatprep.subr.bf16.mxu0 0
        %1217 = vmatpush1.bf16.msra.mxu0 0
        %1218 = vmatprep.subr.bf16.mxu0 0
        %1219 = vmatpush1.bf16.msra.mxu0 0
        %1220 = vmatprep.subr.bf16.mxu0 0
        %1221 = vmatpush1.bf16.msra.mxu0 0
        %1222 = vmatprep.subr.bf16.mxu0 0
        %1223 = vmatpush1.bf16.msra.mxu0 0
        %1224 = vmatprep.subr.bf16.mxu0 0
        %1225 = vmatpush1.bf16.msra.mxu0 0
        %1226 = vmatprep.subr.bf16.mxu0 0
        %1227 = vmatpush1.bf16.msra.mxu0 %v1210
        %1228 = vmatprep.subr.bf16.mxu0 0
        %1229 = vmatpush2.bf16.msra.mxu0 0
        %1230 = vmatprep.subr.bf16.mxu0 0
        %1231 = vmatpush2.bf16.msra.mxu0 0
        %1232 = vmatprep.subr.bf16.mxu0 0
        %1233 = vmatpush2.bf16.msra.mxu0 0
        %1234 = vmatprep.subr.bf16.mxu0 0
        %1235 = vmatpush2.bf16.msra.mxu0 0
        %1236 = vmatprep.subr.bf16.mxu0 0
        %1237 = vmatpush2.bf16.msra.mxu0 0
        %1238 = vmatprep.subr.bf16.mxu0 0
        %1239 = vmatpush2.bf16.msra.mxu0 0
        %1240 = vmatprep.subr.bf16.mxu0 0
        %1241 = vmatpush2.bf16.msra.mxu0 0
        %1242 = vmatprep.subr.bf16.mxu0 0
        %1243 = vmatpush2.bf16.msra.mxu0 0
        %1244 = vmatprep.mubr.bf16.mxu0 0
        %1245 = vmatmul.mubr.bf16.gmra.mxu0 %v1186
        %v1246 = vpop.f32.mrf.mxu0
        %v1247 = vadd.f32 0.0, %v1246
        %v1248 = vpop.f32.mrf.mxu0
        %v1249 = vpop.f32.mrf.mxu0
        %v1250 = vadd.f32 0.0, %v1249
        %v1251 = vpop.f32.mrf.mxu0
        %1252 = vmatprep.mubr.bf16.mxu0 0
        %1253 = vmatmul.mubr.bf16.gmra.mxu0 %v1189
        %v1254 = vpop.f32.mrf.mxu0
        %v1255 = vadd.f32 0.0, %v1254
        %v1256 = vpop.f32.mrf.mxu0
        %v1257 = vpop.f32.mrf.mxu0
        %v1258 = vadd.f32 0.0, %v1257
        %v1259 = vpop.f32.mrf.mxu0
        %1260 = vmatprep.mubr.bf16.mxu0 0
        %1261 = vmatmul.mubr.bf16.gmra.mxu0 %v1192
        %v1262 = vpop.f32.mrf.mxu0
        %v1263 = vadd.f32 0.0, %v1262
        %v1264 = vpop.f32.mrf.mxu0
        %v1265 = vpop.f32.mrf.mxu0
        %v1266 = vadd.f32 0.0, %v1265
        %v1267 = vpop.f32.mrf.mxu0
        %1268 = vmatprep.mubr.bf16.mxu0 0
        %1269 = vmatmul.mubr.bf16.gmra.mxu0 %v1195
        %v1270 = vpop.f32.mrf.mxu0
        %v1271 = vadd.f32 0.0, %v1270
        %v1272 = vpop.f32.mrf.mxu0
        %v1273 = vpop.f32.mrf.mxu0
        %v1274 = vadd.f32 0.0, %v1273
        %v1275 = vpop.f32.mrf.mxu0
        %1276 = vmatprep.mubr.bf16.mxu0 0
        %1277 = vmatmul.mubr.bf16.gmra.mxu0 %v1198
        %v1278 = vpop.f32.mrf.mxu0
        %v1279 = vadd.f32 0.0, %v1278
        %v1280 = vpop.f32.mrf.mxu0
        %v1281 = vpop.f32.mrf.mxu0
        %v1282 = vadd.f32 0.0, %v1281
        %v1283 = vpop.f32.mrf.mxu0
        %1284 = vmatprep.mubr.bf16.mxu0 0
        %1285 = vmatmul.mubr.bf16.gmra.mxu0 %v1201
        %v1286 = vpop.f32.mrf.mxu0
        %v1287 = vadd.f32 0.0, %v1286
        %v1288 = vpop.f32.mrf.mxu0
        %v1289 = vpop.f32.mrf.mxu0
        %v1290 = vadd.f32 0.0, %v1289
        %v1291 = vpop.f32.mrf.mxu0
        %1292 = vmatprep.mubr.bf16.mxu0 0
        %1293 = vmatmul.mubr.bf16.gmra.mxu0 %v1204
        %v1294 = vpop.f32.mrf.mxu0
        %v1295 = vadd.f32 0.0, %v1294
        %v1296 = vpop.f32.mrf.mxu0
        %v1297 = vpop.f32.mrf.mxu0
        %v1298 = vadd.f32 0.0, %v1297
        %v1299 = vpop.f32.mrf.mxu0
        %1300 = vmatprep.mubr.bf16.mxu0 0
        %1301 = vmatmul.mubr.bf16.gmra.mxu0 %v1207
        %v1302 = vpop.f32.mrf.mxu0
        %v1303 = vadd.f32 0.0, %v1302
        %v1304 = vpop.f32.mrf.mxu0
        %v1305 = vpop.f32.mrf.mxu0
        %v1306 = vadd.f32 0.0, %v1305
        %v1307 = vpop.f32.mrf.mxu0
        %1308 = vdwg.mxu0
        %v1325 = vunpack.c.l.b16 %v1107
        %v1326 = vunpack.c.l.b16 %v1108
        %v1327 = vunpack.c.l.b16 %v1109
        %v1328 = vunpack.c.l.b16 %v1110
        %v1329 = vunpack.c.l.b16 %v1111
        %v1330 = vunpack.c.l.b16 %v1112
        %v1331 = vunpack.c.l.b16 %v1113
        %v1332 = vunpack.c.l.b16 %v1114
        %v1333 = vunpack.c.l.b16 %v1115
        %v1334 = vunpack.c.l.b16 %v1116
        %v1335 = vunpack.c.l.b16 %v1117
        %v1336 = vunpack.c.l.b16 %v1118
        %v1337 = vunpack.c.l.b16 %v1119
        %v1338 = vunpack.c.l.b16 %v1120
        %v1339 = vunpack.c.l.b16 %v1121
        %v1340 = vunpack.c.l.b16 %v1122
        %v1341 = vpack.c.b16 %v1326, %v1325
        %v1342 = vpack.c.b16 %v1328, %v1327
        %v1343 = vpack.c.b16 %v1330, %v1329
        %v1344 = vpack.c.b16 %v1332, %v1331
        %v1345 = vpack.c.b16 %v1334, %v1333
        %v1346 = vpack.c.b16 %v1336, %v1335
        %v1347 = vpack.c.b16 %v1338, %v1337
        %v1348 = vpack.c.b16 %v1340, %v1339
        %v1350 = vsel %vm359, %v1341, 0
        %v1353 = vsel %vm359, %v1342, 0
        %v1356 = vsel %vm359, %v1343, 0
        %v1359 = vsel %vm359, %v1344, 0
        %v1362 = vsel %vm359, %v1345, 0
        %v1365 = vsel %vm359, %v1346, 0
        %v1368 = vsel %vm359, %v1347, 0
        %v1371 = vsel %vm359, %v1348, 0
        %v1374 = vsel %vm384, %v1124, 0
        %1376 = vmatprep.subr.bf16.mxu0 0
        %1377 = vmatpush1.bf16.msra.mxu0 0
        %1378 = vmatprep.subr.bf16.mxu0 0
        %1379 = vmatpush1.bf16.msra.mxu0 0
        %1380 = vmatprep.subr.bf16.mxu0 0
        %1381 = vmatpush1.bf16.msra.mxu0 0
        %1382 = vmatprep.subr.bf16.mxu0 0
        %1383 = vmatpush1.bf16.msra.mxu0 0
        %1384 = vmatprep.subr.bf16.mxu0 0
        %1385 = vmatpush1.bf16.msra.mxu0 0
        %1386 = vmatprep.subr.bf16.mxu0 0
        %1387 = vmatpush1.bf16.msra.mxu0 0
        %1388 = vmatprep.subr.bf16.mxu0 0
        %1389 = vmatpush1.bf16.msra.mxu0 0
        %1390 = vmatprep.subr.bf16.mxu0 0
        %1391 = vmatpush1.bf16.msra.mxu0 %v1374
        %1392 = vmatprep.subr.bf16.mxu0 0
        %1393 = vmatpush2.bf16.msra.mxu0 0
        %1394 = vmatprep.subr.bf16.mxu0 0
        %1395 = vmatpush2.bf16.msra.mxu0 0
        %1396 = vmatprep.subr.bf16.mxu0 0
        %1397 = vmatpush2.bf16.msra.mxu0 0
        %1398 = vmatprep.subr.bf16.mxu0 0
        %1399 = vmatpush2.bf16.msra.mxu0 0
        %1400 = vmatprep.subr.bf16.mxu0 0
        %1401 = vmatpush2.bf16.msra.mxu0 0
        %1402 = vmatprep.subr.bf16.mxu0 0
        %1403 = vmatpush2.bf16.msra.mxu0 0
        %1404 = vmatprep.subr.bf16.mxu0 0
        %1405 = vmatpush2.bf16.msra.mxu0 0
        %1406 = vmatprep.subr.bf16.mxu0 0
        %1407 = vmatpush2.bf16.msra.mxu0 0
        %1408 = vmatprep.mubr.bf16.mxu0 0
        %1409 = vmatmul.mubr.bf16.gmra.mxu0 %v1350
        %v1410 = vpop.f32.mrf.mxu0
        %v1411 = vadd.f32 %v1247, %v1410
        %v1412 = vpop.f32.mrf.mxu0
        %v1413 = vpop.f32.mrf.mxu0
        %v1414 = vadd.f32 %v1250, %v1413
        %v1415 = vpop.f32.mrf.mxu0
        %1416 = vmatprep.mubr.bf16.mxu0 0
        %1417 = vmatmul.mubr.bf16.gmra.mxu0 %v1353
        %v1418 = vpop.f32.mrf.mxu0
        %v1419 = vadd.f32 %v1255, %v1418
        %v1420 = vpop.f32.mrf.mxu0
        %v1421 = vpop.f32.mrf.mxu0
        %v1422 = vadd.f32 %v1258, %v1421
        %v1423 = vpop.f32.mrf.mxu0
        %1424 = vmatprep.mubr.bf16.mxu0 0
        %1425 = vmatmul.mubr.bf16.gmra.mxu0 %v1356
        %v1426 = vpop.f32.mrf.mxu0
        %v1427 = vadd.f32 %v1263, %v1426
        %v1428 = vpop.f32.mrf.mxu0
        %v1429 = vpop.f32.mrf.mxu0
        %v1430 = vadd.f32 %v1266, %v1429
        %v1431 = vpop.f32.mrf.mxu0
        %1432 = vmatprep.mubr.bf16.mxu0 0
        %1433 = vmatmul.mubr.bf16.gmra.mxu0 %v1359
        %v1434 = vpop.f32.mrf.mxu0
        %v1435 = vadd.f32 %v1271, %v1434
        %v1436 = vpop.f32.mrf.mxu0
        %v1437 = vpop.f32.mrf.mxu0
        %v1438 = vadd.f32 %v1274, %v1437
        %v1439 = vpop.f32.mrf.mxu0
        %1440 = vmatprep.mubr.bf16.mxu0 0
        %1441 = vmatmul.mubr.bf16.gmra.mxu0 %v1362
        %v1442 = vpop.f32.mrf.mxu0
        %v1443 = vadd.f32 %v1279, %v1442
        %v1444 = vpop.f32.mrf.mxu0
        %v1445 = vpop.f32.mrf.mxu0
        %v1446 = vadd.f32 %v1282, %v1445
        %v1447 = vpop.f32.mrf.mxu0
        %1448 = vmatprep.mubr.bf16.mxu0 0
        %1449 = vmatmul.mubr.bf16.gmra.mxu0 %v1365
        %v1450 = vpop.f32.mrf.mxu0
        %v1451 = vadd.f32 %v1287, %v1450
        %v1452 = vpop.f32.mrf.mxu0
        %v1453 = vpop.f32.mrf.mxu0
        %v1454 = vadd.f32 %v1290, %v1453
        %v1455 = vpop.f32.mrf.mxu0
        %1456 = vmatprep.mubr.bf16.mxu0 0
        %1457 = vmatmul.mubr.bf16.gmra.mxu0 %v1368
        %v1458 = vpop.f32.mrf.mxu0
        %v1459 = vadd.f32 %v1295, %v1458
        %v1460 = vpop.f32.mrf.mxu0
        %v1461 = vpop.f32.mrf.mxu0
        %v1462 = vadd.f32 %v1298, %v1461
        %v1463 = vpop.f32.mrf.mxu0
        %1464 = vmatprep.mubr.bf16.mxu0 0
        %1465 = vmatmul.mubr.bf16.gmra.mxu0 %v1371
        %v1466 = vpop.f32.mrf.mxu0
        %v1467 = vadd.f32 %v1303, %v1466
        %v1468 = vpop.f32.mrf.mxu0
        %v1469 = vpop.f32.mrf.mxu0
        %v1470 = vadd.f32 %v1306, %v1469
        %v1471 = vpop.f32.mrf.mxu0
        %1472 = vdwg.mxu0
        %v1473 = vld [vmem:[%s854] sm:$0xf]
        %v1474 = vld [vmem:[%s854 + $0x4] sm:$0xf]
        %v1475 = vld [vmem:[%s854 + $0x8] sm:$0xf]
        %v1476 = vld [vmem:[%s854 + $0xc] sm:$0xf]
        %v1477 = vld [vmem:[%s854 + $0x10] sm:$0xf]
        %v1478 = vld [vmem:[%s854 + $0x14] sm:$0xf]
        %v1479 = vld [vmem:[%s854 + $0x18] sm:$0xf]
        %v1480 = vld [vmem:[%s854 + $0x1c] sm:$0xf]
        %v1481 = vld [vmem:[%s854 + $0x20] sm:$0xf]
        %v1482 = vld [vmem:[%s854 + $0x24] sm:$0xf]
        %v1483 = vld [vmem:[%s854 + $0x28] sm:$0xf]
        %v1484 = vld [vmem:[%s854 + $0x2c] sm:$0xf]
        %v1485 = vld [vmem:[%s854 + $0x30] sm:$0xf]
        %v1486 = vld [vmem:[%s854 + $0x34] sm:$0xf]
        %v1487 = vld [vmem:[%s854 + $0x38] sm:$0xf]
        %v1488 = vld [vmem:[%s854 + $0x3c] sm:$0xf]
        %s1489 = scalar_lea.vmem %s3, 12
        %v1490 = vld [vmem:[%s1489] sm:$0x3]
        %v1507 = vunpack.c.l.b16 %v1473
        %v1508 = vunpack.c.l.b16 %v1474
        %v1509 = vunpack.c.l.b16 %v1475
        %v1510 = vunpack.c.l.b16 %v1476
        %v1511 = vunpack.c.l.b16 %v1477
        %v1512 = vunpack.c.l.b16 %v1478
        %v1513 = vunpack.c.l.b16 %v1479
        %v1514 = vunpack.c.l.b16 %v1480
        %v1515 = vunpack.c.l.b16 %v1481
        %v1516 = vunpack.c.l.b16 %v1482
        %v1517 = vunpack.c.l.b16 %v1483
        %v1518 = vunpack.c.l.b16 %v1484
        %v1519 = vunpack.c.l.b16 %v1485
        %v1520 = vunpack.c.l.b16 %v1486
        %v1521 = vunpack.c.l.b16 %v1487
        %v1522 = vunpack.c.l.b16 %v1488
        %v1523 = vpack.c.b16 %v1508, %v1507
        %v1524 = vpack.c.b16 %v1510, %v1509
        %v1525 = vpack.c.b16 %v1512, %v1511
        %v1526 = vpack.c.b16 %v1514, %v1513
        %v1527 = vpack.c.b16 %v1516, %v1515
        %v1528 = vpack.c.b16 %v1518, %v1517
        %v1529 = vpack.c.b16 %v1520, %v1519
        %v1530 = vpack.c.b16 %v1522, %v1521
        %v1532 = vsel %vm359, %v1523, 0
        %v1535 = vsel %vm359, %v1524, 0
        %v1538 = vsel %vm359, %v1525, 0
        %v1541 = vsel %vm359, %v1526, 0
        %v1544 = vsel %vm359, %v1527, 0
        %v1547 = vsel %vm359, %v1528, 0
        %v1550 = vsel %vm359, %v1529, 0
        %v1553 = vsel %vm359, %v1530, 0
        %v1556 = vsel %vm384, %v1490, 0
        %1558 = vmatprep.subr.bf16.mxu0 0
        %1559 = vmatpush1.bf16.msra.mxu0 0
        %1560 = vmatprep.subr.bf16.mxu0 0
        %1561 = vmatpush1.bf16.msra.mxu0 0
        %1562 = vmatprep.subr.bf16.mxu0 0
        %1563 = vmatpush1.bf16.msra.mxu0 0
        %1564 = vmatprep.subr.bf16.mxu0 0
        %1565 = vmatpush1.bf16.msra.mxu0 0
        %1566 = vmatprep.subr.bf16.mxu0 0
        %1567 = vmatpush1.bf16.msra.mxu0 0
        %1568 = vmatprep.subr.bf16.mxu0 0
        %1569 = vmatpush1.bf16.msra.mxu0 0
        %1570 = vmatprep.subr.bf16.mxu0 0
        %1571 = vmatpush1.bf16.msra.mxu0 0
        %1572 = vmatprep.subr.bf16.mxu0 0
        %1573 = vmatpush1.bf16.msra.mxu0 %v1556
        %1574 = vmatprep.subr.bf16.mxu0 0
        %1575 = vmatpush2.bf16.msra.mxu0 0
        %1576 = vmatprep.subr.bf16.mxu0 0
        %1577 = vmatpush2.bf16.msra.mxu0 0
        %1578 = vmatprep.subr.bf16.mxu0 0
        %1579 = vmatpush2.bf16.msra.mxu0 0
        %1580 = vmatprep.subr.bf16.mxu0 0
        %1581 = vmatpush2.bf16.msra.mxu0 0
        %1582 = vmatprep.subr.bf16.mxu0 0
        %1583 = vmatpush2.bf16.msra.mxu0 0
        %1584 = vmatprep.subr.bf16.mxu0 0
        %1585 = vmatpush2.bf16.msra.mxu0 0
        %1586 = vmatprep.subr.bf16.mxu0 0
        %1587 = vmatpush2.bf16.msra.mxu0 0
        %1588 = vmatprep.subr.bf16.mxu0 0
        %1589 = vmatpush2.bf16.msra.mxu0 0
        %1590 = vmatprep.mubr.bf16.mxu0 0
        %1591 = vmatmul.mubr.bf16.gmra.mxu0 %v1532
        %v1592 = vpop.f32.mrf.mxu0
        %v1593 = vadd.f32 0.0, %v1592
        %v1594 = vpop.f32.mrf.mxu0
        %v1595 = vpop.f32.mrf.mxu0
        %v1596 = vadd.f32 0.0, %v1595
        %v1597 = vpop.f32.mrf.mxu0
        %1598 = vmatprep.mubr.bf16.mxu0 0
        %1599 = vmatmul.mubr.bf16.gmra.mxu0 %v1535
        %v1600 = vpop.f32.mrf.mxu0
        %v1601 = vadd.f32 0.0, %v1600
        %v1602 = vpop.f32.mrf.mxu0
        %v1603 = vpop.f32.mrf.mxu0
        %v1604 = vadd.f32 0.0, %v1603
        %v1605 = vpop.f32.mrf.mxu0
        %1606 = vmatprep.mubr.bf16.mxu0 0
        %1607 = vmatmul.mubr.bf16.gmra.mxu0 %v1538
        %v1608 = vpop.f32.mrf.mxu0
        %v1609 = vadd.f32 0.0, %v1608
        %v1610 = vpop.f32.mrf.mxu0
        %v1611 = vpop.f32.mrf.mxu0
        %v1612 = vadd.f32 0.0, %v1611
        %v1613 = vpop.f32.mrf.mxu0
        %1614 = vmatprep.mubr.bf16.mxu0 0
        %1615 = vmatmul.mubr.bf16.gmra.mxu0 %v1541
        %v1616 = vpop.f32.mrf.mxu0
        %v1617 = vadd.f32 0.0, %v1616
        %v1618 = vpop.f32.mrf.mxu0
        %v1619 = vpop.f32.mrf.mxu0
        %v1620 = vadd.f32 0.0, %v1619
        %v1621 = vpop.f32.mrf.mxu0
        %1622 = vmatprep.mubr.bf16.mxu0 0
        %1623 = vmatmul.mubr.bf16.gmra.mxu0 %v1544
        %v1624 = vpop.f32.mrf.mxu0
        %v1625 = vadd.f32 0.0, %v1624
        %v1626 = vpop.f32.mrf.mxu0
        %v1627 = vpop.f32.mrf.mxu0
        %v1628 = vadd.f32 0.0, %v1627
        %v1629 = vpop.f32.mrf.mxu0
        %1630 = vmatprep.mubr.bf16.mxu0 0
        %1631 = vmatmul.mubr.bf16.gmra.mxu0 %v1547
        %v1632 = vpop.f32.mrf.mxu0
        %v1633 = vadd.f32 0.0, %v1632
        %v1634 = vpop.f32.mrf.mxu0
        %v1635 = vpop.f32.mrf.mxu0
        %v1636 = vadd.f32 0.0, %v1635
        %v1637 = vpop.f32.mrf.mxu0
        %1638 = vmatprep.mubr.bf16.mxu0 0
        %1639 = vmatmul.mubr.bf16.gmra.mxu0 %v1550
        %v1640 = vpop.f32.mrf.mxu0
        %v1641 = vadd.f32 0.0, %v1640
        %v1642 = vpop.f32.mrf.mxu0
        %v1643 = vpop.f32.mrf.mxu0
        %v1644 = vadd.f32 0.0, %v1643
        %v1645 = vpop.f32.mrf.mxu0
        %1646 = vmatprep.mubr.bf16.mxu0 0
        %1647 = vmatmul.mubr.bf16.gmra.mxu0 %v1553
        %v1648 = vpop.f32.mrf.mxu0
        %v1649 = vadd.f32 0.0, %v1648
        %v1650 = vpop.f32.mrf.mxu0
        %v1651 = vpop.f32.mrf.mxu0
        %v1652 = vadd.f32 0.0, %v1651
        %v1653 = vpop.f32.mrf.mxu0
        %1654 = vdwg.mxu0
        %v1655 = vadd.f32 %v1411, %v1593
        %v1656 = vadd.f32 %v1414, %v1596
        %v1657 = vadd.f32 %v1419, %v1601
        %v1658 = vadd.f32 %v1422, %v1604
        %v1659 = vadd.f32 %v1427, %v1609
        %v1660 = vadd.f32 %v1430, %v1612
        %v1661 = vadd.f32 %v1435, %v1617
        %v1662 = vadd.f32 %v1438, %v1620
        %v1663 = vadd.f32 %v1443, %v1625
        %v1664 = vadd.f32 %v1446, %v1628
        %v1665 = vadd.f32 %v1451, %v1633
        %v1666 = vadd.f32 %v1454, %v1636
        %v1667 = vadd.f32 %v1459, %v1641
        %v1668 = vadd.f32 %v1462, %v1644
        %v1669 = vadd.f32 %v1467, %v1649
        %v1670 = vadd.f32 %v1470, %v1652
        %s1671 = smul.addr %s651, 4
        %s1672 = scalar_lea.vmem %s272, %s1671
        %v1673 = vld [vmem:[%s1672] sm:$0xf]
        %v1674 = vld [vmem:[%s1672 + $0x4] sm:$0xf]
        %v1675 = vld [vmem:[%s1672 + $0x8] sm:$0xf]
        %v1676 = vld [vmem:[%s1672 + $0xc] sm:$0xf]
        %v1677 = vld [vmem:[%s1672 + $0x10] sm:$0xf]
        %v1678 = vld [vmem:[%s1672 + $0x14] sm:$0xf]
        %v1679 = vld [vmem:[%s1672 + $0x18] sm:$0xf]
        %v1680 = vld [vmem:[%s1672 + $0x1c] sm:$0xf]
        %v1681 = vld [vmem:[%s1672 + $0x20] sm:$0xf]
        %v1682 = vld [vmem:[%s1672 + $0x24] sm:$0xf]
        %v1683 = vld [vmem:[%s1672 + $0x28] sm:$0xf]
        %v1684 = vld [vmem:[%s1672 + $0x2c] sm:$0xf]
        %v1685 = vld [vmem:[%s1672 + $0x30] sm:$0xf]
        %v1686 = vld [vmem:[%s1672 + $0x34] sm:$0xf]
        %v1687 = vld [vmem:[%s1672 + $0x38] sm:$0xf]
        %v1688 = vld [vmem:[%s1672 + $0x3c] sm:$0xf]
        %s1689 = scalar_lea.vmem %s3, 14
        %v1690 = vld [vmem:[%s1689] sm:$0x3]
        %v1707 = vunpack.c.l.b16 %v1673
        %v1708 = vunpack.c.l.b16 %v1674
        %v1709 = vunpack.c.l.b16 %v1675
        %v1710 = vunpack.c.l.b16 %v1676
        %v1711 = vunpack.c.l.b16 %v1677
        %v1712 = vunpack.c.l.b16 %v1678
        %v1713 = vunpack.c.l.b16 %v1679
        %v1714 = vunpack.c.l.b16 %v1680
        %v1715 = vunpack.c.l.b16 %v1681
        %v1716 = vunpack.c.l.b16 %v1682
        %v1717 = vunpack.c.l.b16 %v1683
        %v1718 = vunpack.c.l.b16 %v1684
        %v1719 = vunpack.c.l.b16 %v1685
        %v1720 = vunpack.c.l.b16 %v1686
        %v1721 = vunpack.c.l.b16 %v1687
        %v1722 = vunpack.c.l.b16 %v1688
        %v1723 = vpack.c.b16 %v1708, %v1707
        %v1724 = vpack.c.b16 %v1710, %v1709
        %v1725 = vpack.c.b16 %v1712, %v1711
        %v1726 = vpack.c.b16 %v1714, %v1713
        %v1727 = vpack.c.b16 %v1716, %v1715
        %v1728 = vpack.c.b16 %v1718, %v1717
        %v1729 = vpack.c.b16 %v1720, %v1719
        %v1730 = vpack.c.b16 %v1722, %v1721
        %v1732 = vsel %vm359, %v1723, 0
        %v1735 = vsel %vm359, %v1724, 0
        %v1738 = vsel %vm359, %v1725, 0
        %v1741 = vsel %vm359, %v1726, 0
        %v1744 = vsel %vm359, %v1727, 0
        %v1747 = vsel %vm359, %v1728, 0
        %v1750 = vsel %vm359, %v1729, 0
        %v1753 = vsel %vm359, %v1730, 0
        %v1756 = vsel %vm384, %v1690, 0
        %1758 = vmatprep.subr.bf16.mxu0 0
        %1759 = vmatpush1.bf16.msra.mxu0 0
        %1760 = vmatprep.subr.bf16.mxu0 0
        %1761 = vmatpush1.bf16.msra.mxu0 0
        %1762 = vmatprep.subr.bf16.mxu0 0
        %1763 = vmatpush1.bf16.msra.mxu0 0
        %1764 = vmatprep.subr.bf16.mxu0 0
        %1765 = vmatpush1.bf16.msra.mxu0 0
        %1766 = vmatprep.subr.bf16.mxu0 0
        %1767 = vmatpush1.bf16.msra.mxu0 0
        %1768 = vmatprep.subr.bf16.mxu0 0
        %1769 = vmatpush1.bf16.msra.mxu0 0
        %1770 = vmatprep.subr.bf16.mxu0 0
        %1771 = vmatpush1.bf16.msra.mxu0 0
        %1772 = vmatprep.subr.bf16.mxu0 0
        %1773 = vmatpush1.bf16.msra.mxu0 %v1756
        %1774 = vmatprep.subr.bf16.mxu0 0
        %1775 = vmatpush2.bf16.msra.mxu0 0
        %1776 = vmatprep.subr.bf16.mxu0 0
        %1777 = vmatpush2.bf16.msra.mxu0 0
        %1778 = vmatprep.subr.bf16.mxu0 0
        %1779 = vmatpush2.bf16.msra.mxu0 0
        %1780 = vmatprep.subr.bf16.mxu0 0
        %1781 = vmatpush2.bf16.msra.mxu0 0
        %1782 = vmatprep.subr.bf16.mxu0 0
        %1783 = vmatpush2.bf16.msra.mxu0 0
        %1784 = vmatprep.subr.bf16.mxu0 0
        %1785 = vmatpush2.bf16.msra.mxu0 0
        %1786 = vmatprep.subr.bf16.mxu0 0
        %1787 = vmatpush2.bf16.msra.mxu0 0
        %1788 = vmatprep.subr.bf16.mxu0 0
        %1789 = vmatpush2.bf16.msra.mxu0 0
        %1790 = vmatprep.mubr.bf16.mxu0 0
        %1791 = vmatmul.mubr.bf16.gmra.mxu0 %v1732
        %v1792 = vpop.f32.mrf.mxu0
        %v1793 = vadd.f32 0.0, %v1792
        %v1794 = vpop.f32.mrf.mxu0
        %v1795 = vpop.f32.mrf.mxu0
        %v1796 = vadd.f32 0.0, %v1795
        %v1797 = vpop.f32.mrf.mxu0
        %1798 = vmatprep.mubr.bf16.mxu0 0
        %1799 = vmatmul.mubr.bf16.gmra.mxu0 %v1735
        %v1800 = vpop.f32.mrf.mxu0
        %v1801 = vadd.f32 0.0, %v1800
        %v1802 = vpop.f32.mrf.mxu0
        %v1803 = vpop.f32.mrf.mxu0
        %v1804 = vadd.f32 0.0, %v1803
        %v1805 = vpop.f32.mrf.mxu0
        %1806 = vmatprep.mubr.bf16.mxu0 0
        %1807 = vmatmul.mubr.bf16.gmra.mxu0 %v1738
        %v1808 = vpop.f32.mrf.mxu0
        %v1809 = vadd.f32 0.0, %v1808
        %v1810 = vpop.f32.mrf.mxu0
        %v1811 = vpop.f32.mrf.mxu0
        %v1812 = vadd.f32 0.0, %v1811
        %v1813 = vpop.f32.mrf.mxu0
        %1814 = vmatprep.mubr.bf16.mxu0 0
        %1815 = vmatmul.mubr.bf16.gmra.mxu0 %v1741
        %v1816 = vpop.f32.mrf.mxu0
        %v1817 = vadd.f32 0.0, %v1816
        %v1818 = vpop.f32.mrf.mxu0
        %v1819 = vpop.f32.mrf.mxu0
        %v1820 = vadd.f32 0.0, %v1819
        %v1821 = vpop.f32.mrf.mxu0
        %1822 = vmatprep.mubr.bf16.mxu0 0
        %1823 = vmatmul.mubr.bf16.gmra.mxu0 %v1744
        %v1824 = vpop.f32.mrf.mxu0
        %v1825 = vadd.f32 0.0, %v1824
        %v1826 = vpop.f32.mrf.mxu0
        %v1827 = vpop.f32.mrf.mxu0
        %v1828 = vadd.f32 0.0, %v1827
        %v1829 = vpop.f32.mrf.mxu0
        %1830 = vmatprep.mubr.bf16.mxu0 0
        %1831 = vmatmul.mubr.bf16.gmra.mxu0 %v1747
        %v1832 = vpop.f32.mrf.mxu0
        %v1833 = vadd.f32 0.0, %v1832
        %v1834 = vpop.f32.mrf.mxu0
        %v1835 = vpop.f32.mrf.mxu0
        %v1836 = vadd.f32 0.0, %v1835
        %v1837 = vpop.f32.mrf.mxu0
        %1838 = vmatprep.mubr.bf16.mxu0 0
        %1839 = vmatmul.mubr.bf16.gmra.mxu0 %v1750
        %v1840 = vpop.f32.mrf.mxu0
        %v1841 = vadd.f32 0.0, %v1840
        %v1842 = vpop.f32.mrf.mxu0
        %v1843 = vpop.f32.mrf.mxu0
        %v1844 = vadd.f32 0.0, %v1843
        %v1845 = vpop.f32.mrf.mxu0
        %1846 = vmatprep.mubr.bf16.mxu0 0
        %1847 = vmatmul.mubr.bf16.gmra.mxu0 %v1753
        %v1848 = vpop.f32.mrf.mxu0
        %v1849 = vadd.f32 0.0, %v1848
        %v1850 = vpop.f32.mrf.mxu0
        %v1851 = vpop.f32.mrf.mxu0
        %v1852 = vadd.f32 0.0, %v1851
        %v1853 = vpop.f32.mrf.mxu0
        %1854 = vdwg.mxu0
        %v1855 = vadd.f32 %v1655, %v1793
        %v1856 = vadd.f32 %v1656, %v1796
        %v1857 = vadd.f32 %v1657, %v1801
        %v1858 = vadd.f32 %v1658, %v1804
        %v1859 = vadd.f32 %v1659, %v1809
        %v1860 = vadd.f32 %v1660, %v1812
        %v1861 = vadd.f32 %v1661, %v1817
        %v1862 = vadd.f32 %v1662, %v1820
        %v1863 = vadd.f32 %v1663, %v1825
        %v1864 = vadd.f32 %v1664, %v1828
        %v1865 = vadd.f32 %v1665, %v1833
        %v1866 = vadd.f32 %v1666, %v1836
        %v1867 = vadd.f32 %v1667, %v1841
        %v1868 = vadd.f32 %v1668, %v1844
        %v1869 = vadd.f32 %v1669, %v1849
        %v1870 = vadd.f32 %v1670, %v1852
        %v1871 = vadd.f32 %v1855, %v1057
        %v1872 = vadd.f32 %v1856, %v1057
        %v1873 = vadd.f32 %v1857, %v1057
        %v1874 = vadd.f32 %v1858, %v1057
        %v1875 = vadd.f32 %v1859, %v1057
        %v1876 = vadd.f32 %v1860, %v1057
        %v1877 = vadd.f32 %v1861, %v1057
        %v1878 = vadd.f32 %v1862, %v1057
        %v1879 = vadd.f32 %v1863, %v1057
        %v1880 = vadd.f32 %v1864, %v1057
        %v1881 = vadd.f32 %v1865, %v1057
        %v1882 = vadd.f32 %v1866, %v1057
        %v1883 = vadd.f32 %v1867, %v1057
        %v1884 = vadd.f32 %v1868, %v1057
        %v1885 = vadd.f32 %v1869, %v1057
        %v1886 = vadd.f32 %v1870, %v1057
        %v1887 = vmax.f32 %v1871, 0.0
        %v1888 = vmax.f32 %v1872, 0.0
        %v1889 = vmax.f32 %v1873, 0.0
        %v1890 = vmax.f32 %v1874, 0.0
        %v1891 = vmax.f32 %v1875, 0.0
        %v1892 = vmax.f32 %v1876, 0.0
        %v1893 = vmax.f32 %v1877, 0.0
        %v1894 = vmax.f32 %v1878, 0.0
        %v1895 = vmax.f32 %v1879, 0.0
        %v1896 = vmax.f32 %v1880, 0.0
        %v1897 = vmax.f32 %v1881, 0.0
        %v1898 = vmax.f32 %v1882, 0.0
        %v1899 = vmax.f32 %v1883, 0.0
        %v1900 = vmax.f32 %v1884, 0.0
        %v1901 = vmax.f32 %v1885, 0.0
        %v1902 = vmax.f32 %v1886, 0.0
        %s1903 = scalar_lea.vmem %s257, 128 [#allocation2]
        %1904 = vst [vmem:[%s1903] sm:$0xff] %v1887
        %1905 = vst [vmem:[%s1903 + $0x8] sm:$0xff] %v1888
        %1906 = vst [vmem:[%s1903 + $0x10] sm:$0xff] %v1889
        %1907 = vst [vmem:[%s1903 + $0x18] sm:$0xff] %v1890
        %1908 = vst [vmem:[%s1903 + $0x20] sm:$0xff] %v1891
        %1909 = vst [vmem:[%s1903 + $0x28] sm:$0xff] %v1892
        %1910 = vst [vmem:[%s1903 + $0x30] sm:$0xff] %v1893
        %1911 = vst [vmem:[%s1903 + $0x38] sm:$0xff] %v1894
        %1912 = vst [vmem:[%s1903 + $0x40] sm:$0xff] %v1895
        %1913 = vst [vmem:[%s1903 + $0x48] sm:$0xff] %v1896
        %1914 = vst [vmem:[%s1903 + $0x50] sm:$0xff] %v1897
        %1915 = vst [vmem:[%s1903 + $0x58] sm:$0xff] %v1898
        %1916 = vst [vmem:[%s1903 + $0x60] sm:$0xff] %v1899
        %1917 = vst [vmem:[%s1903 + $0x68] sm:$0xff] %v1900
        %1918 = vst [vmem:[%s1903 + $0x70] sm:$0xff] %v1901
        %1919 = vst [vmem:[%s1903 + $0x78] sm:$0xff] %v1902
        %v1920 = vld [vmem:[%s654] sm:$0xf]
        %v1921 = vld [vmem:[%s654 + $0x4] sm:$0xf]
        %v1922 = vld [vmem:[%s654 + $0x8] sm:$0xf]
        %v1923 = vld [vmem:[%s654 + $0xc] sm:$0xf]
        %v1924 = vld [vmem:[%s654 + $0x10] sm:$0xf]
        %v1925 = vld [vmem:[%s654 + $0x14] sm:$0xf]
        %v1926 = vld [vmem:[%s654 + $0x18] sm:$0xf]
        %v1927 = vld [vmem:[%s654 + $0x1c] sm:$0xf]
        %v1928 = vld [vmem:[%s654 + $0x20] sm:$0xf]
        %v1929 = vld [vmem:[%s654 + $0x24] sm:$0xf]
        %v1930 = vld [vmem:[%s654 + $0x28] sm:$0xf]
        %v1931 = vld [vmem:[%s654 + $0x2c] sm:$0xf]
        %v1932 = vld [vmem:[%s654 + $0x30] sm:$0xf]
        %v1933 = vld [vmem:[%s654 + $0x34] sm:$0xf]
        %v1934 = vld [vmem:[%s654 + $0x38] sm:$0xf]
        %v1935 = vld [vmem:[%s654 + $0x3c] sm:$0xf]
        %s1936 = scalar_lea.vmem %s3, 16
        %v1937 = vld [vmem:[%s1936] sm:$0x3]
        %v1938 = vld [vmem:[%s854] sm:$0xf]
        %v1939 = vld [vmem:[%s854 + $0x4] sm:$0xf]
        %v1940 = vld [vmem:[%s854 + $0x8] sm:$0xf]
        %v1941 = vld [vmem:[%s854 + $0xc] sm:$0xf]
        %v1942 = vld [vmem:[%s854 + $0x10] sm:$0xf]
        %v1943 = vld [vmem:[%s854 + $0x14] sm:$0xf]
        %v1944 = vld [vmem:[%s854 + $0x18] sm:$0xf]
        %v1945 = vld [vmem:[%s854 + $0x1c] sm:$0xf]
        %v1946 = vld [vmem:[%s854 + $0x20] sm:$0xf]
        %v1947 = vld [vmem:[%s854 + $0x24] sm:$0xf]
        %v1948 = vld [vmem:[%s854 + $0x28] sm:$0xf]
        %v1949 = vld [vmem:[%s854 + $0x2c] sm:$0xf]
        %v1950 = vld [vmem:[%s854 + $0x30] sm:$0xf]
        %v1951 = vld [vmem:[%s854 + $0x34] sm:$0xf]
        %v1952 = vld [vmem:[%s854 + $0x38] sm:$0xf]
        %v1953 = vld [vmem:[%s854 + $0x3c] sm:$0xf]
        %s1954 = scalar_lea.vmem %s3, 18
        %v1955 = vld [vmem:[%s1954] sm:$0x3]
        %v1972 = vunpack.c.l.b16 %v1938
        %v1973 = vunpack.c.l.b16 %v1939
        %v1974 = vunpack.c.l.b16 %v1940
        %v1975 = vunpack.c.l.b16 %v1941
        %v1976 = vunpack.c.l.b16 %v1942
        %v1977 = vunpack.c.l.b16 %v1943
        %v1978 = vunpack.c.l.b16 %v1944
        %v1979 = vunpack.c.l.b16 %v1945
        %v1980 = vunpack.c.l.b16 %v1946
        %v1981 = vunpack.c.l.b16 %v1947
        %v1982 = vunpack.c.l.b16 %v1948
        %v1983 = vunpack.c.l.b16 %v1949
        %v1984 = vunpack.c.l.b16 %v1950
        %v1985 = vunpack.c.l.b16 %v1951
        %v1986 = vunpack.c.l.b16 %v1952
        %v1987 = vunpack.c.l.b16 %v1953
        %v1988 = vpack.c.b16 %v1973, %v1972
        %v1989 = vpack.c.b16 %v1975, %v1974
        %v1990 = vpack.c.b16 %v1977, %v1976
        %v1991 = vpack.c.b16 %v1979, %v1978
        %v1992 = vpack.c.b16 %v1981, %v1980
        %v1993 = vpack.c.b16 %v1983, %v1982
        %v1994 = vpack.c.b16 %v1985, %v1984
        %v1995 = vpack.c.b16 %v1987, %v1986
        %v1997 = vsel %vm359, %v1988, 0
        %v2000 = vsel %vm359, %v1989, 0
        %v2003 = vsel %vm359, %v1990, 0
        %v2006 = vsel %vm359, %v1991, 0
        %v2009 = vsel %vm359, %v1992, 0
        %v2012 = vsel %vm359, %v1993, 0
        %v2015 = vsel %vm359, %v1994, 0
        %v2018 = vsel %vm359, %v1995, 0
        %v2021 = vsel %vm384, %v1955, 0
        %2023 = vmatprep.subr.bf16.mxu0 0
        %2024 = vmatpush1.bf16.msra.mxu0 0
        %2025 = vmatprep.subr.bf16.mxu0 0
        %2026 = vmatpush1.bf16.msra.mxu0 0
        %2027 = vmatprep.subr.bf16.mxu0 0
        %2028 = vmatpush1.bf16.msra.mxu0 0
        %2029 = vmatprep.subr.bf16.mxu0 0
        %2030 = vmatpush1.bf16.msra.mxu0 0
        %2031 = vmatprep.subr.bf16.mxu0 0
        %2032 = vmatpush1.bf16.msra.mxu0 0
        %2033 = vmatprep.subr.bf16.mxu0 0
        %2034 = vmatpush1.bf16.msra.mxu0 0
        %2035 = vmatprep.subr.bf16.mxu0 0
        %2036 = vmatpush1.bf16.msra.mxu0 0
        %2037 = vmatprep.subr.bf16.mxu0 0
        %2038 = vmatpush1.bf16.msra.mxu0 %v2021
        %2039 = vmatprep.subr.bf16.mxu0 0
        %2040 = vmatpush2.bf16.msra.mxu0 0
        %2041 = vmatprep.subr.bf16.mxu0 0
        %2042 = vmatpush2.bf16.msra.mxu0 0
        %2043 = vmatprep.subr.bf16.mxu0 0
        %2044 = vmatpush2.bf16.msra.mxu0 0
        %2045 = vmatprep.subr.bf16.mxu0 0
        %2046 = vmatpush2.bf16.msra.mxu0 0
        %2047 = vmatprep.subr.bf16.mxu0 0
        %2048 = vmatpush2.bf16.msra.mxu0 0
        %2049 = vmatprep.subr.bf16.mxu0 0
        %2050 = vmatpush2.bf16.msra.mxu0 0
        %2051 = vmatprep.subr.bf16.mxu0 0
        %2052 = vmatpush2.bf16.msra.mxu0 0
        %2053 = vmatprep.subr.bf16.mxu0 0
        %2054 = vmatpush2.bf16.msra.mxu0 0
        %2055 = vmatprep.mubr.bf16.mxu0 0
        %2056 = vmatmul.mubr.bf16.gmra.mxu0 %v1997
        %v2057 = vpop.f32.mrf.mxu0
        %v2058 = vadd.f32 0.0, %v2057
        %v2059 = vpop.f32.mrf.mxu0
        %v2060 = vpop.f32.mrf.mxu0
        %v2061 = vadd.f32 0.0, %v2060
        %v2062 = vpop.f32.mrf.mxu0
        %2063 = vmatprep.mubr.bf16.mxu0 0
        %2064 = vmatmul.mubr.bf16.gmra.mxu0 %v2000
        %v2065 = vpop.f32.mrf.mxu0
        %v2066 = vadd.f32 0.0, %v2065
        %v2067 = vpop.f32.mrf.mxu0
        %v2068 = vpop.f32.mrf.mxu0
        %v2069 = vadd.f32 0.0, %v2068
        %v2070 = vpop.f32.mrf.mxu0
        %2071 = vmatprep.mubr.bf16.mxu0 0
        %2072 = vmatmul.mubr.bf16.gmra.mxu0 %v2003
        %v2073 = vpop.f32.mrf.mxu0
        %v2074 = vadd.f32 0.0, %v2073
        %v2075 = vpop.f32.mrf.mxu0
        %v2076 = vpop.f32.mrf.mxu0
        %v2077 = vadd.f32 0.0, %v2076
        %v2078 = vpop.f32.mrf.mxu0
        %2079 = vmatprep.mubr.bf16.mxu0 0
        %2080 = vmatmul.mubr.bf16.gmra.mxu0 %v2006
        %v2081 = vpop.f32.mrf.mxu0
        %v2082 = vadd.f32 0.0, %v2081
        %v2083 = vpop.f32.mrf.mxu0
        %v2084 = vpop.f32.mrf.mxu0
        %v2085 = vadd.f32 0.0, %v2084
        %v2086 = vpop.f32.mrf.mxu0
        %2087 = vmatprep.mubr.bf16.mxu0 0
        %2088 = vmatmul.mubr.bf16.gmra.mxu0 %v2009
        %v2089 = vpop.f32.mrf.mxu0
        %v2090 = vadd.f32 0.0, %v2089
        %v2091 = vpop.f32.mrf.mxu0
        %v2092 = vpop.f32.mrf.mxu0
        %v2093 = vadd.f32 0.0, %v2092
        %v2094 = vpop.f32.mrf.mxu0
        %2095 = vmatprep.mubr.bf16.mxu0 0
        %2096 = vmatmul.mubr.bf16.gmra.mxu0 %v2012
        %v2097 = vpop.f32.mrf.mxu0
        %v2098 = vadd.f32 0.0, %v2097
        %v2099 = vpop.f32.mrf.mxu0
        %v2100 = vpop.f32.mrf.mxu0
        %v2101 = vadd.f32 0.0, %v2100
        %v2102 = vpop.f32.mrf.mxu0
        %2103 = vmatprep.mubr.bf16.mxu0 0
        %2104 = vmatmul.mubr.bf16.gmra.mxu0 %v2015
        %v2105 = vpop.f32.mrf.mxu0
        %v2106 = vadd.f32 0.0, %v2105
        %v2107 = vpop.f32.mrf.mxu0
        %v2108 = vpop.f32.mrf.mxu0
        %v2109 = vadd.f32 0.0, %v2108
        %v2110 = vpop.f32.mrf.mxu0
        %2111 = vmatprep.mubr.bf16.mxu0 0
        %2112 = vmatmul.mubr.bf16.gmra.mxu0 %v2018
        %v2113 = vpop.f32.mrf.mxu0
        %v2114 = vadd.f32 0.0, %v2113
        %v2115 = vpop.f32.mrf.mxu0
        %v2116 = vpop.f32.mrf.mxu0
        %v2117 = vadd.f32 0.0, %v2116
        %v2118 = vpop.f32.mrf.mxu0
        %2119 = vdwg.mxu0
        %v2136 = vunpack.c.l.b16 %v1920
        %v2137 = vunpack.c.l.b16 %v1921
        %v2138 = vunpack.c.l.b16 %v1922
        %v2139 = vunpack.c.l.b16 %v1923
        %v2140 = vunpack.c.l.b16 %v1924
        %v2141 = vunpack.c.l.b16 %v1925
        %v2142 = vunpack.c.l.b16 %v1926
        %v2143 = vunpack.c.l.b16 %v1927
        %v2144 = vunpack.c.l.b16 %v1928
        %v2145 = vunpack.c.l.b16 %v1929
        %v2146 = vunpack.c.l.b16 %v1930
        %v2147 = vunpack.c.l.b16 %v1931
        %v2148 = vunpack.c.l.b16 %v1932
        %v2149 = vunpack.c.l.b16 %v1933
        %v2150 = vunpack.c.l.b16 %v1934
        %v2151 = vunpack.c.l.b16 %v1935
        %v2152 = vpack.c.b16 %v2137, %v2136
        %v2153 = vpack.c.b16 %v2139, %v2138
        %v2154 = vpack.c.b16 %v2141, %v2140
        %v2155 = vpack.c.b16 %v2143, %v2142
        %v2156 = vpack.c.b16 %v2145, %v2144
        %v2157 = vpack.c.b16 %v2147, %v2146
        %v2158 = vpack.c.b16 %v2149, %v2148
        %v2159 = vpack.c.b16 %v2151, %v2150
        %v2161 = vsel %vm359, %v2152, 0
        %v2164 = vsel %vm359, %v2153, 0
        %v2167 = vsel %vm359, %v2154, 0
        %v2170 = vsel %vm359, %v2155, 0
        %v2173 = vsel %vm359, %v2156, 0
        %v2176 = vsel %vm359, %v2157, 0
        %v2179 = vsel %vm359, %v2158, 0
        %v2182 = vsel %vm359, %v2159, 0
        %v2185 = vsel %vm384, %v1937, 0
        %2187 = vmatprep.subr.bf16.mxu0 0
        %2188 = vmatpush1.bf16.msra.mxu0 0
        %2189 = vmatprep.subr.bf16.mxu0 0
        %2190 = vmatpush1.bf16.msra.mxu0 0
        %2191 = vmatprep.subr.bf16.mxu0 0
        %2192 = vmatpush1.bf16.msra.mxu0 0
        %2193 = vmatprep.subr.bf16.mxu0 0
        %2194 = vmatpush1.bf16.msra.mxu0 0
        %2195 = vmatprep.subr.bf16.mxu0 0
        %2196 = vmatpush1.bf16.msra.mxu0 0
        %2197 = vmatprep.subr.bf16.mxu0 0
        %2198 = vmatpush1.bf16.msra.mxu0 0
        %2199 = vmatprep.subr.bf16.mxu0 0
        %2200 = vmatpush1.bf16.msra.mxu0 0
        %2201 = vmatprep.subr.bf16.mxu0 0
        %2202 = vmatpush1.bf16.msra.mxu0 %v2185
        %2203 = vmatprep.subr.bf16.mxu0 0
        %2204 = vmatpush2.bf16.msra.mxu0 0
        %2205 = vmatprep.subr.bf16.mxu0 0
        %2206 = vmatpush2.bf16.msra.mxu0 0
        %2207 = vmatprep.subr.bf16.mxu0 0
        %2208 = vmatpush2.bf16.msra.mxu0 0
        %2209 = vmatprep.subr.bf16.mxu0 0
        %2210 = vmatpush2.bf16.msra.mxu0 0
        %2211 = vmatprep.subr.bf16.mxu0 0
        %2212 = vmatpush2.bf16.msra.mxu0 0
        %2213 = vmatprep.subr.bf16.mxu0 0
        %2214 = vmatpush2.bf16.msra.mxu0 0
        %2215 = vmatprep.subr.bf16.mxu0 0
        %2216 = vmatpush2.bf16.msra.mxu0 0
        %2217 = vmatprep.subr.bf16.mxu0 0
        %2218 = vmatpush2.bf16.msra.mxu0 0
        %2219 = vmatprep.mubr.bf16.mxu0 0
        %2220 = vmatmul.mubr.bf16.gmra.mxu0 %v2161
        %v2221 = vpop.f32.mrf.mxu0
        %v2222 = vadd.f32 %v2058, %v2221
        %v2223 = vpop.f32.mrf.mxu0
        %v2224 = vpop.f32.mrf.mxu0
        %v2225 = vadd.f32 %v2061, %v2224
        %v2226 = vpop.f32.mrf.mxu0
        %2227 = vmatprep.mubr.bf16.mxu0 0
        %2228 = vmatmul.mubr.bf16.gmra.mxu0 %v2164
        %v2229 = vpop.f32.mrf.mxu0
        %v2230 = vadd.f32 %v2066, %v2229
        %v2231 = vpop.f32.mrf.mxu0
        %v2232 = vpop.f32.mrf.mxu0
        %v2233 = vadd.f32 %v2069, %v2232
        %v2234 = vpop.f32.mrf.mxu0
        %2235 = vmatprep.mubr.bf16.mxu0 0
        %2236 = vmatmul.mubr.bf16.gmra.mxu0 %v2167
        %v2237 = vpop.f32.mrf.mxu0
        %v2238 = vadd.f32 %v2074, %v2237
        %v2239 = vpop.f32.mrf.mxu0
        %v2240 = vpop.f32.mrf.mxu0
        %v2241 = vadd.f32 %v2077, %v2240
        %v2242 = vpop.f32.mrf.mxu0
        %2243 = vmatprep.mubr.bf16.mxu0 0
        %2244 = vmatmul.mubr.bf16.gmra.mxu0 %v2170
        %v2245 = vpop.f32.mrf.mxu0
        %v2246 = vadd.f32 %v2082, %v2245
        %v2247 = vpop.f32.mrf.mxu0
        %v2248 = vpop.f32.mrf.mxu0
        %v2249 = vadd.f32 %v2085, %v2248
        %v2250 = vpop.f32.mrf.mxu0
        %2251 = vmatprep.mubr.bf16.mxu0 0
        %2252 = vmatmul.mubr.bf16.gmra.mxu0 %v2173
        %v2253 = vpop.f32.mrf.mxu0
        %v2254 = vadd.f32 %v2090, %v2253
        %v2255 = vpop.f32.mrf.mxu0
        %v2256 = vpop.f32.mrf.mxu0
        %v2257 = vadd.f32 %v2093, %v2256
        %v2258 = vpop.f32.mrf.mxu0
        %2259 = vmatprep.mubr.bf16.mxu0 0
        %2260 = vmatmul.mubr.bf16.gmra.mxu0 %v2176
        %v2261 = vpop.f32.mrf.mxu0
        %v2262 = vadd.f32 %v2098, %v2261
        %v2263 = vpop.f32.mrf.mxu0
        %v2264 = vpop.f32.mrf.mxu0
        %v2265 = vadd.f32 %v2101, %v2264
        %v2266 = vpop.f32.mrf.mxu0
        %2267 = vmatprep.mubr.bf16.mxu0 0
        %2268 = vmatmul.mubr.bf16.gmra.mxu0 %v2179
        %v2269 = vpop.f32.mrf.mxu0
        %v2270 = vadd.f32 %v2106, %v2269
        %v2271 = vpop.f32.mrf.mxu0
        %v2272 = vpop.f32.mrf.mxu0
        %v2273 = vadd.f32 %v2109, %v2272
        %v2274 = vpop.f32.mrf.mxu0
        %2275 = vmatprep.mubr.bf16.mxu0 0
        %2276 = vmatmul.mubr.bf16.gmra.mxu0 %v2182
        %v2277 = vpop.f32.mrf.mxu0
        %v2278 = vadd.f32 %v2114, %v2277
        %v2279 = vpop.f32.mrf.mxu0
        %v2280 = vpop.f32.mrf.mxu0
        %v2281 = vadd.f32 %v2117, %v2280
        %v2282 = vpop.f32.mrf.mxu0
        %2283 = vdwg.mxu0
        %s2284 = sadd.s32 %s275, 2
        %s2285 = smul.u32 %s2284, 16
        %s2286 = sshra.s32 %s2285, 3
        %s2287 = sand.u32 %s2285, 7
        %s2288 = smul.addr %s2286, 4
        %s2289 = scalar_lea.vmem %s262, %s2288
        %v2290 = vld [vmem:[%s2289] sm:$0xf]
        %v2291 = vld [vmem:[%s2289 + $0x4] sm:$0xf]
        %v2292 = vld [vmem:[%s2289 + $0x8] sm:$0xf]
        %v2293 = vld [vmem:[%s2289 + $0xc] sm:$0xf]
        %v2294 = vld [vmem:[%s2289 + $0x10] sm:$0xf]
        %v2295 = vld [vmem:[%s2289 + $0x14] sm:$0xf]
        %v2296 = vld [vmem:[%s2289 + $0x18] sm:$0xf]
        %v2297 = vld [vmem:[%s2289 + $0x1c] sm:$0xf]
        %v2298 = vld [vmem:[%s2289 + $0x20] sm:$0xf]
        %v2299 = vld [vmem:[%s2289 + $0x24] sm:$0xf]
        %v2300 = vld [vmem:[%s2289 + $0x28] sm:$0xf]
        %v2301 = vld [vmem:[%s2289 + $0x2c] sm:$0xf]
        %v2302 = vld [vmem:[%s2289 + $0x30] sm:$0xf]
        %v2303 = vld [vmem:[%s2289 + $0x34] sm:$0xf]
        %v2304 = vld [vmem:[%s2289 + $0x38] sm:$0xf]
        %v2305 = vld [vmem:[%s2289 + $0x3c] sm:$0xf]
        %s2306 = scalar_lea.vmem %s3, 20
        %v2307 = vld [vmem:[%s2306] sm:$0x3]
        %v2324 = vunpack.c.l.b16 %v2290
        %v2325 = vunpack.c.l.b16 %v2291
        %v2326 = vunpack.c.l.b16 %v2292
        %v2327 = vunpack.c.l.b16 %v2293
        %v2328 = vunpack.c.l.b16 %v2294
        %v2329 = vunpack.c.l.b16 %v2295
        %v2330 = vunpack.c.l.b16 %v2296
        %v2331 = vunpack.c.l.b16 %v2297
        %v2332 = vunpack.c.l.b16 %v2298
        %v2333 = vunpack.c.l.b16 %v2299
        %v2334 = vunpack.c.l.b16 %v2300
        %v2335 = vunpack.c.l.b16 %v2301
        %v2336 = vunpack.c.l.b16 %v2302
        %v2337 = vunpack.c.l.b16 %v2303
        %v2338 = vunpack.c.l.b16 %v2304
        %v2339 = vunpack.c.l.b16 %v2305
        %v2340 = vpack.c.b16 %v2325, %v2324
        %v2341 = vpack.c.b16 %v2327, %v2326
        %v2342 = vpack.c.b16 %v2329, %v2328
        %v2343 = vpack.c.b16 %v2331, %v2330
        %v2344 = vpack.c.b16 %v2333, %v2332
        %v2345 = vpack.c.b16 %v2335, %v2334
        %v2346 = vpack.c.b16 %v2337, %v2336
        %v2347 = vpack.c.b16 %v2339, %v2338
        %v2349 = vsel %vm359, %v2340, 0
        %v2352 = vsel %vm359, %v2341, 0
        %v2355 = vsel %vm359, %v2342, 0
        %v2358 = vsel %vm359, %v2343, 0
        %v2361 = vsel %vm359, %v2344, 0
        %v2364 = vsel %vm359, %v2345, 0
        %v2367 = vsel %vm359, %v2346, 0
        %v2370 = vsel %vm359, %v2347, 0
        %v2373 = vsel %vm384, %v2307, 0
        %2375 = vmatprep.subr.bf16.mxu0 0
        %2376 = vmatpush1.bf16.msra.mxu0 0
        %2377 = vmatprep.subr.bf16.mxu0 0
        %2378 = vmatpush1.bf16.msra.mxu0 0
        %2379 = vmatprep.subr.bf16.mxu0 0
        %2380 = vmatpush1.bf16.msra.mxu0 0
        %2381 = vmatprep.subr.bf16.mxu0 0
        %2382 = vmatpush1.bf16.msra.mxu0 0
        %2383 = vmatprep.subr.bf16.mxu0 0
        %2384 = vmatpush1.bf16.msra.mxu0 0
        %2385 = vmatprep.subr.bf16.mxu0 0
        %2386 = vmatpush1.bf16.msra.mxu0 0
        %2387 = vmatprep.subr.bf16.mxu0 0
        %2388 = vmatpush1.bf16.msra.mxu0 0
        %2389 = vmatprep.subr.bf16.mxu0 0
        %2390 = vmatpush1.bf16.msra.mxu0 %v2373
        %2391 = vmatprep.subr.bf16.mxu0 0
        %2392 = vmatpush2.bf16.msra.mxu0 0
        %2393 = vmatprep.subr.bf16.mxu0 0
        %2394 = vmatpush2.bf16.msra.mxu0 0
        %2395 = vmatprep.subr.bf16.mxu0 0
        %2396 = vmatpush2.bf16.msra.mxu0 0
        %2397 = vmatprep.subr.bf16.mxu0 0
        %2398 = vmatpush2.bf16.msra.mxu0 0
        %2399 = vmatprep.subr.bf16.mxu0 0
        %2400 = vmatpush2.bf16.msra.mxu0 0
        %2401 = vmatprep.subr.bf16.mxu0 0
        %2402 = vmatpush2.bf16.msra.mxu0 0
        %2403 = vmatprep.subr.bf16.mxu0 0
        %2404 = vmatpush2.bf16.msra.mxu0 0
        %2405 = vmatprep.subr.bf16.mxu0 0
        %2406 = vmatpush2.bf16.msra.mxu0 0
        %2407 = vmatprep.mubr.bf16.mxu0 0
        %2408 = vmatmul.mubr.bf16.gmra.mxu0 %v2349
        %v2409 = vpop.f32.mrf.mxu0
        %v2410 = vadd.f32 0.0, %v2409
        %v2411 = vpop.f32.mrf.mxu0
        %v2412 = vpop.f32.mrf.mxu0
        %v2413 = vadd.f32 0.0, %v2412
        %v2414 = vpop.f32.mrf.mxu0
        %2415 = vmatprep.mubr.bf16.mxu0 0
        %2416 = vmatmul.mubr.bf16.gmra.mxu0 %v2352
        %v2417 = vpop.f32.mrf.mxu0
        %v2418 = vadd.f32 0.0, %v2417
        %v2419 = vpop.f32.mrf.mxu0
        %v2420 = vpop.f32.mrf.mxu0
        %v2421 = vadd.f32 0.0, %v2420
        %v2422 = vpop.f32.mrf.mxu0
        %2423 = vmatprep.mubr.bf16.mxu0 0
        %2424 = vmatmul.mubr.bf16.gmra.mxu0 %v2355
        %v2425 = vpop.f32.mrf.mxu0
        %v2426 = vadd.f32 0.0, %v2425
        %v2427 = vpop.f32.mrf.mxu0
        %v2428 = vpop.f32.mrf.mxu0
        %v2429 = vadd.f32 0.0, %v2428
        %v2430 = vpop.f32.mrf.mxu0
        %2431 = vmatprep.mubr.bf16.mxu0 0
        %2432 = vmatmul.mubr.bf16.gmra.mxu0 %v2358
        %v2433 = vpop.f32.mrf.mxu0
        %v2434 = vadd.f32 0.0, %v2433
        %v2435 = vpop.f32.mrf.mxu0
        %v2436 = vpop.f32.mrf.mxu0
        %v2437 = vadd.f32 0.0, %v2436
        %v2438 = vpop.f32.mrf.mxu0
        %2439 = vmatprep.mubr.bf16.mxu0 0
        %2440 = vmatmul.mubr.bf16.gmra.mxu0 %v2361
        %v2441 = vpop.f32.mrf.mxu0
        %v2442 = vadd.f32 0.0, %v2441
        %v2443 = vpop.f32.mrf.mxu0
        %v2444 = vpop.f32.mrf.mxu0
        %v2445 = vadd.f32 0.0, %v2444
        %v2446 = vpop.f32.mrf.mxu0
        %2447 = vmatprep.mubr.bf16.mxu0 0
        %2448 = vmatmul.mubr.bf16.gmra.mxu0 %v2364
        %v2449 = vpop.f32.mrf.mxu0
        %v2450 = vadd.f32 0.0, %v2449
        %v2451 = vpop.f32.mrf.mxu0
        %v2452 = vpop.f32.mrf.mxu0
        %v2453 = vadd.f32 0.0, %v2452
        %v2454 = vpop.f32.mrf.mxu0
        %2455 = vmatprep.mubr.bf16.mxu0 0
        %2456 = vmatmul.mubr.bf16.gmra.mxu0 %v2367
        %v2457 = vpop.f32.mrf.mxu0
        %v2458 = vadd.f32 0.0, %v2457
        %v2459 = vpop.f32.mrf.mxu0
        %v2460 = vpop.f32.mrf.mxu0
        %v2461 = vadd.f32 0.0, %v2460
        %v2462 = vpop.f32.mrf.mxu0
        %2463 = vmatprep.mubr.bf16.mxu0 0
        %2464 = vmatmul.mubr.bf16.gmra.mxu0 %v2370
        %v2465 = vpop.f32.mrf.mxu0
        %v2466 = vadd.f32 0.0, %v2465
        %v2467 = vpop.f32.mrf.mxu0
        %v2468 = vpop.f32.mrf.mxu0
        %v2469 = vadd.f32 0.0, %v2468
        %v2470 = vpop.f32.mrf.mxu0
        %2471 = vdwg.mxu0
        %v2472 = vadd.f32 %v2222, %v2410
        %v2473 = vadd.f32 %v2225, %v2413
        %v2474 = vadd.f32 %v2230, %v2418
        %v2475 = vadd.f32 %v2233, %v2421
        %v2476 = vadd.f32 %v2238, %v2426
        %v2477 = vadd.f32 %v2241, %v2429
        %v2478 = vadd.f32 %v2246, %v2434
        %v2479 = vadd.f32 %v2249, %v2437
        %v2480 = vadd.f32 %v2254, %v2442
        %v2481 = vadd.f32 %v2257, %v2445
        %v2482 = vadd.f32 %v2262, %v2450
        %v2483 = vadd.f32 %v2265, %v2453
        %v2484 = vadd.f32 %v2270, %v2458
        %v2485 = vadd.f32 %v2273, %v2461
        %v2486 = vadd.f32 %v2278, %v2466
        %v2487 = vadd.f32 %v2281, %v2469
        %s2488 = smul.addr %s2286, 4
        %s2489 = scalar_lea.vmem %s267, %s2488
        %v2490 = vld [vmem:[%s2489] sm:$0xf]
        %v2491 = vld [vmem:[%s2489 + $0x4] sm:$0xf]
        %v2492 = vld [vmem:[%s2489 + $0x8] sm:$0xf]
        %v2493 = vld [vmem:[%s2489 + $0xc] sm:$0xf]
        %v2494 = vld [vmem:[%s2489 + $0x10] sm:$0xf]
        %v2495 = vld [vmem:[%s2489 + $0x14] sm:$0xf]
        %v2496 = vld [vmem:[%s2489 + $0x18] sm:$0xf]
        %v2497 = vld [vmem:[%s2489 + $0x1c] sm:$0xf]
        %v2498 = vld [vmem:[%s2489 + $0x20] sm:$0xf]
        %v2499 = vld [vmem:[%s2489 + $0x24] sm:$0xf]
        %v2500 = vld [vmem:[%s2489 + $0x28] sm:$0xf]
        %v2501 = vld [vmem:[%s2489 + $0x2c] sm:$0xf]
        %v2502 = vld [vmem:[%s2489 + $0x30] sm:$0xf]
        %v2503 = vld [vmem:[%s2489 + $0x34] sm:$0xf]
        %v2504 = vld [vmem:[%s2489 + $0x38] sm:$0xf]
        %v2505 = vld [vmem:[%s2489 + $0x3c] sm:$0xf]
        %s2506 = scalar_lea.vmem %s3, 22
        %v2507 = vld [vmem:[%s2506] sm:$0x3]
        %v2524 = vunpack.c.l.b16 %v2490
        %v2525 = vunpack.c.l.b16 %v2491
        %v2526 = vunpack.c.l.b16 %v2492
        %v2527 = vunpack.c.l.b16 %v2493
        %v2528 = vunpack.c.l.b16 %v2494
        %v2529 = vunpack.c.l.b16 %v2495
        %v2530 = vunpack.c.l.b16 %v2496
        %v2531 = vunpack.c.l.b16 %v2497
        %v2532 = vunpack.c.l.b16 %v2498
        %v2533 = vunpack.c.l.b16 %v2499
        %v2534 = vunpack.c.l.b16 %v2500
        %v2535 = vunpack.c.l.b16 %v2501
        %v2536 = vunpack.c.l.b16 %v2502
        %v2537 = vunpack.c.l.b16 %v2503
        %v2538 = vunpack.c.l.b16 %v2504
        %v2539 = vunpack.c.l.b16 %v2505
        %v2540 = vpack.c.b16 %v2525, %v2524
        %v2541 = vpack.c.b16 %v2527, %v2526
        %v2542 = vpack.c.b16 %v2529, %v2528
        %v2543 = vpack.c.b16 %v2531, %v2530
        %v2544 = vpack.c.b16 %v2533, %v2532
        %v2545 = vpack.c.b16 %v2535, %v2534
        %v2546 = vpack.c.b16 %v2537, %v2536
        %v2547 = vpack.c.b16 %v2539, %v2538
        %v2549 = vsel %vm359, %v2540, 0
        %v2552 = vsel %vm359, %v2541, 0
        %v2555 = vsel %vm359, %v2542, 0
        %v2558 = vsel %vm359, %v2543, 0
        %v2561 = vsel %vm359, %v2544, 0
        %v2564 = vsel %vm359, %v2545, 0
        %v2567 = vsel %vm359, %v2546, 0
        %v2570 = vsel %vm359, %v2547, 0
        %v2573 = vsel %vm384, %v2507, 0
        %2575 = vmatprep.subr.bf16.mxu0 0
        %2576 = vmatpush1.bf16.msra.mxu0 0
        %2577 = vmatprep.subr.bf16.mxu0 0
        %2578 = vmatpush1.bf16.msra.mxu0 0
        %2579 = vmatprep.subr.bf16.mxu0 0
        %2580 = vmatpush1.bf16.msra.mxu0 0
        %2581 = vmatprep.subr.bf16.mxu0 0
        %2582 = vmatpush1.bf16.msra.mxu0 0
        %2583 = vmatprep.subr.bf16.mxu0 0
        %2584 = vmatpush1.bf16.msra.mxu0 0
        %2585 = vmatprep.subr.bf16.mxu0 0
        %2586 = vmatpush1.bf16.msra.mxu0 0
        %2587 = vmatprep.subr.bf16.mxu0 0
        %2588 = vmatpush1.bf16.msra.mxu0 0
        %2589 = vmatprep.subr.bf16.mxu0 0
        %2590 = vmatpush1.bf16.msra.mxu0 %v2573
        %2591 = vmatprep.subr.bf16.mxu0 0
        %2592 = vmatpush2.bf16.msra.mxu0 0
        %2593 = vmatprep.subr.bf16.mxu0 0
        %2594 = vmatpush2.bf16.msra.mxu0 0
        %2595 = vmatprep.subr.bf16.mxu0 0
        %2596 = vmatpush2.bf16.msra.mxu0 0
        %2597 = vmatprep.subr.bf16.mxu0 0
        %2598 = vmatpush2.bf16.msra.mxu0 0
        %2599 = vmatprep.subr.bf16.mxu0 0
        %2600 = vmatpush2.bf16.msra.mxu0 0
        %2601 = vmatprep.subr.bf16.mxu0 0
        %2602 = vmatpush2.bf16.msra.mxu0 0
        %2603 = vmatprep.subr.bf16.mxu0 0
        %2604 = vmatpush2.bf16.msra.mxu0 0
        %2605 = vmatprep.subr.bf16.mxu0 0
        %2606 = vmatpush2.bf16.msra.mxu0 0
        %2607 = vmatprep.mubr.bf16.mxu0 0
        %2608 = vmatmul.mubr.bf16.gmra.mxu0 %v2549
        %v2609 = vpop.f32.mrf.mxu0
        %v2610 = vadd.f32 0.0, %v2609
        %v2611 = vpop.f32.mrf.mxu0
        %v2612 = vpop.f32.mrf.mxu0
        %v2613 = vadd.f32 0.0, %v2612
        %v2614 = vpop.f32.mrf.mxu0
        %2615 = vmatprep.mubr.bf16.mxu0 0
        %2616 = vmatmul.mubr.bf16.gmra.mxu0 %v2552
        %v2617 = vpop.f32.mrf.mxu0
        %v2618 = vadd.f32 0.0, %v2617
        %v2619 = vpop.f32.mrf.mxu0
        %v2620 = vpop.f32.mrf.mxu0
        %v2621 = vadd.f32 0.0, %v2620
        %v2622 = vpop.f32.mrf.mxu0
        %2623 = vmatprep.mubr.bf16.mxu0 0
        %2624 = vmatmul.mubr.bf16.gmra.mxu0 %v2555
        %v2625 = vpop.f32.mrf.mxu0
        %v2626 = vadd.f32 0.0, %v2625
        %v2627 = vpop.f32.mrf.mxu0
        %v2628 = vpop.f32.mrf.mxu0
        %v2629 = vadd.f32 0.0, %v2628
        %v2630 = vpop.f32.mrf.mxu0
        %2631 = vmatprep.mubr.bf16.mxu0 0
        %2632 = vmatmul.mubr.bf16.gmra.mxu0 %v2558
        %v2633 = vpop.f32.mrf.mxu0
        %v2634 = vadd.f32 0.0, %v2633
        %v2635 = vpop.f32.mrf.mxu0
        %v2636 = vpop.f32.mrf.mxu0
        %v2637 = vadd.f32 0.0, %v2636
        %v2638 = vpop.f32.mrf.mxu0
        %2639 = vmatprep.mubr.bf16.mxu0 0
        %2640 = vmatmul.mubr.bf16.gmra.mxu0 %v2561
        %v2641 = vpop.f32.mrf.mxu0
        %v2642 = vadd.f32 0.0, %v2641
        %v2643 = vpop.f32.mrf.mxu0
        %v2644 = vpop.f32.mrf.mxu0
        %v2645 = vadd.f32 0.0, %v2644
        %v2646 = vpop.f32.mrf.mxu0
        %2647 = vmatprep.mubr.bf16.mxu0 0
        %2648 = vmatmul.mubr.bf16.gmra.mxu0 %v2564
        %v2649 = vpop.f32.mrf.mxu0
        %v2650 = vadd.f32 0.0, %v2649
        %v2651 = vpop.f32.mrf.mxu0
        %v2652 = vpop.f32.mrf.mxu0
        %v2653 = vadd.f32 0.0, %v2652
        %v2654 = vpop.f32.mrf.mxu0
        %2655 = vmatprep.mubr.bf16.mxu0 0
        %2656 = vmatmul.mubr.bf16.gmra.mxu0 %v2567
        %v2657 = vpop.f32.mrf.mxu0
        %v2658 = vadd.f32 0.0, %v2657
        %v2659 = vpop.f32.mrf.mxu0
        %v2660 = vpop.f32.mrf.mxu0
        %v2661 = vadd.f32 0.0, %v2660
        %v2662 = vpop.f32.mrf.mxu0
        %2663 = vmatprep.mubr.bf16.mxu0 0
        %2664 = vmatmul.mubr.bf16.gmra.mxu0 %v2570
        %v2665 = vpop.f32.mrf.mxu0
        %v2666 = vadd.f32 0.0, %v2665
        %v2667 = vpop.f32.mrf.mxu0
        %v2668 = vpop.f32.mrf.mxu0
        %v2669 = vadd.f32 0.0, %v2668
        %v2670 = vpop.f32.mrf.mxu0
        %2671 = vdwg.mxu0
        %v2672 = vadd.f32 %v2472, %v2610
        %v2673 = vadd.f32 %v2473, %v2613
        %v2674 = vadd.f32 %v2474, %v2618
        %v2675 = vadd.f32 %v2475, %v2621
        %v2676 = vadd.f32 %v2476, %v2626
        %v2677 = vadd.f32 %v2477, %v2629
        %v2678 = vadd.f32 %v2478, %v2634
        %v2679 = vadd.f32 %v2479, %v2637
        %v2680 = vadd.f32 %v2480, %v2642
        %v2681 = vadd.f32 %v2481, %v2645
        %v2682 = vadd.f32 %v2482, %v2650
        %v2683 = vadd.f32 %v2483, %v2653
        %v2684 = vadd.f32 %v2484, %v2658
        %v2685 = vadd.f32 %v2485, %v2661
        %v2686 = vadd.f32 %v2486, %v2666
        %v2687 = vadd.f32 %v2487, %v2669
        %v2688 = vadd.f32 %v2672, %v1057
        %v2689 = vadd.f32 %v2673, %v1057
        %v2690 = vadd.f32 %v2674, %v1057
        %v2691 = vadd.f32 %v2675, %v1057
        %v2692 = vadd.f32 %v2676, %v1057
        %v2693 = vadd.f32 %v2677, %v1057
        %v2694 = vadd.f32 %v2678, %v1057
        %v2695 = vadd.f32 %v2679, %v1057
        %v2696 = vadd.f32 %v2680, %v1057
        %v2697 = vadd.f32 %v2681, %v1057
        %v2698 = vadd.f32 %v2682, %v1057
        %v2699 = vadd.f32 %v2683, %v1057
        %v2700 = vadd.f32 %v2684, %v1057
        %v2701 = vadd.f32 %v2685, %v1057
        %v2702 = vadd.f32 %v2686, %v1057
        %v2703 = vadd.f32 %v2687, %v1057
        %v2704 = vmax.f32 %v2688, 0.0
        %v2705 = vmax.f32 %v2689, 0.0
        %v2706 = vmax.f32 %v2690, 0.0
        %v2707 = vmax.f32 %v2691, 0.0
        %v2708 = vmax.f32 %v2692, 0.0
        %v2709 = vmax.f32 %v2693, 0.0
        %v2710 = vmax.f32 %v2694, 0.0
        %v2711 = vmax.f32 %v2695, 0.0
        %v2712 = vmax.f32 %v2696, 0.0
        %v2713 = vmax.f32 %v2697, 0.0
        %v2714 = vmax.f32 %v2698, 0.0
        %v2715 = vmax.f32 %v2699, 0.0
        %v2716 = vmax.f32 %v2700, 0.0
        %v2717 = vmax.f32 %v2701, 0.0
        %v2718 = vmax.f32 %v2702, 0.0
        %v2719 = vmax.f32 %v2703, 0.0
        %s2720 = scalar_lea.vmem %s257, 256 [#allocation2]
        %2721 = vst [vmem:[%s2720] sm:$0xff] %v2704
        %2722 = vst [vmem:[%s2720 + $0x8] sm:$0xff] %v2705
        %2723 = vst [vmem:[%s2720 + $0x10] sm:$0xff] %v2706
        %2724 = vst [vmem:[%s2720 + $0x18] sm:$0xff] %v2707
        %2725 = vst [vmem:[%s2720 + $0x20] sm:$0xff] %v2708
        %2726 = vst [vmem:[%s2720 + $0x28] sm:$0xff] %v2709
        %2727 = vst [vmem:[%s2720 + $0x30] sm:$0xff] %v2710
        %2728 = vst [vmem:[%s2720 + $0x38] sm:$0xff] %v2711
        %2729 = vst [vmem:[%s2720 + $0x40] sm:$0xff] %v2712
        %2730 = vst [vmem:[%s2720 + $0x48] sm:$0xff] %v2713
        %2731 = vst [vmem:[%s2720 + $0x50] sm:$0xff] %v2714
        %2732 = vst [vmem:[%s2720 + $0x58] sm:$0xff] %v2715
        %2733 = vst [vmem:[%s2720 + $0x60] sm:$0xff] %v2716
        %2734 = vst [vmem:[%s2720 + $0x68] sm:$0xff] %v2717
        %2735 = vst [vmem:[%s2720 + $0x70] sm:$0xff] %v2718
        %2736 = vst [vmem:[%s2720 + $0x78] sm:$0xff] %v2719
        %v2737 = vld [vmem:[%s854] sm:$0xf]
        %v2738 = vld [vmem:[%s854 + $0x4] sm:$0xf]
        %v2739 = vld [vmem:[%s854 + $0x8] sm:$0xf]
        %v2740 = vld [vmem:[%s854 + $0xc] sm:$0xf]
        %v2741 = vld [vmem:[%s854 + $0x10] sm:$0xf]
        %v2742 = vld [vmem:[%s854 + $0x14] sm:$0xf]
        %v2743 = vld [vmem:[%s854 + $0x18] sm:$0xf]
        %v2744 = vld [vmem:[%s854 + $0x1c] sm:$0xf]
        %v2745 = vld [vmem:[%s854 + $0x20] sm:$0xf]
        %v2746 = vld [vmem:[%s854 + $0x24] sm:$0xf]
        %v2747 = vld [vmem:[%s854 + $0x28] sm:$0xf]
        %v2748 = vld [vmem:[%s854 + $0x2c] sm:$0xf]
        %v2749 = vld [vmem:[%s854 + $0x30] sm:$0xf]
        %v2750 = vld [vmem:[%s854 + $0x34] sm:$0xf]
        %v2751 = vld [vmem:[%s854 + $0x38] sm:$0xf]
        %v2752 = vld [vmem:[%s854 + $0x3c] sm:$0xf]
        %s2753 = scalar_lea.vmem %s3, 24
        %v2754 = vld [vmem:[%s2753] sm:$0x3]
        %v2755 = vld [vmem:[%s1672] sm:$0xf]
        %v2756 = vld [vmem:[%s1672 + $0x4] sm:$0xf]
        %v2757 = vld [vmem:[%s1672 + $0x8] sm:$0xf]
        %v2758 = vld [vmem:[%s1672 + $0xc] sm:$0xf]
        %v2759 = vld [vmem:[%s1672 + $0x10] sm:$0xf]
        %v2760 = vld [vmem:[%s1672 + $0x14] sm:$0xf]
        %v2761 = vld [vmem:[%s1672 + $0x18] sm:$0xf]
        %v2762 = vld [vmem:[%s1672 + $0x1c] sm:$0xf]
        %v2763 = vld [vmem:[%s1672 + $0x20] sm:$0xf]
        %v2764 = vld [vmem:[%s1672 + $0x24] sm:$0xf]
        %v2765 = vld [vmem:[%s1672 + $0x28] sm:$0xf]
        %v2766 = vld [vmem:[%s1672 + $0x2c] sm:$0xf]
        %v2767 = vld [vmem:[%s1672 + $0x30] sm:$0xf]
        %v2768 = vld [vmem:[%s1672 + $0x34] sm:$0xf]
        %v2769 = vld [vmem:[%s1672 + $0x38] sm:$0xf]
        %v2770 = vld [vmem:[%s1672 + $0x3c] sm:$0xf]
        %s2771 = scalar_lea.vmem %s3, 26
        %v2772 = vld [vmem:[%s2771] sm:$0x3]
        %v2789 = vunpack.c.l.b16 %v2755
        %v2790 = vunpack.c.l.b16 %v2756
        %v2791 = vunpack.c.l.b16 %v2757
        %v2792 = vunpack.c.l.b16 %v2758
        %v2793 = vunpack.c.l.b16 %v2759
        %v2794 = vunpack.c.l.b16 %v2760
        %v2795 = vunpack.c.l.b16 %v2761
        %v2796 = vunpack.c.l.b16 %v2762
        %v2797 = vunpack.c.l.b16 %v2763
        %v2798 = vunpack.c.l.b16 %v2764
        %v2799 = vunpack.c.l.b16 %v2765
        %v2800 = vunpack.c.l.b16 %v2766
        %v2801 = vunpack.c.l.b16 %v2767
        %v2802 = vunpack.c.l.b16 %v2768
        %v2803 = vunpack.c.l.b16 %v2769
        %v2804 = vunpack.c.l.b16 %v2770
        %v2805 = vpack.c.b16 %v2790, %v2789
        %v2806 = vpack.c.b16 %v2792, %v2791
        %v2807 = vpack.c.b16 %v2794, %v2793
        %v2808 = vpack.c.b16 %v2796, %v2795
        %v2809 = vpack.c.b16 %v2798, %v2797
        %v2810 = vpack.c.b16 %v2800, %v2799
        %v2811 = vpack.c.b16 %v2802, %v2801
        %v2812 = vpack.c.b16 %v2804, %v2803
        %v2814 = vsel %vm359, %v2805, 0
        %v2817 = vsel %vm359, %v2806, 0
        %v2820 = vsel %vm359, %v2807, 0
        %v2823 = vsel %vm359, %v2808, 0
        %v2826 = vsel %vm359, %v2809, 0
        %v2829 = vsel %vm359, %v2810, 0
        %v2832 = vsel %vm359, %v2811, 0
        %v2835 = vsel %vm359, %v2812, 0
        %v2838 = vsel %vm384, %v2772, 0
        %2840 = vmatprep.subr.bf16.mxu0 0
        %2841 = vmatpush1.bf16.msra.mxu0 0
        %2842 = vmatprep.subr.bf16.mxu0 0
        %2843 = vmatpush1.bf16.msra.mxu0 0
        %2844 = vmatprep.subr.bf16.mxu0 0
        %2845 = vmatpush1.bf16.msra.mxu0 0
        %2846 = vmatprep.subr.bf16.mxu0 0
        %2847 = vmatpush1.bf16.msra.mxu0 0
        %2848 = vmatprep.subr.bf16.mxu0 0
        %2849 = vmatpush1.bf16.msra.mxu0 0
        %2850 = vmatprep.subr.bf16.mxu0 0
        %2851 = vmatpush1.bf16.msra.mxu0 0
        %2852 = vmatprep.subr.bf16.mxu0 0
        %2853 = vmatpush1.bf16.msra.mxu0 0
        %2854 = vmatprep.subr.bf16.mxu0 0
        %2855 = vmatpush1.bf16.msra.mxu0 %v2838
        %2856 = vmatprep.subr.bf16.mxu0 0
        %2857 = vmatpush2.bf16.msra.mxu0 0
        %2858 = vmatprep.subr.bf16.mxu0 0
        %2859 = vmatpush2.bf16.msra.mxu0 0
        %2860 = vmatprep.subr.bf16.mxu0 0
        %2861 = vmatpush2.bf16.msra.mxu0 0
        %2862 = vmatprep.subr.bf16.mxu0 0
        %2863 = vmatpush2.bf16.msra.mxu0 0
        %2864 = vmatprep.subr.bf16.mxu0 0
        %2865 = vmatpush2.bf16.msra.mxu0 0
        %2866 = vmatprep.subr.bf16.mxu0 0
        %2867 = vmatpush2.bf16.msra.mxu0 0
        %2868 = vmatprep.subr.bf16.mxu0 0
        %2869 = vmatpush2.bf16.msra.mxu0 0
        %2870 = vmatprep.subr.bf16.mxu0 0
        %2871 = vmatpush2.bf16.msra.mxu0 0
        %2872 = vmatprep.mubr.bf16.mxu0 0
        %2873 = vmatmul.mubr.bf16.gmra.mxu0 %v2814
        %v2874 = vpop.f32.mrf.mxu0
        %v2875 = vadd.f32 0.0, %v2874
        %v2876 = vpop.f32.mrf.mxu0
        %v2877 = vpop.f32.mrf.mxu0
        %v2878 = vadd.f32 0.0, %v2877
        %v2879 = vpop.f32.mrf.mxu0
        %2880 = vmatprep.mubr.bf16.mxu0 0
        %2881 = vmatmul.mubr.bf16.gmra.mxu0 %v2817
        %v2882 = vpop.f32.mrf.mxu0
        %v2883 = vadd.f32 0.0, %v2882
        %v2884 = vpop.f32.mrf.mxu0
        %v2885 = vpop.f32.mrf.mxu0
        %v2886 = vadd.f32 0.0, %v2885
        %v2887 = vpop.f32.mrf.mxu0
        %2888 = vmatprep.mubr.bf16.mxu0 0
        %2889 = vmatmul.mubr.bf16.gmra.mxu0 %v2820
        %v2890 = vpop.f32.mrf.mxu0
        %v2891 = vadd.f32 0.0, %v2890
        %v2892 = vpop.f32.mrf.mxu0
        %v2893 = vpop.f32.mrf.mxu0
        %v2894 = vadd.f32 0.0, %v2893
        %v2895 = vpop.f32.mrf.mxu0
        %2896 = vmatprep.mubr.bf16.mxu0 0
        %2897 = vmatmul.mubr.bf16.gmra.mxu0 %v2823
        %v2898 = vpop.f32.mrf.mxu0
        %v2899 = vadd.f32 0.0, %v2898
        %v2900 = vpop.f32.mrf.mxu0
        %v2901 = vpop.f32.mrf.mxu0
        %v2902 = vadd.f32 0.0, %v2901
        %v2903 = vpop.f32.mrf.mxu0
        %2904 = vmatprep.mubr.bf16.mxu0 0
        %2905 = vmatmul.mubr.bf16.gmra.mxu0 %v2826
        %v2906 = vpop.f32.mrf.mxu0
        %v2907 = vadd.f32 0.0, %v2906
        %v2908 = vpop.f32.mrf.mxu0
        %v2909 = vpop.f32.mrf.mxu0
        %v2910 = vadd.f32 0.0, %v2909
        %v2911 = vpop.f32.mrf.mxu0
        %2912 = vmatprep.mubr.bf16.mxu0 0
        %2913 = vmatmul.mubr.bf16.gmra.mxu0 %v2829
        %v2914 = vpop.f32.mrf.mxu0
        %v2915 = vadd.f32 0.0, %v2914
        %v2916 = vpop.f32.mrf.mxu0
        %v2917 = vpop.f32.mrf.mxu0
        %v2918 = vadd.f32 0.0, %v2917
        %v2919 = vpop.f32.mrf.mxu0
        %2920 = vmatprep.mubr.bf16.mxu0 0
        %2921 = vmatmul.mubr.bf16.gmra.mxu0 %v2832
        %v2922 = vpop.f32.mrf.mxu0
        %v2923 = vadd.f32 0.0, %v2922
        %v2924 = vpop.f32.mrf.mxu0
        %v2925 = vpop.f32.mrf.mxu0
        %v2926 = vadd.f32 0.0, %v2925
        %v2927 = vpop.f32.mrf.mxu0
        %2928 = vmatprep.mubr.bf16.mxu0 0
        %2929 = vmatmul.mubr.bf16.gmra.mxu0 %v2835
        %v2930 = vpop.f32.mrf.mxu0
        %v2931 = vadd.f32 0.0, %v2930
        %v2932 = vpop.f32.mrf.mxu0
        %v2933 = vpop.f32.mrf.mxu0
        %v2934 = vadd.f32 0.0, %v2933
        %v2935 = vpop.f32.mrf.mxu0
        %2936 = vdwg.mxu0
        %v2953 = vunpack.c.l.b16 %v2737
        %v2954 = vunpack.c.l.b16 %v2738
        %v2955 = vunpack.c.l.b16 %v2739
        %v2956 = vunpack.c.l.b16 %v2740
        %v2957 = vunpack.c.l.b16 %v2741
        %v2958 = vunpack.c.l.b16 %v2742
        %v2959 = vunpack.c.l.b16 %v2743
        %v2960 = vunpack.c.l.b16 %v2744
        %v2961 = vunpack.c.l.b16 %v2745
        %v2962 = vunpack.c.l.b16 %v2746
        %v2963 = vunpack.c.l.b16 %v2747
        %v2964 = vunpack.c.l.b16 %v2748
        %v2965 = vunpack.c.l.b16 %v2749
        %v2966 = vunpack.c.l.b16 %v2750
        %v2967 = vunpack.c.l.b16 %v2751
        %v2968 = vunpack.c.l.b16 %v2752
        %v2969 = vpack.c.b16 %v2954, %v2953
        %v2970 = vpack.c.b16 %v2956, %v2955
        %v2971 = vpack.c.b16 %v2958, %v2957
        %v2972 = vpack.c.b16 %v2960, %v2959
        %v2973 = vpack.c.b16 %v2962, %v2961
        %v2974 = vpack.c.b16 %v2964, %v2963
        %v2975 = vpack.c.b16 %v2966, %v2965
        %v2976 = vpack.c.b16 %v2968, %v2967
        %v2978 = vsel %vm359, %v2969, 0
        %v2981 = vsel %vm359, %v2970, 0
        %v2984 = vsel %vm359, %v2971, 0
        %v2987 = vsel %vm359, %v2972, 0
        %v2990 = vsel %vm359, %v2973, 0
        %v2993 = vsel %vm359, %v2974, 0
        %v2996 = vsel %vm359, %v2975, 0
        %v2999 = vsel %vm359, %v2976, 0
        %v3002 = vsel %vm384, %v2754, 0
        %3004 = vmatprep.subr.bf16.mxu0 0
        %3005 = vmatpush1.bf16.msra.mxu0 0
        %3006 = vmatprep.subr.bf16.mxu0 0
        %3007 = vmatpush1.bf16.msra.mxu0 0
        %3008 = vmatprep.subr.bf16.mxu0 0
        %3009 = vmatpush1.bf16.msra.mxu0 0
        %3010 = vmatprep.subr.bf16.mxu0 0
        %3011 = vmatpush1.bf16.msra.mxu0 0
        %3012 = vmatprep.subr.bf16.mxu0 0
        %3013 = vmatpush1.bf16.msra.mxu0 0
        %3014 = vmatprep.subr.bf16.mxu0 0
        %3015 = vmatpush1.bf16.msra.mxu0 0
        %3016 = vmatprep.subr.bf16.mxu0 0
        %3017 = vmatpush1.bf16.msra.mxu0 0
        %3018 = vmatprep.subr.bf16.mxu0 0
        %3019 = vmatpush1.bf16.msra.mxu0 %v3002
        %3020 = vmatprep.subr.bf16.mxu0 0
        %3021 = vmatpush2.bf16.msra.mxu0 0
        %3022 = vmatprep.subr.bf16.mxu0 0
        %3023 = vmatpush2.bf16.msra.mxu0 0
        %3024 = vmatprep.subr.bf16.mxu0 0
        %3025 = vmatpush2.bf16.msra.mxu0 0
        %3026 = vmatprep.subr.bf16.mxu0 0
        %3027 = vmatpush2.bf16.msra.mxu0 0
        %3028 = vmatprep.subr.bf16.mxu0 0
        %3029 = vmatpush2.bf16.msra.mxu0 0
        %3030 = vmatprep.subr.bf16.mxu0 0
        %3031 = vmatpush2.bf16.msra.mxu0 0
        %3032 = vmatprep.subr.bf16.mxu0 0
        %3033 = vmatpush2.bf16.msra.mxu0 0
        %3034 = vmatprep.subr.bf16.mxu0 0
        %3035 = vmatpush2.bf16.msra.mxu0 0
        %3036 = vmatprep.mubr.bf16.mxu0 0
        %3037 = vmatmul.mubr.bf16.gmra.mxu0 %v2978
        %v3038 = vpop.f32.mrf.mxu0
        %v3039 = vadd.f32 %v2875, %v3038
        %v3040 = vpop.f32.mrf.mxu0
        %v3041 = vpop.f32.mrf.mxu0
        %v3042 = vadd.f32 %v2878, %v3041
        %v3043 = vpop.f32.mrf.mxu0
        %3044 = vmatprep.mubr.bf16.mxu0 0
        %3045 = vmatmul.mubr.bf16.gmra.mxu0 %v2981
        %v3046 = vpop.f32.mrf.mxu0
        %v3047 = vadd.f32 %v2883, %v3046
        %v3048 = vpop.f32.mrf.mxu0
        %v3049 = vpop.f32.mrf.mxu0
        %v3050 = vadd.f32 %v2886, %v3049
        %v3051 = vpop.f32.mrf.mxu0
        %3052 = vmatprep.mubr.bf16.mxu0 0
        %3053 = vmatmul.mubr.bf16.gmra.mxu0 %v2984
        %v3054 = vpop.f32.mrf.mxu0
        %v3055 = vadd.f32 %v2891, %v3054
        %v3056 = vpop.f32.mrf.mxu0
        %v3057 = vpop.f32.mrf.mxu0
        %v3058 = vadd.f32 %v2894, %v3057
        %v3059 = vpop.f32.mrf.mxu0
        %3060 = vmatprep.mubr.bf16.mxu0 0
        %3061 = vmatmul.mubr.bf16.gmra.mxu0 %v2987
        %v3062 = vpop.f32.mrf.mxu0
        %v3063 = vadd.f32 %v2899, %v3062
        %v3064 = vpop.f32.mrf.mxu0
        %v3065 = vpop.f32.mrf.mxu0
        %v3066 = vadd.f32 %v2902, %v3065
        %v3067 = vpop.f32.mrf.mxu0
        %3068 = vmatprep.mubr.bf16.mxu0 0
        %3069 = vmatmul.mubr.bf16.gmra.mxu0 %v2990
        %v3070 = vpop.f32.mrf.mxu0
        %v3071 = vadd.f32 %v2907, %v3070
        %v3072 = vpop.f32.mrf.mxu0
        %v3073 = vpop.f32.mrf.mxu0
        %v3074 = vadd.f32 %v2910, %v3073
        %v3075 = vpop.f32.mrf.mxu0
        %3076 = vmatprep.mubr.bf16.mxu0 0
        %3077 = vmatmul.mubr.bf16.gmra.mxu0 %v2993
        %v3078 = vpop.f32.mrf.mxu0
        %v3079 = vadd.f32 %v2915, %v3078
        %v3080 = vpop.f32.mrf.mxu0
        %v3081 = vpop.f32.mrf.mxu0
        %v3082 = vadd.f32 %v2918, %v3081
        %v3083 = vpop.f32.mrf.mxu0
        %3084 = vmatprep.mubr.bf16.mxu0 0
        %3085 = vmatmul.mubr.bf16.gmra.mxu0 %v2996
        %v3086 = vpop.f32.mrf.mxu0
        %v3087 = vadd.f32 %v2923, %v3086
        %v3088 = vpop.f32.mrf.mxu0
        %v3089 = vpop.f32.mrf.mxu0
        %v3090 = vadd.f32 %v2926, %v3089
        %v3091 = vpop.f32.mrf.mxu0
        %3092 = vmatprep.mubr.bf16.mxu0 0
        %3093 = vmatmul.mubr.bf16.gmra.mxu0 %v2999
        %v3094 = vpop.f32.mrf.mxu0
        %v3095 = vadd.f32 %v2931, %v3094
        %v3096 = vpop.f32.mrf.mxu0
        %v3097 = vpop.f32.mrf.mxu0
        %v3098 = vadd.f32 %v2934, %v3097
        %v3099 = vpop.f32.mrf.mxu0
        %3100 = vdwg.mxu0
        %v3101 = vld [vmem:[%s2489] sm:$0xf]
        %v3102 = vld [vmem:[%s2489 + $0x4] sm:$0xf]
        %v3103 = vld [vmem:[%s2489 + $0x8] sm:$0xf]
        %v3104 = vld [vmem:[%s2489 + $0xc] sm:$0xf]
        %v3105 = vld [vmem:[%s2489 + $0x10] sm:$0xf]
        %v3106 = vld [vmem:[%s2489 + $0x14] sm:$0xf]
        %v3107 = vld [vmem:[%s2489 + $0x18] sm:$0xf]
        %v3108 = vld [vmem:[%s2489 + $0x1c] sm:$0xf]
        %v3109 = vld [vmem:[%s2489 + $0x20] sm:$0xf]
        %v3110 = vld [vmem:[%s2489 + $0x24] sm:$0xf]
        %v3111 = vld [vmem:[%s2489 + $0x28] sm:$0xf]
        %v3112 = vld [vmem:[%s2489 + $0x2c] sm:$0xf]
        %v3113 = vld [vmem:[%s2489 + $0x30] sm:$0xf]
        %v3114 = vld [vmem:[%s2489 + $0x34] sm:$0xf]
        %v3115 = vld [vmem:[%s2489 + $0x38] sm:$0xf]
        %v3116 = vld [vmem:[%s2489 + $0x3c] sm:$0xf]
        %s3117 = scalar_lea.vmem %s3, 28
        %v3118 = vld [vmem:[%s3117] sm:$0x3]
        %v3135 = vunpack.c.l.b16 %v3101
        %v3136 = vunpack.c.l.b16 %v3102
        %v3137 = vunpack.c.l.b16 %v3103
        %v3138 = vunpack.c.l.b16 %v3104
        %v3139 = vunpack.c.l.b16 %v3105
        %v3140 = vunpack.c.l.b16 %v3106
        %v3141 = vunpack.c.l.b16 %v3107
        %v3142 = vunpack.c.l.b16 %v3108
        %v3143 = vunpack.c.l.b16 %v3109
        %v3144 = vunpack.c.l.b16 %v3110
        %v3145 = vunpack.c.l.b16 %v3111
        %v3146 = vunpack.c.l.b16 %v3112
        %v3147 = vunpack.c.l.b16 %v3113
        %v3148 = vunpack.c.l.b16 %v3114
        %v3149 = vunpack.c.l.b16 %v3115
        %v3150 = vunpack.c.l.b16 %v3116
        %v3151 = vpack.c.b16 %v3136, %v3135
        %v3152 = vpack.c.b16 %v3138, %v3137
        %v3153 = vpack.c.b16 %v3140, %v3139
        %v3154 = vpack.c.b16 %v3142, %v3141
        %v3155 = vpack.c.b16 %v3144, %v3143
        %v3156 = vpack.c.b16 %v3146, %v3145
        %v3157 = vpack.c.b16 %v3148, %v3147
        %v3158 = vpack.c.b16 %v3150, %v3149
        %v3160 = vsel %vm359, %v3151, 0
        %v3163 = vsel %vm359, %v3152, 0
        %v3166 = vsel %vm359, %v3153, 0
        %v3169 = vsel %vm359, %v3154, 0
        %v3172 = vsel %vm359, %v3155, 0
        %v3175 = vsel %vm359, %v3156, 0
        %v3178 = vsel %vm359, %v3157, 0
        %v3181 = vsel %vm359, %v3158, 0
        %v3184 = vsel %vm384, %v3118, 0
        %3186 = vmatprep.subr.bf16.mxu0 0
        %3187 = vmatpush1.bf16.msra.mxu0 0
        %3188 = vmatprep.subr.bf16.mxu0 0
        %3189 = vmatpush1.bf16.msra.mxu0 0
        %3190 = vmatprep.subr.bf16.mxu0 0
        %3191 = vmatpush1.bf16.msra.mxu0 0
        %3192 = vmatprep.subr.bf16.mxu0 0
        %3193 = vmatpush1.bf16.msra.mxu0 0
        %3194 = vmatprep.subr.bf16.mxu0 0
        %3195 = vmatpush1.bf16.msra.mxu0 0
        %3196 = vmatprep.subr.bf16.mxu0 0
        %3197 = vmatpush1.bf16.msra.mxu0 0
        %3198 = vmatprep.subr.bf16.mxu0 0
        %3199 = vmatpush1.bf16.msra.mxu0 0
        %3200 = vmatprep.subr.bf16.mxu0 0
        %3201 = vmatpush1.bf16.msra.mxu0 %v3184
        %3202 = vmatprep.subr.bf16.mxu0 0
        %3203 = vmatpush2.bf16.msra.mxu0 0
        %3204 = vmatprep.subr.bf16.mxu0 0
        %3205 = vmatpush2.bf16.msra.mxu0 0
        %3206 = vmatprep.subr.bf16.mxu0 0
        %3207 = vmatpush2.bf16.msra.mxu0 0
        %3208 = vmatprep.subr.bf16.mxu0 0
        %3209 = vmatpush2.bf16.msra.mxu0 0
        %3210 = vmatprep.subr.bf16.mxu0 0
        %3211 = vmatpush2.bf16.msra.mxu0 0
        %3212 = vmatprep.subr.bf16.mxu0 0
        %3213 = vmatpush2.bf16.msra.mxu0 0
        %3214 = vmatprep.subr.bf16.mxu0 0
        %3215 = vmatpush2.bf16.msra.mxu0 0
        %3216 = vmatprep.subr.bf16.mxu0 0
        %3217 = vmatpush2.bf16.msra.mxu0 0
        %3218 = vmatprep.mubr.bf16.mxu0 0
        %3219 = vmatmul.mubr.bf16.gmra.mxu0 %v3160
        %v3220 = vpop.f32.mrf.mxu0
        %v3221 = vadd.f32 0.0, %v3220
        %v3222 = vpop.f32.mrf.mxu0
        %v3223 = vpop.f32.mrf.mxu0
        %v3224 = vadd.f32 0.0, %v3223
        %v3225 = vpop.f32.mrf.mxu0
        %3226 = vmatprep.mubr.bf16.mxu0 0
        %3227 = vmatmul.mubr.bf16.gmra.mxu0 %v3163
        %v3228 = vpop.f32.mrf.mxu0
        %v3229 = vadd.f32 0.0, %v3228
        %v3230 = vpop.f32.mrf.mxu0
        %v3231 = vpop.f32.mrf.mxu0
        %v3232 = vadd.f32 0.0, %v3231
        %v3233 = vpop.f32.mrf.mxu0
        %3234 = vmatprep.mubr.bf16.mxu0 0
        %3235 = vmatmul.mubr.bf16.gmra.mxu0 %v3166
        %v3236 = vpop.f32.mrf.mxu0
        %v3237 = vadd.f32 0.0, %v3236
        %v3238 = vpop.f32.mrf.mxu0
        %v3239 = vpop.f32.mrf.mxu0
        %v3240 = vadd.f32 0.0, %v3239
        %v3241 = vpop.f32.mrf.mxu0
        %3242 = vmatprep.mubr.bf16.mxu0 0
        %3243 = vmatmul.mubr.bf16.gmra.mxu0 %v3169
        %v3244 = vpop.f32.mrf.mxu0
        %v3245 = vadd.f32 0.0, %v3244
        %v3246 = vpop.f32.mrf.mxu0
        %v3247 = vpop.f32.mrf.mxu0
        %v3248 = vadd.f32 0.0, %v3247
        %v3249 = vpop.f32.mrf.mxu0
        %3250 = vmatprep.mubr.bf16.mxu0 0
        %3251 = vmatmul.mubr.bf16.gmra.mxu0 %v3172
        %v3252 = vpop.f32.mrf.mxu0
        %v3253 = vadd.f32 0.0, %v3252
        %v3254 = vpop.f32.mrf.mxu0
        %v3255 = vpop.f32.mrf.mxu0
        %v3256 = vadd.f32 0.0, %v3255
        %v3257 = vpop.f32.mrf.mxu0
        %3258 = vmatprep.mubr.bf16.mxu0 0
        %3259 = vmatmul.mubr.bf16.gmra.mxu0 %v3175
        %v3260 = vpop.f32.mrf.mxu0
        %v3261 = vadd.f32 0.0, %v3260
        %v3262 = vpop.f32.mrf.mxu0
        %v3263 = vpop.f32.mrf.mxu0
        %v3264 = vadd.f32 0.0, %v3263
        %v3265 = vpop.f32.mrf.mxu0
        %3266 = vmatprep.mubr.bf16.mxu0 0
        %3267 = vmatmul.mubr.bf16.gmra.mxu0 %v3178
        %v3268 = vpop.f32.mrf.mxu0
        %v3269 = vadd.f32 0.0, %v3268
        %v3270 = vpop.f32.mrf.mxu0
        %v3271 = vpop.f32.mrf.mxu0
        %v3272 = vadd.f32 0.0, %v3271
        %v3273 = vpop.f32.mrf.mxu0
        %3274 = vmatprep.mubr.bf16.mxu0 0
        %3275 = vmatmul.mubr.bf16.gmra.mxu0 %v3181
        %v3276 = vpop.f32.mrf.mxu0
        %v3277 = vadd.f32 0.0, %v3276
        %v3278 = vpop.f32.mrf.mxu0
        %v3279 = vpop.f32.mrf.mxu0
        %v3280 = vadd.f32 0.0, %v3279
        %v3281 = vpop.f32.mrf.mxu0
        %3282 = vdwg.mxu0
        %v3283 = vadd.f32 %v3039, %v3221
        %v3284 = vadd.f32 %v3042, %v3224
        %v3285 = vadd.f32 %v3047, %v3229
        %v3286 = vadd.f32 %v3050, %v3232
        %v3287 = vadd.f32 %v3055, %v3237
        %v3288 = vadd.f32 %v3058, %v3240
        %v3289 = vadd.f32 %v3063, %v3245
        %v3290 = vadd.f32 %v3066, %v3248
        %v3291 = vadd.f32 %v3071, %v3253
        %v3292 = vadd.f32 %v3074, %v3256
        %v3293 = vadd.f32 %v3079, %v3261
        %v3294 = vadd.f32 %v3082, %v3264
        %v3295 = vadd.f32 %v3087, %v3269
        %v3296 = vadd.f32 %v3090, %v3272
        %v3297 = vadd.f32 %v3095, %v3277
        %v3298 = vadd.f32 %v3098, %v3280
        %s3299 = smul.addr %s2286, 4
        %s3300 = scalar_lea.vmem %s272, %s3299
        %v3301 = vld [vmem:[%s3300] sm:$0xf]
        %v3302 = vld [vmem:[%s3300 + $0x4] sm:$0xf]
        %v3303 = vld [vmem:[%s3300 + $0x8] sm:$0xf]
        %v3304 = vld [vmem:[%s3300 + $0xc] sm:$0xf]
        %v3305 = vld [vmem:[%s3300 + $0x10] sm:$0xf]
        %v3306 = vld [vmem:[%s3300 + $0x14] sm:$0xf]
        %v3307 = vld [vmem:[%s3300 + $0x18] sm:$0xf]
        %v3308 = vld [vmem:[%s3300 + $0x1c] sm:$0xf]
        %v3309 = vld [vmem:[%s3300 + $0x20] sm:$0xf]
        %v3310 = vld [vmem:[%s3300 + $0x24] sm:$0xf]
        %v3311 = vld [vmem:[%s3300 + $0x28] sm:$0xf]
        %v3312 = vld [vmem:[%s3300 + $0x2c] sm:$0xf]
        %v3313 = vld [vmem:[%s3300 + $0x30] sm:$0xf]
        %v3314 = vld [vmem:[%s3300 + $0x34] sm:$0xf]
        %v3315 = vld [vmem:[%s3300 + $0x38] sm:$0xf]
        %v3316 = vld [vmem:[%s3300 + $0x3c] sm:$0xf]
        %s3317 = scalar_lea.vmem %s3, 30
        %v3318 = vld [vmem:[%s3317] sm:$0x3]
        %v3335 = vunpack.c.l.b16 %v3301
        %v3336 = vunpack.c.l.b16 %v3302
        %v3337 = vunpack.c.l.b16 %v3303
        %v3338 = vunpack.c.l.b16 %v3304
        %v3339 = vunpack.c.l.b16 %v3305
        %v3340 = vunpack.c.l.b16 %v3306
        %v3341 = vunpack.c.l.b16 %v3307
        %v3342 = vunpack.c.l.b16 %v3308
        %v3343 = vunpack.c.l.b16 %v3309
        %v3344 = vunpack.c.l.b16 %v3310
        %v3345 = vunpack.c.l.b16 %v3311
        %v3346 = vunpack.c.l.b16 %v3312
        %v3347 = vunpack.c.l.b16 %v3313
        %v3348 = vunpack.c.l.b16 %v3314
        %v3349 = vunpack.c.l.b16 %v3315
        %v3350 = vunpack.c.l.b16 %v3316
        %v3351 = vpack.c.b16 %v3336, %v3335
        %v3352 = vpack.c.b16 %v3338, %v3337
        %v3353 = vpack.c.b16 %v3340, %v3339
        %v3354 = vpack.c.b16 %v3342, %v3341
        %v3355 = vpack.c.b16 %v3344, %v3343
        %v3356 = vpack.c.b16 %v3346, %v3345
        %v3357 = vpack.c.b16 %v3348, %v3347
        %v3358 = vpack.c.b16 %v3350, %v3349
        %v3360 = vsel %vm359, %v3351, 0
        %v3363 = vsel %vm359, %v3352, 0
        %v3366 = vsel %vm359, %v3353, 0
        %v3369 = vsel %vm359, %v3354, 0
        %v3372 = vsel %vm359, %v3355, 0
        %v3375 = vsel %vm359, %v3356, 0
        %v3378 = vsel %vm359, %v3357, 0
        %v3381 = vsel %vm359, %v3358, 0
        %v3384 = vsel %vm384, %v3318, 0
        %3386 = vmatprep.subr.bf16.mxu0 0
        %3387 = vmatpush1.bf16.msra.mxu0 0
        %3388 = vmatprep.subr.bf16.mxu0 0
        %3389 = vmatpush1.bf16.msra.mxu0 0
        %3390 = vmatprep.subr.bf16.mxu0 0
        %3391 = vmatpush1.bf16.msra.mxu0 0
        %3392 = vmatprep.subr.bf16.mxu0 0
        %3393 = vmatpush1.bf16.msra.mxu0 0
        %3394 = vmatprep.subr.bf16.mxu0 0
        %3395 = vmatpush1.bf16.msra.mxu0 0
        %3396 = vmatprep.subr.bf16.mxu0 0
        %3397 = vmatpush1.bf16.msra.mxu0 0
        %3398 = vmatprep.subr.bf16.mxu0 0
        %3399 = vmatpush1.bf16.msra.mxu0 0
        %3400 = vmatprep.subr.bf16.mxu0 0
        %3401 = vmatpush1.bf16.msra.mxu0 %v3384
        %3402 = vmatprep.subr.bf16.mxu0 0
        %3403 = vmatpush2.bf16.msra.mxu0 0
        %3404 = vmatprep.subr.bf16.mxu0 0
        %3405 = vmatpush2.bf16.msra.mxu0 0
        %3406 = vmatprep.subr.bf16.mxu0 0
        %3407 = vmatpush2.bf16.msra.mxu0 0
        %3408 = vmatprep.subr.bf16.mxu0 0
        %3409 = vmatpush2.bf16.msra.mxu0 0
        %3410 = vmatprep.subr.bf16.mxu0 0
        %3411 = vmatpush2.bf16.msra.mxu0 0
        %3412 = vmatprep.subr.bf16.mxu0 0
        %3413 = vmatpush2.bf16.msra.mxu0 0
        %3414 = vmatprep.subr.bf16.mxu0 0
        %3415 = vmatpush2.bf16.msra.mxu0 0
        %3416 = vmatprep.subr.bf16.mxu0 0
        %3417 = vmatpush2.bf16.msra.mxu0 0
        %3418 = vmatprep.mubr.bf16.mxu0 0
        %3419 = vmatmul.mubr.bf16.gmra.mxu0 %v3360
        %v3420 = vpop.f32.mrf.mxu0
        %v3421 = vadd.f32 0.0, %v3420
        %v3422 = vpop.f32.mrf.mxu0
        %v3423 = vpop.f32.mrf.mxu0
        %v3424 = vadd.f32 0.0, %v3423
        %v3425 = vpop.f32.mrf.mxu0
        %3426 = vmatprep.mubr.bf16.mxu0 0
        %3427 = vmatmul.mubr.bf16.gmra.mxu0 %v3363
        %v3428 = vpop.f32.mrf.mxu0
        %v3429 = vadd.f32 0.0, %v3428
        %v3430 = vpop.f32.mrf.mxu0
        %v3431 = vpop.f32.mrf.mxu0
        %v3432 = vadd.f32 0.0, %v3431
        %v3433 = vpop.f32.mrf.mxu0
        %3434 = vmatprep.mubr.bf16.mxu0 0
        %3435 = vmatmul.mubr.bf16.gmra.mxu0 %v3366
        %v3436 = vpop.f32.mrf.mxu0
        %v3437 = vadd.f32 0.0, %v3436
        %v3438 = vpop.f32.mrf.mxu0
        %v3439 = vpop.f32.mrf.mxu0
        %v3440 = vadd.f32 0.0, %v3439
        %v3441 = vpop.f32.mrf.mxu0
        %3442 = vmatprep.mubr.bf16.mxu0 0
        %3443 = vmatmul.mubr.bf16.gmra.mxu0 %v3369
        %v3444 = vpop.f32.mrf.mxu0
        %v3445 = vadd.f32 0.0, %v3444
        %v3446 = vpop.f32.mrf.mxu0
        %v3447 = vpop.f32.mrf.mxu0
        %v3448 = vadd.f32 0.0, %v3447
        %v3449 = vpop.f32.mrf.mxu0
        %3450 = vmatprep.mubr.bf16.mxu0 0
        %3451 = vmatmul.mubr.bf16.gmra.mxu0 %v3372
        %v3452 = vpop.f32.mrf.mxu0
        %v3453 = vadd.f32 0.0, %v3452
        %v3454 = vpop.f32.mrf.mxu0
        %v3455 = vpop.f32.mrf.mxu0
        %v3456 = vadd.f32 0.0, %v3455
        %v3457 = vpop.f32.mrf.mxu0
        %3458 = vmatprep.mubr.bf16.mxu0 0
        %3459 = vmatmul.mubr.bf16.gmra.mxu0 %v3375
        %v3460 = vpop.f32.mrf.mxu0
        %v3461 = vadd.f32 0.0, %v3460
        %v3462 = vpop.f32.mrf.mxu0
        %v3463 = vpop.f32.mrf.mxu0
        %v3464 = vadd.f32 0.0, %v3463
        %v3465 = vpop.f32.mrf.mxu0
        %3466 = vmatprep.mubr.bf16.mxu0 0
        %3467 = vmatmul.mubr.bf16.gmra.mxu0 %v3378
        %v3468 = vpop.f32.mrf.mxu0
        %v3469 = vadd.f32 0.0, %v3468
        %v3470 = vpop.f32.mrf.mxu0
        %v3471 = vpop.f32.mrf.mxu0
        %v3472 = vadd.f32 0.0, %v3471
        %v3473 = vpop.f32.mrf.mxu0
        %3474 = vmatprep.mubr.bf16.mxu0 0
        %3475 = vmatmul.mubr.bf16.gmra.mxu0 %v3381
        %v3476 = vpop.f32.mrf.mxu0
        %v3477 = vadd.f32 0.0, %v3476
        %v3478 = vpop.f32.mrf.mxu0
        %v3479 = vpop.f32.mrf.mxu0
        %v3480 = vadd.f32 0.0, %v3479
        %v3481 = vpop.f32.mrf.mxu0
        %3482 = vdwg.mxu0
        %v3483 = vadd.f32 %v3283, %v3421
        %v3484 = vadd.f32 %v3284, %v3424
        %v3485 = vadd.f32 %v3285, %v3429
        %v3486 = vadd.f32 %v3286, %v3432
        %v3487 = vadd.f32 %v3287, %v3437
        %v3488 = vadd.f32 %v3288, %v3440
        %v3489 = vadd.f32 %v3289, %v3445
        %v3490 = vadd.f32 %v3290, %v3448
        %v3491 = vadd.f32 %v3291, %v3453
        %v3492 = vadd.f32 %v3292, %v3456
        %v3493 = vadd.f32 %v3293, %v3461
        %v3494 = vadd.f32 %v3294, %v3464
        %v3495 = vadd.f32 %v3295, %v3469
        %v3496 = vadd.f32 %v3296, %v3472
        %v3497 = vadd.f32 %v3297, %v3477
        %v3498 = vadd.f32 %v3298, %v3480
        %v3499 = vadd.f32 %v3483, %v1057
        %v3500 = vadd.f32 %v3484, %v1057
        %v3501 = vadd.f32 %v3485, %v1057
        %v3502 = vadd.f32 %v3486, %v1057
        %v3503 = vadd.f32 %v3487, %v1057
        %v3504 = vadd.f32 %v3488, %v1057
        %v3505 = vadd.f32 %v3489, %v1057
        %v3506 = vadd.f32 %v3490, %v1057
        %v3507 = vadd.f32 %v3491, %v1057
        %v3508 = vadd.f32 %v3492, %v1057
        %v3509 = vadd.f32 %v3493, %v1057
        %v3510 = vadd.f32 %v3494, %v1057
        %v3511 = vadd.f32 %v3495, %v1057
        %v3512 = vadd.f32 %v3496, %v1057
        %v3513 = vadd.f32 %v3497, %v1057
        %v3514 = vadd.f32 %v3498, %v1057
        %v3515 = vmax.f32 %v3499, 0.0
        %v3516 = vmax.f32 %v3500, 0.0
        %v3517 = vmax.f32 %v3501, 0.0
        %v3518 = vmax.f32 %v3502, 0.0
        %v3519 = vmax.f32 %v3503, 0.0
        %v3520 = vmax.f32 %v3504, 0.0
        %v3521 = vmax.f32 %v3505, 0.0
        %v3522 = vmax.f32 %v3506, 0.0
        %v3523 = vmax.f32 %v3507, 0.0
        %v3524 = vmax.f32 %v3508, 0.0
        %v3525 = vmax.f32 %v3509, 0.0
        %v3526 = vmax.f32 %v3510, 0.0
        %v3527 = vmax.f32 %v3511, 0.0
        %v3528 = vmax.f32 %v3512, 0.0
        %v3529 = vmax.f32 %v3513, 0.0
        %v3530 = vmax.f32 %v3514, 0.0
        %s3531 = scalar_lea.vmem %s257, 384 [#allocation2]
        %3532 = vst [vmem:[%s3531] sm:$0xff] %v3515
        %3533 = vst [vmem:[%s3531 + $0x8] sm:$0xff] %v3516
        %3534 = vst [vmem:[%s3531 + $0x10] sm:$0xff] %v3517
        %3535 = vst [vmem:[%s3531 + $0x18] sm:$0xff] %v3518
        %3536 = vst [vmem:[%s3531 + $0x20] sm:$0xff] %v3519
        %3537 = vst [vmem:[%s3531 + $0x28] sm:$0xff] %v3520
        %3538 = vst [vmem:[%s3531 + $0x30] sm:$0xff] %v3521
        %3539 = vst [vmem:[%s3531 + $0x38] sm:$0xff] %v3522
        %3540 = vst [vmem:[%s3531 + $0x40] sm:$0xff] %v3523
        %3541 = vst [vmem:[%s3531 + $0x48] sm:$0xff] %v3524
        %3542 = vst [vmem:[%s3531 + $0x50] sm:$0xff] %v3525
        %3543 = vst [vmem:[%s3531 + $0x58] sm:$0xff] %v3526
        %3544 = vst [vmem:[%s3531 + $0x60] sm:$0xff] %v3527
        %3545 = vst [vmem:[%s3531 + $0x68] sm:$0xff] %v3528
        %3546 = vst [vmem:[%s3531 + $0x70] sm:$0xff] %v3529
        %3547 = vst [vmem:[%s3531 + $0x78] sm:$0xff] %v3530
        %s3548 = sand.u32 %s158, 1
        %s3549 = sand.u32 %s158, 1
        %s3550 = smul.addr %s3549, 512
        %s3551 = scalar_lea.vmem [#allocation2], %s3550
        // Predicated region
        $region41: #{decoder_block_forward.1} parent=39 // pred_check
          %p3552 = pneg %p168
        $region42: #{decoder_block_forward.1} parent=39 // pred_check_branch
          %3554 = sbr.rel (%p3552) target = $region44
        $region43: #{decoder_block_forward.1} parent=39 // pred_region
          %s3555 = smul.u32 16, %s21
          %s3556 = smul.addr %s20, 128
          %s3557 = sadd.s32 %s3555, %s3556
          %s3558 = smul.addr %s3557, 8
          %s3559 = scalar_lea.vmem %s5, %s3558
          // Predicated region
          $region45: #{decoder_block_forward.1} parent=43 // pred_check
            _
          $region46: #{decoder_block_forward.1} parent=43 // pred_check_branch
            %3561 = sbr.rel (0) target = $region48
          $region47: #{decoder_block_forward.1} parent=43 // pred_region
            // Predicated region
            $region49: #{decoder_block_forward.1} parent=47 // pred_check
              _
            $region50: #{decoder_block_forward.1} parent=47 // pred_check_branch
              %3563 = sbr.rel (0) target = $region52
            $region51: #{decoder_block_forward.1} parent=47 // pred_region
              // Predicated region
              $region64: #{decoder_block_forward.1} parent=51 // pred_check
                _
              $region65: #{decoder_block_forward.1} parent=51 // pred_check_branch
                %3705 = sbr.rel (0) target = $region67
              $region66: #{decoder_block_forward.1} parent=51 // pred_region
                loop: start=0, step=1, limit=1
                $region68: #{decoder_block_forward.1} parent=66 // loop_pre_header
                  _
                $region69: #{decoder_block_forward.1} parent=66 // loop_header
                  %s3707 = sphi 0, %s3711
                  %p3708 = scmp.ge.s32.totalorder %s3707, 1
                  %s3712 = sphi %s3551, %s3551
                  %s3713 = sphi %s3559, %s3559
                $region70: #{decoder_block_forward.1} parent=66 // loop_header_branch
                  %3710 = sbr.rel (%p3708) target = $region74
                $region71: #{decoder_block_forward.1} parent=66 // loop_body
                  %v3714 = vld [vmem:[%s3712] sm:$0xff]
                  %3715 = vst [vmem:[%s3713] sm:$0xff] %v3714
                  %v3716 = vld [vmem:[%s3712 + $0x8] sm:$0xff]
                  %3717 = vst [vmem:[%s3713 + $0x8] sm:$0xff] %v3716
                  %v3718 = vld [vmem:[%s3712 + $0x10] sm:$0xff]
                  %3719 = vst [vmem:[%s3713 + $0x10] sm:$0xff] %v3718
                  %v3720 = vld [vmem:[%s3712 + $0x18] sm:$0xff]
                  %3721 = vst [vmem:[%s3713 + $0x18] sm:$0xff] %v3720
                  %v3722 = vld [vmem:[%s3712 + $0x20] sm:$0xff]
                  %3723 = vst [vmem:[%s3713 + $0x20] sm:$0xff] %v3722
                  %v3724 = vld [vmem:[%s3712 + $0x28] sm:$0xff]
                  %3725 = vst [vmem:[%s3713 + $0x28] sm:$0xff] %v3724
                  %v3726 = vld [vmem:[%s3712 + $0x30] sm:$0xff]
                  %3727 = vst [vmem:[%s3713 + $0x30] sm:$0xff] %v3726
                  %v3728 = vld [vmem:[%s3712 + $0x38] sm:$0xff]
                  %3729 = vst [vmem:[%s3713 + $0x38] sm:$0xff] %v3728
                  %v3730 = vld [vmem:[%s3712 + $0x40] sm:$0xff]
                  %3731 = vst [vmem:[%s3713 + $0x40] sm:$0xff] %v3730
                  %v3732 = vld [vmem:[%s3712 + $0x48] sm:$0xff]
                  %3733 = vst [vmem:[%s3713 + $0x48] sm:$0xff] %v3732
                  %v3734 = vld [vmem:[%s3712 + $0x50] sm:$0xff]
                  %3735 = vst [vmem:[%s3713 + $0x50] sm:$0xff] %v3734
                  %v3736 = vld [vmem:[%s3712 + $0x58] sm:$0xff]
                  %3737 = vst [vmem:[%s3713 + $0x58] sm:$0xff] %v3736
                  %v3738 = vld [vmem:[%s3712 + $0x60] sm:$0xff]
                  %3739 = vst [vmem:[%s3713 + $0x60] sm:$0xff] %v3738
                  %v3740 = vld [vmem:[%s3712 + $0x68] sm:$0xff]
                  %3741 = vst [vmem:[%s3713 + $0x68] sm:$0xff] %v3740
                  %v3742 = vld [vmem:[%s3712 + $0x70] sm:$0xff]
                  %3743 = vst [vmem:[%s3713 + $0x70] sm:$0xff] %v3742
                  %v3744 = vld [vmem:[%s3712 + $0x78] sm:$0xff]
                  %3745 = vst [vmem:[%s3713 + $0x78] sm:$0xff] %v3744
                  %v3746 = vld [vmem:[%s3712 + $0x80] sm:$0xff]
                  %3747 = vst [vmem:[%s3713 + $0x100] sm:$0xff] %v3746
                  %v3748 = vld [vmem:[%s3712 + $0x88] sm:$0xff]
                  %3749 = vst [vmem:[%s3713 + $0x108] sm:$0xff] %v3748
                  %v3750 = vld [vmem:[%s3712 + $0x90] sm:$0xff]
                  %3751 = vst [vmem:[%s3713 + $0x110] sm:$0xff] %v3750
                  %v3752 = vld [vmem:[%s3712 + $0x98] sm:$0xff]
                  %3753 = vst [vmem:[%s3713 + $0x118] sm:$0xff] %v3752
                  %v3754 = vld [vmem:[%s3712 + $0xa0] sm:$0xff]
                  %3755 = vst [vmem:[%s3713 + $0x120] sm:$0xff] %v3754
                  %v3756 = vld [vmem:[%s3712 + $0xa8] sm:$0xff]
                  %3757 = vst [vmem:[%s3713 + $0x128] sm:$0xff] %v3756
                  %v3758 = vld [vmem:[%s3712 + $0xb0] sm:$0xff]
                  %3759 = vst [vmem:[%s3713 + $0x130] sm:$0xff] %v3758
                  %v3760 = vld [vmem:[%s3712 + $0xb8] sm:$0xff]
                  %3761 = vst [vmem:[%s3713 + $0x138] sm:$0xff] %v3760
                  %v3762 = vld [vmem:[%s3712 + $0xc0] sm:$0xff]
                  %3763 = vst [vmem:[%s3713 + $0x140] sm:$0xff] %v3762
                  %v3764 = vld [vmem:[%s3712 + $0xc8] sm:$0xff]
                  %3765 = vst [vmem:[%s3713 + $0x148] sm:$0xff] %v3764
                  %v3766 = vld [vmem:[%s3712 + $0xd0] sm:$0xff]
                  %3767 = vst [vmem:[%s3713 + $0x150] sm:$0xff] %v3766
                  %v3768 = vld [vmem:[%s3712 + $0xd8] sm:$0xff]
                  %3769 = vst [vmem:[%s3713 + $0x158] sm:$0xff] %v3768
                  %v3770 = vld [vmem:[%s3712 + $0xe0] sm:$0xff]
                  %3771 = vst [vmem:[%s3713 + $0x160] sm:$0xff] %v3770
                  %v3772 = vld [vmem:[%s3712 + $0xe8] sm:$0xff]
                  %3773 = vst [vmem:[%s3713 + $0x168] sm:$0xff] %v3772
                  %v3774 = vld [vmem:[%s3712 + $0xf0] sm:$0xff]
                  %3775 = vst [vmem:[%s3713 + $0x170] sm:$0xff] %v3774
                  %v3776 = vld [vmem:[%s3712 + $0xf8] sm:$0xff]
                  %3777 = vst [vmem:[%s3713 + $0x178] sm:$0xff] %v3776
                  %v3778 = vld [vmem:[%s3712 + $0x100] sm:$0xff]
                  %3779 = vst [vmem:[%s3713 + $0x200] sm:$0xff] %v3778
                  %v3780 = vld [vmem:[%s3712 + $0x108] sm:$0xff]
                  %3781 = vst [vmem:[%s3713 + $0x208] sm:$0xff] %v3780
                  %v3782 = vld [vmem:[%s3712 + $0x110] sm:$0xff]
                  %3783 = vst [vmem:[%s3713 + $0x210] sm:$0xff] %v3782
                  %v3784 = vld [vmem:[%s3712 + $0x118] sm:$0xff]
                  %3785 = vst [vmem:[%s3713 + $0x218] sm:$0xff] %v3784
                  %v3786 = vld [vmem:[%s3712 + $0x120] sm:$0xff]
                  %3787 = vst [vmem:[%s3713 + $0x220] sm:$0xff] %v3786
                  %v3788 = vld [vmem:[%s3712 + $0x128] sm:$0xff]
                  %3789 = vst [vmem:[%s3713 + $0x228] sm:$0xff] %v3788
                  %v3790 = vld [vmem:[%s3712 + $0x130] sm:$0xff]
                  %3791 = vst [vmem:[%s3713 + $0x230] sm:$0xff] %v3790
                  %v3792 = vld [vmem:[%s3712 + $0x138] sm:$0xff]
                  %3793 = vst [vmem:[%s3713 + $0x238] sm:$0xff] %v3792
                  %v3794 = vld [vmem:[%s3712 + $0x140] sm:$0xff]
                  %3795 = vst [vmem:[%s3713 + $0x240] sm:$0xff] %v3794
                  %v3796 = vld [vmem:[%s3712 + $0x148] sm:$0xff]
                  %3797 = vst [vmem:[%s3713 + $0x248] sm:$0xff] %v3796
                  %v3798 = vld [vmem:[%s3712 + $0x150] sm:$0xff]
                  %3799 = vst [vmem:[%s3713 + $0x250] sm:$0xff] %v3798
                  %v3800 = vld [vmem:[%s3712 + $0x158] sm:$0xff]
                  %3801 = vst [vmem:[%s3713 + $0x258] sm:$0xff] %v3800
                  %v3802 = vld [vmem:[%s3712 + $0x160] sm:$0xff]
                  %3803 = vst [vmem:[%s3713 + $0x260] sm:$0xff] %v3802
                  %v3804 = vld [vmem:[%s3712 + $0x168] sm:$0xff]
                  %3805 = vst [vmem:[%s3713 + $0x268] sm:$0xff] %v3804
                  %v3806 = vld [vmem:[%s3712 + $0x170] sm:$0xff]
                  %3807 = vst [vmem:[%s3713 + $0x270] sm:$0xff] %v3806
                  %v3808 = vld [vmem:[%s3712 + $0x178] sm:$0xff]
                  %3809 = vst [vmem:[%s3713 + $0x278] sm:$0xff] %v3808
                  %v3810 = vld [vmem:[%s3712 + $0x180] sm:$0xff]
                  %3811 = vst [vmem:[%s3713 + $0x300] sm:$0xff] %v3810
                  %v3812 = vld [vmem:[%s3712 + $0x188] sm:$0xff]
                  %3813 = vst [vmem:[%s3713 + $0x308] sm:$0xff] %v3812
                  %v3814 = vld [vmem:[%s3712 + $0x190] sm:$0xff]
                  %3815 = vst [vmem:[%s3713 + $0x310] sm:$0xff] %v3814
                  %v3816 = vld [vmem:[%s3712 + $0x198] sm:$0xff]
                  %3817 = vst [vmem:[%s3713 + $0x318] sm:$0xff] %v3816
                  %v3818 = vld [vmem:[%s3712 + $0x1a0] sm:$0xff]
                  %3819 = vst [vmem:[%s3713 + $0x320] sm:$0xff] %v3818
                  %v3820 = vld [vmem:[%s3712 + $0x1a8] sm:$0xff]
                  %3821 = vst [vmem:[%s3713 + $0x328] sm:$0xff] %v3820
                  %v3822 = vld [vmem:[%s3712 + $0x1b0] sm:$0xff]
                  %3823 = vst [vmem:[%s3713 + $0x330] sm:$0xff] %v3822
                  %v3824 = vld [vmem:[%s3712 + $0x1b8] sm:$0xff]
                  %3825 = vst [vmem:[%s3713 + $0x338] sm:$0xff] %v3824
                  %v3826 = vld [vmem:[%s3712 + $0x1c0] sm:$0xff]
                  %3827 = vst [vmem:[%s3713 + $0x340] sm:$0xff] %v3826
                  %v3828 = vld [vmem:[%s3712 + $0x1c8] sm:$0xff]
                  %3829 = vst [vmem:[%s3713 + $0x348] sm:$0xff] %v3828
                  %v3830 = vld [vmem:[%s3712 + $0x1d0] sm:$0xff]
                  %3831 = vst [vmem:[%s3713 + $0x350] sm:$0xff] %v3830
                  %v3832 = vld [vmem:[%s3712 + $0x1d8] sm:$0xff]
                  %3833 = vst [vmem:[%s3713 + $0x358] sm:$0xff] %v3832
                  %v3834 = vld [vmem:[%s3712 + $0x1e0] sm:$0xff]
                  %3835 = vst [vmem:[%s3713 + $0x360] sm:$0xff] %v3834
                  %v3836 = vld [vmem:[%s3712 + $0x1e8] sm:$0xff]
                  %3837 = vst [vmem:[%s3713 + $0x368] sm:$0xff] %v3836
                  %v3838 = vld [vmem:[%s3712 + $0x1f0] sm:$0xff]
                  %3839 = vst [vmem:[%s3713 + $0x370] sm:$0xff] %v3838
                  %v3840 = vld [vmem:[%s3712 + $0x1f8] sm:$0xff]
                  %3841 = vst [vmem:[%s3713 + $0x378] sm:$0xff] %v3840
                $region72: #{decoder_block_forward.1} parent=66 // loop_footer
                  %s3711 = sadd.s32 1, %s3707
                $region73: #{decoder_block_forward.1} parent=66 // loop_footer_branch
                  %3706 = sbr.rel target = $region69
                $region74: #{decoder_block_forward.1} parent=66 // loop_exit
                  _
              $region67: #{decoder_block_forward.1} parent=51 // pred_fallthru
                _
              // Predicated region
              $region75: #{decoder_block_forward.1} parent=51 // pred_check
                _
              $region76: #{decoder_block_forward.1} parent=51 // pred_check_branch
                %3843 = sbr.rel target = $region78
              $region77: #{decoder_block_forward.1} parent=51 // pred_region
                _
              $region78: #{decoder_block_forward.1} parent=51 // pred_fallthru
                _
            $region52: #{decoder_block_forward.1} parent=47 // pred_fallthru
              _
            // Predicated region
            $region53: #{decoder_block_forward.1} parent=47 // pred_check
              _
            $region54: #{decoder_block_forward.1} parent=47 // pred_check_branch
              %3565 = sbr.rel target = $region56
            $region55: #{decoder_block_forward.1} parent=47 // pred_region
              %s3567 = ssub.s32 256, 1
              loop: start=0, step=1, limit=1
              $region57: #{decoder_block_forward.1} parent=55 // loop_pre_header
                _
              $region58: #{decoder_block_forward.1} parent=55 // loop_header
                %s3569 = sphi 0, %s3573
                %p3570 = scmp.ge.s32.totalorder %s3569, 1
                %s3574 = sphi %s3551, %s3551
                %s3575 = sphi %s3559, %s3559
              $region59: #{decoder_block_forward.1} parent=55 // loop_header_branch
                %3572 = sbr.rel (%p3570) target = $region63
              $region60: #{decoder_block_forward.1} parent=55 // loop_body
                %v3576 = vld [vmem:[%s3574] sm:%s3567]
                %3577 = vst [vmem:[%s3575] sm:%s3567] %v3576
                %v3578 = vld [vmem:[%s3574 + $0x8] sm:%s3567]
                %3579 = vst [vmem:[%s3575 + $0x8] sm:%s3567] %v3578
                %v3580 = vld [vmem:[%s3574 + $0x10] sm:%s3567]
                %3581 = vst [vmem:[%s3575 + $0x10] sm:%s3567] %v3580
                %v3582 = vld [vmem:[%s3574 + $0x18] sm:%s3567]
                %3583 = vst [vmem:[%s3575 + $0x18] sm:%s3567] %v3582
                %v3584 = vld [vmem:[%s3574 + $0x20] sm:%s3567]
                %3585 = vst [vmem:[%s3575 + $0x20] sm:%s3567] %v3584
                %v3586 = vld [vmem:[%s3574 + $0x28] sm:%s3567]
                %3587 = vst [vmem:[%s3575 + $0x28] sm:%s3567] %v3586
                %v3588 = vld [vmem:[%s3574 + $0x30] sm:%s3567]
                %3589 = vst [vmem:[%s3575 + $0x30] sm:%s3567] %v3588
                %v3590 = vld [vmem:[%s3574 + $0x38] sm:%s3567]
                %3591 = vst [vmem:[%s3575 + $0x38] sm:%s3567] %v3590
                %v3592 = vld [vmem:[%s3574 + $0x40] sm:%s3567]
                %3593 = vst [vmem:[%s3575 + $0x40] sm:%s3567] %v3592
                %v3594 = vld [vmem:[%s3574 + $0x48] sm:%s3567]
                %3595 = vst [vmem:[%s3575 + $0x48] sm:%s3567] %v3594
                %v3596 = vld [vmem:[%s3574 + $0x50] sm:%s3567]
                %3597 = vst [vmem:[%s3575 + $0x50] sm:%s3567] %v3596
                %v3598 = vld [vmem:[%s3574 + $0x58] sm:%s3567]
                %3599 = vst [vmem:[%s3575 + $0x58] sm:%s3567] %v3598
                %v3600 = vld [vmem:[%s3574 + $0x60] sm:%s3567]
                %3601 = vst [vmem:[%s3575 + $0x60] sm:%s3567] %v3600
                %v3602 = vld [vmem:[%s3574 + $0x68] sm:%s3567]
                %3603 = vst [vmem:[%s3575 + $0x68] sm:%s3567] %v3602
                %v3604 = vld [vmem:[%s3574 + $0x70] sm:%s3567]
                %3605 = vst [vmem:[%s3575 + $0x70] sm:%s3567] %v3604
                %v3606 = vld [vmem:[%s3574 + $0x78] sm:%s3567]
                %3607 = vst [vmem:[%s3575 + $0x78] sm:%s3567] %v3606
                %v3608 = vld [vmem:[%s3574 + $0x80] sm:%s3567]
                %3609 = vst [vmem:[%s3575 + $0x100] sm:%s3567] %v3608
                %v3610 = vld [vmem:[%s3574 + $0x88] sm:%s3567]
                %3611 = vst [vmem:[%s3575 + $0x108] sm:%s3567] %v3610
                %v3612 = vld [vmem:[%s3574 + $0x90] sm:%s3567]
                %3613 = vst [vmem:[%s3575 + $0x110] sm:%s3567] %v3612
                %v3614 = vld [vmem:[%s3574 + $0x98] sm:%s3567]
                %3615 = vst [vmem:[%s3575 + $0x118] sm:%s3567] %v3614
                %v3616 = vld [vmem:[%s3574 + $0xa0] sm:%s3567]
                %3617 = vst [vmem:[%s3575 + $0x120] sm:%s3567] %v3616
                %v3618 = vld [vmem:[%s3574 + $0xa8] sm:%s3567]
                %3619 = vst [vmem:[%s3575 + $0x128] sm:%s3567] %v3618
                %v3620 = vld [vmem:[%s3574 + $0xb0] sm:%s3567]
                %3621 = vst [vmem:[%s3575 + $0x130] sm:%s3567] %v3620
                %v3622 = vld [vmem:[%s3574 + $0xb8] sm:%s3567]
                %3623 = vst [vmem:[%s3575 + $0x138] sm:%s3567] %v3622
                %v3624 = vld [vmem:[%s3574 + $0xc0] sm:%s3567]
                %3625 = vst [vmem:[%s3575 + $0x140] sm:%s3567] %v3624
                %v3626 = vld [vmem:[%s3574 + $0xc8] sm:%s3567]
                %3627 = vst [vmem:[%s3575 + $0x148] sm:%s3567] %v3626
                %v3628 = vld [vmem:[%s3574 + $0xd0] sm:%s3567]
                %3629 = vst [vmem:[%s3575 + $0x150] sm:%s3567] %v3628
                %v3630 = vld [vmem:[%s3574 + $0xd8] sm:%s3567]
                %3631 = vst [vmem:[%s3575 + $0x158] sm:%s3567] %v3630
                %v3632 = vld [vmem:[%s3574 + $0xe0] sm:%s3567]
                %3633 = vst [vmem:[%s3575 + $0x160] sm:%s3567] %v3632
                %v3634 = vld [vmem:[%s3574 + $0xe8] sm:%s3567]
                %3635 = vst [vmem:[%s3575 + $0x168] sm:%s3567] %v3634
                %v3636 = vld [vmem:[%s3574 + $0xf0] sm:%s3567]
                %3637 = vst [vmem:[%s3575 + $0x170] sm:%s3567] %v3636
                %v3638 = vld [vmem:[%s3574 + $0xf8] sm:%s3567]
                %3639 = vst [vmem:[%s3575 + $0x178] sm:%s3567] %v3638
                %v3640 = vld [vmem:[%s3574 + $0x100] sm:%s3567]
                %3641 = vst [vmem:[%s3575 + $0x200] sm:%s3567] %v3640
                %v3642 = vld [vmem:[%s3574 + $0x108] sm:%s3567]
                %3643 = vst [vmem:[%s3575 + $0x208] sm:%s3567] %v3642
                %v3644 = vld [vmem:[%s3574 + $0x110] sm:%s3567]
                %3645 = vst [vmem:[%s3575 + $0x210] sm:%s3567] %v3644
                %v3646 = vld [vmem:[%s3574 + $0x118] sm:%s3567]
                %3647 = vst [vmem:[%s3575 + $0x218] sm:%s3567] %v3646
                %v3648 = vld [vmem:[%s3574 + $0x120] sm:%s3567]
                %3649 = vst [vmem:[%s3575 + $0x220] sm:%s3567] %v3648
                %v3650 = vld [vmem:[%s3574 + $0x128] sm:%s3567]
                %3651 = vst [vmem:[%s3575 + $0x228] sm:%s3567] %v3650
                %v3652 = vld [vmem:[%s3574 + $0x130] sm:%s3567]
                %3653 = vst [vmem:[%s3575 + $0x230] sm:%s3567] %v3652
                %v3654 = vld [vmem:[%s3574 + $0x138] sm:%s3567]
                %3655 = vst [vmem:[%s3575 + $0x238] sm:%s3567] %v3654
                %v3656 = vld [vmem:[%s3574 + $0x140] sm:%s3567]
                %3657 = vst [vmem:[%s3575 + $0x240] sm:%s3567] %v3656
                %v3658 = vld [vmem:[%s3574 + $0x148] sm:%s3567]
                %3659 = vst [vmem:[%s3575 + $0x248] sm:%s3567] %v3658
                %v3660 = vld [vmem:[%s3574 + $0x150] sm:%s3567]
                %3661 = vst [vmem:[%s3575 + $0x250] sm:%s3567] %v3660
                %v3662 = vld [vmem:[%s3574 + $0x158] sm:%s3567]
                %3663 = vst [vmem:[%s3575 + $0x258] sm:%s3567] %v3662
                %v3664 = vld [vmem:[%s3574 + $0x160] sm:%s3567]
                %3665 = vst [vmem:[%s3575 + $0x260] sm:%s3567] %v3664
                %v3666 = vld [vmem:[%s3574 + $0x168] sm:%s3567]
                %3667 = vst [vmem:[%s3575 + $0x268] sm:%s3567] %v3666
                %v3668 = vld [vmem:[%s3574 + $0x170] sm:%s3567]
                %3669 = vst [vmem:[%s3575 + $0x270] sm:%s3567] %v3668
                %v3670 = vld [vmem:[%s3574 + $0x178] sm:%s3567]
                %3671 = vst [vmem:[%s3575 + $0x278] sm:%s3567] %v3670
                %v3672 = vld [vmem:[%s3574 + $0x180] sm:%s3567]
                %3673 = vst [vmem:[%s3575 + $0x300] sm:%s3567] %v3672
                %v3674 = vld [vmem:[%s3574 + $0x188] sm:%s3567]
                %3675 = vst [vmem:[%s3575 + $0x308] sm:%s3567] %v3674
                %v3676 = vld [vmem:[%s3574 + $0x190] sm:%s3567]
                %3677 = vst [vmem:[%s3575 + $0x310] sm:%s3567] %v3676
                %v3678 = vld [vmem:[%s3574 + $0x198] sm:%s3567]
                %3679 = vst [vmem:[%s3575 + $0x318] sm:%s3567] %v3678
                %v3680 = vld [vmem:[%s3574 + $0x1a0] sm:%s3567]
                %3681 = vst [vmem:[%s3575 + $0x320] sm:%s3567] %v3680
                %v3682 = vld [vmem:[%s3574 + $0x1a8] sm:%s3567]
                %3683 = vst [vmem:[%s3575 + $0x328] sm:%s3567] %v3682
                %v3684 = vld [vmem:[%s3574 + $0x1b0] sm:%s3567]
                %3685 = vst [vmem:[%s3575 + $0x330] sm:%s3567] %v3684
                %v3686 = vld [vmem:[%s3574 + $0x1b8] sm:%s3567]
                %3687 = vst [vmem:[%s3575 + $0x338] sm:%s3567] %v3686
                %v3688 = vld [vmem:[%s3574 + $0x1c0] sm:%s3567]
                %3689 = vst [vmem:[%s3575 + $0x340] sm:%s3567] %v3688
                %v3690 = vld [vmem:[%s3574 + $0x1c8] sm:%s3567]
                %3691 = vst [vmem:[%s3575 + $0x348] sm:%s3567] %v3690
                %v3692 = vld [vmem:[%s3574 + $0x1d0] sm:%s3567]
                %3693 = vst [vmem:[%s3575 + $0x350] sm:%s3567] %v3692
                %v3694 = vld [vmem:[%s3574 + $0x1d8] sm:%s3567]
                %3695 = vst [vmem:[%s3575 + $0x358] sm:%s3567] %v3694
                %v3696 = vld [vmem:[%s3574 + $0x1e0] sm:%s3567]
                %3697 = vst [vmem:[%s3575 + $0x360] sm:%s3567] %v3696
                %v3698 = vld [vmem:[%s3574 + $0x1e8] sm:%s3567]
                %3699 = vst [vmem:[%s3575 + $0x368] sm:%s3567] %v3698
                %v3700 = vld [vmem:[%s3574 + $0x1f0] sm:%s3567]
                %3701 = vst [vmem:[%s3575 + $0x370] sm:%s3567] %v3700
                %v3702 = vld [vmem:[%s3574 + $0x1f8] sm:%s3567]
                %3703 = vst [vmem:[%s3575 + $0x378] sm:%s3567] %v3702
              $region61: #{decoder_block_forward.1} parent=55 // loop_footer
                %s3573 = sadd.s32 1, %s3569
              $region62: #{decoder_block_forward.1} parent=55 // loop_footer_branch
                %3568 = sbr.rel target = $region58
              $region63: #{decoder_block_forward.1} parent=55 // loop_exit
                _
            $region56: #{decoder_block_forward.1} parent=47 // pred_fallthru
              _
          $region48: #{decoder_block_forward.1} parent=43 // pred_fallthru
            _
          %3844 = vnop
        $region44: #{decoder_block_forward.1} parent=39 // pred_fallthru
          _
      $region40: #{decoder_block_forward.1} parent=5 // pred_fallthru
        _
      %p3845 = scmp.le.s32.totalorder 2, %s11
      // Predicated region
      $region79: #{decoder_block_forward.1} parent=5 // pred_check
        %p3846 = pneg %p3845
      $region80: #{decoder_block_forward.1} parent=5 // pred_check_branch
        %3848 = sbr.rel (%p3846) target = $region82
      $region81: #{decoder_block_forward.1} parent=5 // pred_region
        %s3849 = ssub.s32 %s11, 2
        // Predicated region
        $region83: #{decoder_block_forward.1} parent=81 // pred_check
          %p3850 = pneg %p174
        $region84: #{decoder_block_forward.1} parent=81 // pred_check_branch
          %3852 = sbr.rel (%p3850) target = $region86
        $region85: #{decoder_block_forward.1} parent=81 // pred_region
          %s3853 = sand.u32 %s159, 1
          %s3854 = sand.u32 %s159, 1
          %s3855 = smul.addr %s3854, 512
          %s3856 = scalar_lea.vmem [#allocation2], %s3855
        $region86: #{decoder_block_forward.1} parent=81 // pred_fallthru
          _
      $region82: #{decoder_block_forward.1} parent=5 // pred_fallthru
        _
    $region6: #{decoder_block_forward.1} parent=1 // loop_footer
      %s15 = sadd.s32 1, %s11
    $region7: #{decoder_block_forward.1} parent=1 // loop_footer_branch
      %10 = sbr.rel target = $region3
    $region8: #{decoder_block_forward.1} parent=1 // loop_exit
      _

</llo_original>
